<compile_context>
chip_gen: v7x
topology: tpu7x:2x2x1
jax: 0.10.0
libtpu: 0.0.40
codegen_flags: <defaults>
</compile_context>

<pallas_src>
import numpy as np
import jax
import jax.numpy as jnp
from jax.experimental import pallas as pl
from jax.experimental.pallas import tpu as pltpu

# ---- model hyper-params (opt.*) -------------------------------------------
EMBED_DIM = 32      # opt.embedding_dim  (must equal rnn_hidden for the torch.cat to work)
RNN_HIDDEN = 32     # opt.rnn_hidden
NUM_LAYERS = 2      # opt.num_layers   (kernel is specialized to 2 layers: wavefront + block-diag fusion)
VOCAB = 40          # len(word2ix)
IMG_FEAT = 2048     # fixed by nn.Linear(2048, rnn_hidden)
LANE = 128          # TPU lane width

assert NUM_LAYERS == 2, "fused wavefront kernel is specialized to 2 LSTM layers"


def _full_spec(shape):
    """BlockSpec covering the whole array at the single grid point."""
    nd = len(shape)
    return pl.BlockSpec(tuple(int(d) for d in shape), lambda i, _nd=nd: (0,) * _nd)


def _make_fused_kernel(T, B_pad, H):
    """Whole CaptionModel.forward in one kernel (wavefront over the two LSTM layers).

    Ref order:
      inputs : img(bf16), cap_flat, mask(T,B_pad,1), fc_w_t(bf16), fc_b,
               w_ih0_t, b0, w_comb(2H,8H), b1, cls_w_pad(H,128), cls_b_pad(1,128)
      outputs: logits (T*B_pad, 128), state (B_pad, 4H) = [h_l0 | h_l1 | c_l0 | c_l1]
    """

    def kernel(img_ref, cap_ref, mask_ref, fcw_ref, fcb_ref,
               wih0_ref, b0_ref, wcomb_ref, b1_ref, clsw_ref, clsb_ref,
               logits_ref, state_ref):
        f32 = jnp.float32
        wcomb = wcomb_ref[...]                                   # (2H, 8H) fused recurrent matrix
        b1 = b1_ref[...]                                         # (1, 4H)
        wih0 = wih0_ref[...]                                     # (E, 4H)
        b0 = b0_ref[...]                                         # (1, 4H)

        # ---- self.fc on the image feature (bf16 operands, f32 accumulate) -------------
        img_emb = (jnp.dot(img_ref[...], fcw_ref[...],
                           preferred_element_type=f32) + fcb_ref[...])          # (B_pad, H)

        # ---- hoisted layer-0 input projection (one matmul for img step, one for captions)
        xg0_img = jnp.dot(img_emb, wih0, preferred_element_type=f32) + b0       # (B_pad, 4H)
        xg0_cap = jnp.dot(cap_ref[...], wih0, preferred_element_type=f32) + b0  # ((T-1)*B_pad, 4H)

        def lstm_update(gates, h_prev, c_prev, m):
            i_g = jax.nn.sigmoid(gates[:, 0 * H:1 * H])
            f_g = jax.nn.sigmoid(gates[:, 1 * H:2 * H])
            g_g = jnp.tanh(gates[:, 2 * H:3 * H])
            o_g = jax.nn.sigmoid(gates[:, 3 * H:4 * H])
            c_new = f_g * c_prev + i_g * g_g
            h_new = o_g * jnp.tanh(c_new)
            # freeze state past each sequence's length (pack_padded_sequence semantics)
            h_upd = h_prev + m * (h_new - h_prev)
            c_upd = c_prev + m * (c_new - c_prev)
            return h_upd, c_upd

        zeros_bh = jnp.zeros((B_pad, H), f32)
        h0, c0, h1, c1 = zeros_bh, zeros_bh, zeros_bh, zeros_bh
        h1_steps = []                                            # layer-1 outputs, kept in registers

        # Wavefront: wave w runs layer-0 step w (w < T) and layer-1 step w-1 (w >= 1).
        # Per wave, ONE block matmul gives both layers' recurrent terms and layer-1's
        # input projection:  [h0_{w-1} | h1_{w-2}] @ [[Whh0^T, Wih1^T], [0, Whh1^T]].
        for w in range(T + 1):
            if w == 0:
                # h0_prev == 0  =>  recurrent term vanishes
                h0, c0 = lstm_update(xg0_img, h0, c0, mask_ref[0])
            else:
                rec = jnp.dot(jnp.concatenate([h0, h1], axis=1), wcomb,
                              preferred_element_type=f32)        # (B_pad, 8H)
                gates1 = rec[:, 4 * H:] + b1
                if w < T:
                    gates0 = xg0_cap[(w - 1) * B_pad:w * B_pad, :] + rec[:, :4 * H]
                # layer-1 step (w-1)
                h1, c1 = lstm_update(gates1, h1, c1, mask_ref[w - 1])
                h1_steps.append(h1)
                # layer-0 step w
                if w < T:
                    h0, c0 = lstm_update(gates0, h0, c0, mask_ref[w])

        # ---- classifier over the full layer-1 output slab (lane-padded to 128) ---------
        out_seq = jnp.concatenate(h1_steps, axis=0)              # (T*B_pad, H)
        logits_ref[...] = (jnp.dot(out_seq, clsw_ref[...],
                                   preferred_element_type=f32) + clsb_ref[...])
        # h_n/c_n packed into one lane-dense (B_pad, 4H) tile: [h_l0 | h_l1 | c_l0 | c_l1]
        state_ref[...] = jnp.concatenate([h0, h1, c0, c1], axis=1)

    return kernel


# ---------------------------------------------------------------------------
# jitted core: compiles once per (B, T_cap) shape, independent of lengths values
# ---------------------------------------------------------------------------
@jax.jit
def _forward_core(params, img_feats, captions, lengths_arr):
    T_cap, B = captions.shape
    T = T_cap + 1
    H = RNN_HIDDEN
    B_pad = ((B + 7) // 8) * 8
    f32 = jnp.float32

    # embeddings = self.embedding(captions)  (glue: gather in plain JAX) + batch padding to B_pad
    cap_emb = params["embedding"][captions]                                   # (T_cap, B, E)
    cap_emb = jnp.pad(cap_emb, ((0, 0), (0, B_pad - B), (0, 0)))
    cap_flat = cap_emb.reshape(T_cap * B_pad, EMBED_DIM)                      # row index = t*B_pad + b

    img_pad = jnp.pad(img_feats, ((0, B_pad - B), (0, 0))).astype(jnp.bfloat16)

    # compact validity mask from the *device* lengths array (padded rows get length 0)
    lengths_pad = jnp.pad(lengths_arr.astype(jnp.int32), (0, B_pad - B))
    mask = (jnp.arange(T)[:, None] < lengths_pad[None, :]).astype(f32)[:, :, None]   # (T, B_pad, 1)

    # pre-transposed weights, pre-summed biases, bf16 fc weight, fused block-diag recurrent
    # matrix, lane-padded classifier
    fc_w_t = params["fc_w"].T.astype(jnp.bfloat16)                            # (2048, H) bf16
    fc_b = params["fc_b"].reshape(1, H)
    w_ih0_t = params["w_ih_l0"].T                                             # (E, 4H)
    b0 = (params["b_ih_l0"] + params["b_hh_l0"]).reshape(1, 4 * H)
    b1 = (params["b_ih_l1"] + params["b_hh_l1"]).reshape(1, 4 * H)
    w_comb = jnp.concatenate(
        [jnp.concatenate([params["w_hh_l0"].T, params["w_ih_l1"].T], axis=1),
         jnp.concatenate([jnp.zeros((H, 4 * H), f32), params["w_hh_l1"].T], axis=1)],
        axis=0)                                                               # (2H, 8H)
    cls_w_pad = jnp.zeros((H, LANE), f32).at[:, :VOCAB].set(params["cls_w"].T)
    cls_b_pad = jnp.zeros((1, LANE), f32).at[:, :VOCAB].set(params["cls_b"].reshape(1, VOCAB))

    inputs = [img_pad, cap_flat, mask, fc_w_t, fc_b,
              w_ih0_t, b0, w_comb, b1, cls_w_pad, cls_b_pad]
    out_shape = (jax.ShapeDtypeStruct((T * B_pad, LANE), f32),                # lane-dense logits slab
                 jax.ShapeDtypeStruct((B_pad, 4 * H), f32))                   # [h0|h1|c0|c1]

    grid_spec = pltpu.PrefetchScalarGridSpec(
        num_scalar_prefetch=0,
        grid=(1,),
        in_specs=[_full_spec(x.shape) for x in inputs],
        out_specs=[_full_spec(s.shape) for s in out_shape],
    )
    logits_pad, state = pl.pallas_call(
        _make_fused_kernel(T, B_pad, H),
        out_shape=out_shape,
        grid_spec=grid_spec,
        compiler_params=pltpu.CompilerParams(dimension_semantics=("arbitrary",)),
    )(*inputs)

    logits_full = logits_pad[:, :VOCAB]                                       # (T*B_pad, VOCAB)
    h_n = jnp.stack([state[:B, 0 * H:1 * H], state[:B, 1 * H:2 * H]], axis=0)
    c_n = jnp.stack([state[:B, 2 * H:3 * H], state[:B, 3 * H:4 * H]], axis=0)
    return logits_full, h_n, c_n


# ---------------------------------------------------------------------------
# CaptionModel.forward
# ---------------------------------------------------------------------------
def caption_model_forward(params, img_feats, captions, lengths):
    """img_feats: (B, 2048) f32; captions: (T_cap, B) int32; lengths: descending, per-sample."""
    T_cap, B = captions.shape
    T = T_cap + 1
    B_pad = ((B + 7) // 8) * 8

    lengths_host = [int(l) for l in lengths]
    assert len(lengths_host) == B and max(lengths_host) <= T

    # heavy path: compiled once per (B, T_cap), lengths enter only as a device array (no retrace)
    logits_full, h_n, c_n = _forward_core(
        params, img_feats, captions, jnp.asarray(lengths_host, jnp.int32))

    # outputs[0] -> packed data in PyTorch packed order (timestep-major over valid rows).
    # TODO(synk): the packed row count sum(lengths) is inherently data-dependent, so this final
    # tiny gather (and only it) still specializes on the lengths pattern.
    flat_idx = np.asarray([t * B_pad + b for t in range(T) for b in range(B)
                           if t < lengths_host[b]], np.int32)
    pred = jnp.take(logits_full, jnp.asarray(flat_idx), axis=0)               # (sum(lengths), VOCAB)
    return pred, (h_n, c_n)


# ---------------------------------------------------------------------------
# deterministic parameter init (shapes from CaptionModel.__init__)
# ---------------------------------------------------------------------------
def init_params(key):
    keys = jax.random.split(key, 16)
    k = iter(keys)
    s = 0.05
    p = {
        "fc_w": s * jax.random.normal(next(k), (RNN_HIDDEN, IMG_FEAT), jnp.float32),
        "fc_b": s * jax.random.normal(next(k), (RNN_HIDDEN,), jnp.float32),
        "cls_w": s * jax.random.normal(next(k), (VOCAB, RNN_HIDDEN), jnp.float32),
        "cls_b": s * jax.random.normal(next(k), (VOCAB,), jnp.float32),
        "embedding": s * jax.random.normal(next(k), (VOCAB, EMBED_DIM), jnp.float32),
    }
    for layer in range(NUM_LAYERS):
        in_dim = EMBED_DIM if layer == 0 else RNN_HIDDEN
        p[f"w_ih_l{layer}"] = s * jax.random.normal(next(k), (4 * RNN_HIDDEN, in_dim), jnp.float32)
        p[f"w_hh_l{layer}"] = s * jax.random.normal(next(k), (4 * RNN_HIDDEN, RNN_HIDDEN), jnp.float32)
        p[f"b_ih_l{layer}"] = s * jax.random.normal(next(k), (4 * RNN_HIDDEN,), jnp.float32)
        p[f"b_hh_l{layer}"] = s * jax.random.normal(next(k), (4 * RNN_HIDDEN,), jnp.float32)
    return p


# ---------------------------------------------------------------------------
# pure-JAX reference (mirrors the PyTorch forward) for a correctness check
# ---------------------------------------------------------------------------
def _reference_forward(params, img_feats, captions, lengths):
    T_cap, B = captions.shape
    T = T_cap + 1
    H = RNN_HIDDEN
    lengths = [int(l) for l in lengths]
    emb = params["embedding"][captions]
    img = img_feats @ params["fc_w"].T + params["fc_b"]
    x = jnp.concatenate([img[None], emb], 0)                                  # (T, B, E)
    mask = (np.arange(T)[:, None] < np.asarray(lengths)[None, :]).astype(np.float32)
    h_n, c_n = [], []
    for l in range(NUM_LAYERS):
        w_ih, w_hh = params[f"w_ih_l{l}"], params[f"w_hh_l{l}"]
        b = params[f"b_ih_l{l}"] + params[f"b_hh_l{l}"]
        h = jnp.zeros((B, H), jnp.float32)
        c = jnp.zeros((B, H), jnp.float32)
        ys = []
        for t in range(T):
            g = x[t] @ w_ih.T + h @ w_hh.T + b
            i = jax.nn.sigmoid(g[:, :H]); f = jax.nn.sigmoid(g[:, H:2 * H])
            gg = jnp.tanh(g[:, 2 * H:3 * H]); o = jax.nn.sigmoid(g[:, 3 * H:])
            c_new = f * c + i * gg
            h_new = o * jnp.tanh(c_new)
            m = mask[t][:, None]
            h = m * h_new + (1 - m) * h
            c = m * c_new + (1 - m) * c
            ys.append(h)
        x = jnp.stack(ys, 0)
        h_n.append(h); c_n.append(c)
    idx_t = [t for t in range(T) for b_ in range(B) if t < lengths[b_]]
    idx_b = [b_ for t in range(T) for b_ in range(B) if t < lengths[b_]]
    packed = x[jnp.asarray(idx_t), jnp.asarray(idx_b)]
    pred = packed @ params["cls_w"].T + params["cls_b"]
    return pred, (jnp.stack(h_n, 0), jnp.stack(c_n, 0))


if __name__ == "__main__":
    key = jax.random.PRNGKey(0)
    pkey, ikey, ckey = jax.random.split(key, 3)

    params = init_params(pkey)

    B = 4
    T_cap = 7                                   # caption length; total seq = T_cap + 1 (img feat first)
    img_feats = jax.random.normal(ikey, (B, IMG_FEAT), jnp.float32)
    captions = jax.random.randint(ckey, (T_cap, B), 0, VOCAB, jnp.int32)
    lengths = [8, 6, 5, 3]                      # descending, as pack_padded_sequence requires

    pred, (h_n, c_n) = caption_model_forward(params, img_feats, captions, lengths)
    jax.block_until_ready((pred, h_n, c_n))

    assert pred.shape == (sum(lengths), VOCAB)
    assert h_n.shape == (NUM_LAYERS, B, RNN_HIDDEN)
    assert c_n.shape == (NUM_LAYERS, B, RNN_HIDDEN)

    ref_pred, (ref_h, ref_c) = _reference_forward(params, img_feats, captions, lengths)
    np.testing.assert_allclose(np.asarray(pred), np.asarray(ref_pred), rtol=2e-2, atol=2e-2)
    np.testing.assert_allclose(np.asarray(h_n), np.asarray(ref_h), rtol=2e-2, atol=2e-2)
    np.testing.assert_allclose(np.asarray(c_n), np.asarray(ref_c), rtol=2e-2, atol=2e-2)

    print("KERNEL_OK")
</pallas_src>

<mosaic_0001>
module attributes {stable_mosaic.version = 11 : i64} {
  func.func @kernel(%arg0: i32, %arg1: memref<8x2048xbf16, #tpu.memory_space<vmem>>, %arg2: memref<56x32xf32, #tpu.memory_space<vmem>>, %arg3: memref<8x8x1xf32, #tpu.memory_space<vmem>>, %arg4: memref<2048x32xbf16, #tpu.memory_space<vmem>>, %arg5: memref<1x32xf32, #tpu.memory_space<vmem>>, %arg6: memref<32x128xf32, #tpu.memory_space<vmem>>, %arg7: memref<1x128xf32, #tpu.memory_space<vmem>>, %arg8: memref<64x256xf32, #tpu.memory_space<vmem>>, %arg9: memref<1x128xf32, #tpu.memory_space<vmem>>, %arg10: memref<32x128xf32, #tpu.memory_space<vmem>>, %arg11: memref<1x128xf32, #tpu.memory_space<vmem>>, %arg12: memref<64x128xf32, #tpu.memory_space<vmem>>, %arg13: memref<8x128xf32, #tpu.memory_space<vmem>>) attributes {dimension_semantics = [#tpu.dimension_semantics<arbitrary>], iteration_bounds = array<i64: 1>, scalar_prefetch = 0 : i64, scratch_operands = 0 : i64, tpu.core_type = #tpu.core_type<tc>, window_params = [{pipeline_mode = #tpu.pipeline_mode<synchronous>, transform_indices = @transform_0, window_bounds = array<i64: 8, 2048>}, {pipeline_mode = #tpu.pipeline_mode<synchronous>, transform_indices = @transform_1, window_bounds = array<i64: 56, 32>}, {pipeline_mode = #tpu.pipeline_mode<synchronous>, transform_indices = @transform_2, window_bounds = array<i64: 8, 8, 1>}, {pipeline_mode = #tpu.pipeline_mode<synchronous>, transform_indices = @transform_3, window_bounds = array<i64: 2048, 32>}, {pipeline_mode = #tpu.pipeline_mode<synchronous>, transform_indices = @transform_4, window_bounds = array<i64: 1, 32>}, {pipeline_mode = #tpu.pipeline_mode<synchronous>, transform_indices = @transform_5, window_bounds = array<i64: 32, 128>}, {pipeline_mode = #tpu.pipeline_mode<synchronous>, transform_indices = @transform_6, window_bounds = array<i64: 1, 128>}, {pipeline_mode = #tpu.pipeline_mode<synchronous>, transform_indices = @transform_7, window_bounds = array<i64: 64, 256>}, {pipeline_mode = #tpu.pipeline_mode<synchronous>, transform_indices = @transform_8, window_bounds = array<i64: 1, 128>}, {pipeline_mode = #tpu.pipeline_mode<synchronous>, transform_indices = @transform_9, window_bounds = array<i64: 32, 128>}, {pipeline_mode = #tpu.pipeline_mode<synchronous>, transform_indices = @transform_10, window_bounds = array<i64: 1, 128>}, {pipeline_mode = #tpu.pipeline_mode<synchronous>, transform_indices = @transform_11, window_bounds = array<i64: 64, 128>}, {pipeline_mode = #tpu.pipeline_mode<synchronous>, transform_indices = @transform_12, window_bounds = array<i64: 8, 128>}]} {
    %c0 = arith.constant 0 : index
    %c0_0 = arith.constant 0 : index
    %0 = vector.load %arg8[%c0, %c0_0] : memref<64x256xf32, #tpu.memory_space<vmem>>, vector<64x256xf32>
    %c0_1 = arith.constant 0 : index
    %c0_2 = arith.constant 0 : index
    %1 = vector.load %arg9[%c0_1, %c0_2] : memref<1x128xf32, #tpu.memory_space<vmem>>, vector<1x128xf32>
    %c0_3 = arith.constant 0 : index
    %c0_4 = arith.constant 0 : index
    %2 = vector.load %arg6[%c0_3, %c0_4] : memref<32x128xf32, #tpu.memory_space<vmem>>, vector<32x128xf32>
    %c0_5 = arith.constant 0 : index
    %c0_6 = arith.constant 0 : index
    %3 = vector.load %arg7[%c0_5, %c0_6] : memref<1x128xf32, #tpu.memory_space<vmem>>, vector<1x128xf32>
    %c0_7 = arith.constant 0 : index
    %c0_8 = arith.constant 0 : index
    %4 = vector.load %arg1[%c0_7, %c0_8] : memref<8x2048xbf16, #tpu.memory_space<vmem>>, vector<8x2048xbf16>
    %c0_9 = arith.constant 0 : index
    %c0_10 = arith.constant 0 : index
    %5 = vector.load %arg4[%c0_9, %c0_10] : memref<2048x32xbf16, #tpu.memory_space<vmem>>, vector<2048x32xbf16>
    %cst = arith.constant dense<0.000000e+00> : vector<8x32xf32>
    %6 = tpu.matmul %4, %5, %cst {dimension_numbers = #tpu.dot_dimension_numbers<[1], [0], [0], [1], [0, 0, 1, 1], [], []>} : vector<8x2048xbf16>, vector<2048x32xbf16>, vector<8x32xf32> -> vector<8x32xf32>
    %c0_11 = arith.constant 0 : index
    %c0_12 = arith.constant 0 : index
    %7 = vector.load %arg5[%c0_11, %c0_12] : memref<1x32xf32, #tpu.memory_space<vmem>>, vector<1x32xf32>
    %8 = vector.broadcast %7 : vector<1x32xf32> to vector<8x32xf32>
    %9 = arith.addf %6, %8 : vector<8x32xf32>
    %cst_13 = arith.constant dense<0.000000e+00> : vector<8x128xf32>
    %10 = tpu.matmul %9, %2, %cst_13 {dimension_numbers = #tpu.dot_dimension_numbers<[1], [0], [0], [1], [0, 0, 1, 1], [], []>} : vector<8x32xf32>, vector<32x128xf32>, vector<8x128xf32> -> vector<8x128xf32>
    %11 = vector.broadcast %3 : vector<1x128xf32> to vector<8x128xf32>
    %12 = arith.addf %10, %11 : vector<8x128xf32>
    %c0_14 = arith.constant 0 : index
    %c0_15 = arith.constant 0 : index
    %13 = vector.load %arg2[%c0_14, %c0_15] : memref<56x32xf32, #tpu.memory_space<vmem>>, vector<56x32xf32>
    %cst_16 = arith.constant dense<0.000000e+00> : vector<56x128xf32>
    %14 = tpu.matmul %13, %2, %cst_16 {dimension_numbers = #tpu.dot_dimension_numbers<[1], [0], [0], [1], [0, 0, 1, 1], [], []>} : vector<56x32xf32>, vector<32x128xf32>, vector<56x128xf32> -> vector<56x128xf32>
    %15 = vector.broadcast %3 : vector<1x128xf32> to vector<56x128xf32>
    %16 = arith.addf %14, %15 : vector<56x128xf32>
    %cst_17 = arith.constant 0.000000e+00 : f32
    %17 = vector.broadcast %cst_17 : f32 to vector<8x32xf32>
    %c0_18 = arith.constant 0 : index
    %c0_19 = arith.constant 0 : index
    %c0_20 = arith.constant 0 : index
    %18 = vector.load %arg3[%c0_18, %c0_19, %c0_20] : memref<8x8x1xf32, #tpu.memory_space<vmem>>, vector<1x8x1xf32>
    %19 = vector.shape_cast %18 : vector<1x8x1xf32> to vector<8x1xf32>
    %20 = vector.extract_strided_slice %12 {offsets = [0, 0], sizes = [8, 32], strides = [1, 1]} : vector<8x128xf32> to vector<8x32xf32>
    %21 = arith.negf %20 : vector<8x32xf32>
    %22 = math.exp %21 : vector<8x32xf32>
    %cst_21 = arith.constant 1.000000e+00 : f32
    %23 = vector.broadcast %cst_21 : f32 to vector<8x32xf32>
    %24 = arith.addf %23, %22 : vector<8x32xf32>
    %25 = arith.divf %23, %24 : vector<8x32xf32>
    %26 = vector.extract_strided_slice %12 {offsets = [0, 32], sizes = [8, 32], strides = [1, 1]} : vector<8x128xf32> to vector<8x32xf32>
    %27 = arith.negf %26 : vector<8x32xf32>
    %28 = math.exp %27 : vector<8x32xf32>
    %cst_22 = arith.constant 1.000000e+00 : f32
    %29 = vector.broadcast %cst_22 : f32 to vector<8x32xf32>
    %30 = arith.addf %29, %28 : vector<8x32xf32>
    %31 = arith.divf %29, %30 : vector<8x32xf32>
    %32 = vector.extract_strided_slice %12 {offsets = [0, 64], sizes = [8, 32], strides = [1, 1]} : vector<8x128xf32> to vector<8x32xf32>
    %33 = math.tanh %32 : vector<8x32xf32>
    %34 = vector.extract_strided_slice %12 {offsets = [0, 96], sizes = [8, 32], strides = [1, 1]} : vector<8x128xf32> to vector<8x32xf32>
    %35 = arith.negf %34 : vector<8x32xf32>
    %36 = math.exp %35 : vector<8x32xf32>
    %cst_23 = arith.constant 1.000000e+00 : f32
    %37 = vector.broadcast %cst_23 : f32 to vector<8x32xf32>
    %38 = arith.addf %37, %36 : vector<8x32xf32>
    %39 = arith.divf %37, %38 : vector<8x32xf32>
    %40 = arith.mulf %31, %17 : vector<8x32xf32>
    %41 = arith.mulf %25, %33 : vector<8x32xf32>
    %42 = arith.addf %40, %41 : vector<8x32xf32>
    %43 = math.tanh %42 : vector<8x32xf32>
    %44 = arith.mulf %39, %43 : vector<8x32xf32>
    %45 = arith.subf %44, %17 : vector<8x32xf32>
    %46 = vector.broadcast %19 : vector<8x1xf32> to vector<8x32xf32>
    %47 = arith.mulf %46, %45 : vector<8x32xf32>
    %48 = arith.addf %17, %47 : vector<8x32xf32>
    %49 = arith.subf %42, %17 : vector<8x32xf32>
    %50 = vector.broadcast %19 : vector<8x1xf32> to vector<8x32xf32>
    %51 = arith.mulf %50, %49 : vector<8x32xf32>
    %52 = arith.addf %17, %51 : vector<8x32xf32>
    %53 = tpu.concatenate %48, %17 in 1 : vector<8x32xf32>, vector<8x32xf32> -> vector<8x64xf32>
    %cst_24 = arith.constant dense<0.000000e+00> : vector<8x256xf32>
    %54 = tpu.matmul %53, %0, %cst_24 {dimension_numbers = #tpu.dot_dimension_numbers<[1], [0], [0], [1], [0, 0, 1, 1], [], []>} : vector<8x64xf32>, vector<64x256xf32>, vector<8x256xf32> -> vector<8x256xf32>
    %55 = vector.extract_strided_slice %54 {offsets = [0, 128], sizes = [8, 128], strides = [1, 1]} : vector<8x256xf32> to vector<8x128xf32>
    %56 = vector.broadcast %1 : vector<1x128xf32> to vector<8x128xf32>
    %57 = arith.addf %55, %56 : vector<8x128xf32>
    %58 = vector.extract_strided_slice %16 {offsets = [0, 0], sizes = [8, 128], strides = [1, 1]} : vector<56x128xf32> to vector<8x128xf32>
    %59 = vector.extract_strided_slice %54 {offsets = [0, 0], sizes = [8, 128], strides = [1, 1]} : vector<8x256xf32> to vector<8x128xf32>
    %60 = arith.addf %58, %59 : vector<8x128xf32>
    %c0_25 = arith.constant 0 : index
    %c0_26 = arith.constant 0 : index
    %c0_27 = arith.constant 0 : index
    %61 = vector.load %arg3[%c0_25, %c0_26, %c0_27] : memref<8x8x1xf32, #tpu.memory_space<vmem>>, vector<1x8x1xf32>
    %62 = vector.shape_cast %61 : vector<1x8x1xf32> to vector<8x1xf32>
    %63 = vector.extract_strided_slice %57 {offsets = [0, 0], sizes = [8, 32], strides = [1, 1]} : vector<8x128xf32> to vector<8x32xf32>
    %64 = arith.negf %63 : vector<8x32xf32>
    %65 = math.exp %64 : vector<8x32xf32>
    %cst_28 = arith.constant 1.000000e+00 : f32
    %66 = vector.broadcast %cst_28 : f32 to vector<8x32xf32>
    %67 = arith.addf %66, %65 : vector<8x32xf32>
    %68 = arith.divf %66, %67 : vector<8x32xf32>
    %69 = vector.extract_strided_slice %57 {offsets = [0, 32], sizes = [8, 32], strides = [1, 1]} : vector<8x128xf32> to vector<8x32xf32>
    %70 = arith.negf %69 : vector<8x32xf32>
    %71 = math.exp %70 : vector<8x32xf32>
    %cst_29 = arith.constant 1.000000e+00 : f32
    %72 = vector.broadcast %cst_29 : f32 to vector<8x32xf32>
    %73 = arith.addf %72, %71 : vector<8x32xf32>
    %74 = arith.divf %72, %73 : vector<8x32xf32>
    %75 = vector.extract_strided_slice %57 {offsets = [0, 64], sizes = [8, 32], strides = [1, 1]} : vector<8x128xf32> to vector<8x32xf32>
    %76 = math.tanh %75 : vector<8x32xf32>
    %77 = vector.extract_strided_slice %57 {offsets = [0, 96], sizes = [8, 32], strides = [1, 1]} : vector<8x128xf32> to vector<8x32xf32>
    %78 = arith.negf %77 : vector<8x32xf32>
    %79 = math.exp %78 : vector<8x32xf32>
    %cst_30 = arith.constant 1.000000e+00 : f32
    %80 = vector.broadcast %cst_30 : f32 to vector<8x32xf32>
    %81 = arith.addf %80, %79 : vector<8x32xf32>
    %82 = arith.divf %80, %81 : vector<8x32xf32>
    %83 = arith.mulf %74, %17 : vector<8x32xf32>
    %84 = arith.mulf %68, %76 : vector<8x32xf32>
    %85 = arith.addf %83, %84 : vector<8x32xf32>
    %86 = math.tanh %85 : vector<8x32xf32>
    %87 = arith.mulf %82, %86 : vector<8x32xf32>
    %88 = arith.subf %87, %17 : vector<8x32xf32>
    %89 = vector.broadcast %62 : vector<8x1xf32> to vector<8x32xf32>
    %90 = arith.mulf %89, %88 : vector<8x32xf32>
    %91 = arith.addf %17, %90 : vector<8x32xf32>
    %92 = arith.subf %85, %17 : vector<8x32xf32>
    %93 = vector.broadcast %62 : vector<8x1xf32> to vector<8x32xf32>
    %94 = arith.mulf %93, %92 : vector<8x32xf32>
    %95 = arith.addf %17, %94 : vector<8x32xf32>
    %c1 = arith.constant 1 : index
    %c0_31 = arith.constant 0 : index
    %c0_32 = arith.constant 0 : index
    %96 = vector.load %arg3[%c1, %c0_31, %c0_32] : memref<8x8x1xf32, #tpu.memory_space<vmem>>, vector<1x8x1xf32>
    %97 = vector.shape_cast %96 : vector<1x8x1xf32> to vector<8x1xf32>
    %98 = vector.extract_strided_slice %60 {offsets = [0, 0], sizes = [8, 32], strides = [1, 1]} : vector<8x128xf32> to vector<8x32xf32>
    %99 = arith.negf %98 : vector<8x32xf32>
    %100 = math.exp %99 : vector<8x32xf32>
    %cst_33 = arith.constant 1.000000e+00 : f32
    %101 = vector.broadcast %cst_33 : f32 to vector<8x32xf32>
    %102 = arith.addf %101, %100 : vector<8x32xf32>
    %103 = arith.divf %101, %102 : vector<8x32xf32>
    %104 = vector.extract_strided_slice %60 {offsets = [0, 32], sizes = [8, 32], strides = [1, 1]} : vector<8x128xf32> to vector<8x32xf32>
    %105 = arith.negf %104 : vector<8x32xf32>
    %106 = math.exp %105 : vector<8x32xf32>
    %cst_34 = arith.constant 1.000000e+00 : f32
    %107 = vector.broadcast %cst_34 : f32 to vector<8x32xf32>
    %108 = arith.addf %107, %106 : vector<8x32xf32>
    %109 = arith.divf %107, %108 : vector<8x32xf32>
    %110 = vector.extract_strided_slice %60 {offsets = [0, 64], sizes = [8, 32], strides = [1, 1]} : vector<8x128xf32> to vector<8x32xf32>
    %111 = math.tanh %110 : vector<8x32xf32>
    %112 = vector.extract_strided_slice %60 {offsets = [0, 96], sizes = [8, 32], strides = [1, 1]} : vector<8x128xf32> to vector<8x32xf32>
    %113 = arith.negf %112 : vector<8x32xf32>
    %114 = math.exp %113 : vector<8x32xf32>
    %cst_35 = arith.constant 1.000000e+00 : f32
    %115 = vector.broadcast %cst_35 : f32 to vector<8x32xf32>
    %116 = arith.addf %115, %114 : vector<8x32xf32>
    %117 = arith.divf %115, %116 : vector<8x32xf32>
    %118 = arith.mulf %109, %52 : vector<8x32xf32>
    %119 = arith.mulf %103, %111 : vector<8x32xf32>
    %120 = arith.addf %118, %119 : vector<8x32xf32>
    %121 = math.tanh %120 : vector<8x32xf32>
    %122 = arith.mulf %117, %121 : vector<8x32xf32>
    %123 = arith.subf %122, %48 : vector<8x32xf32>
    %124 = vector.broadcast %97 : vector<8x1xf32> to vector<8x32xf32>
    %125 = arith.mulf %124, %123 : vector<8x32xf32>
    %126 = arith.addf %48, %125 : vector<8x32xf32>
    %127 = arith.subf %120, %52 : vector<8x32xf32>
    %128 = vector.broadcast %97 : vector<8x1xf32> to vector<8x32xf32>
    %129 = arith.mulf %128, %127 : vector<8x32xf32>
    %130 = arith.addf %52, %129 : vector<8x32xf32>
    %131 = tpu.concatenate %126, %91 in 1 : vector<8x32xf32>, vector<8x32xf32> -> vector<8x64xf32>
    %cst_36 = arith.constant dense<0.000000e+00> : vector<8x256xf32>
    %132 = tpu.matmul %131, %0, %cst_36 {dimension_numbers = #tpu.dot_dimension_numbers<[1], [0], [0], [1], [0, 0, 1, 1], [], []>} : vector<8x64xf32>, vector<64x256xf32>, vector<8x256xf32> -> vector<8x256xf32>
    %133 = vector.extract_strided_slice %132 {offsets = [0, 128], sizes = [8, 128], strides = [1, 1]} : vector<8x256xf32> to vector<8x128xf32>
    %134 = vector.broadcast %1 : vector<1x128xf32> to vector<8x128xf32>
    %135 = arith.addf %133, %134 : vector<8x128xf32>
    %136 = vector.extract_strided_slice %16 {offsets = [8, 0], sizes = [8, 128], strides = [1, 1]} : vector<56x128xf32> to vector<8x128xf32>
    %137 = vector.extract_strided_slice %132 {offsets = [0, 0], sizes = [8, 128], strides = [1, 1]} : vector<8x256xf32> to vector<8x128xf32>
    %138 = arith.addf %136, %137 : vector<8x128xf32>
    %c1_37 = arith.constant 1 : index
    %c0_38 = arith.constant 0 : index
    %c0_39 = arith.constant 0 : index
    %139 = vector.load %arg3[%c1_37, %c0_38, %c0_39] : memref<8x8x1xf32, #tpu.memory_space<vmem>>, vector<1x8x1xf32>
    %140 = vector.shape_cast %139 : vector<1x8x1xf32> to vector<8x1xf32>
    %141 = vector.extract_strided_slice %135 {offsets = [0, 0], sizes = [8, 32], strides = [1, 1]} : vector<8x128xf32> to vector<8x32xf32>
    %142 = arith.negf %141 : vector<8x32xf32>
    %143 = math.exp %142 : vector<8x32xf32>
    %cst_40 = arith.constant 1.000000e+00 : f32
    %144 = vector.broadcast %cst_40 : f32 to vector<8x32xf32>
    %145 = arith.addf %144, %143 : vector<8x32xf32>
    %146 = arith.divf %144, %145 : vector<8x32xf32>
    %147 = vector.extract_strided_slice %135 {offsets = [0, 32], sizes = [8, 32], strides = [1, 1]} : vector<8x128xf32> to vector<8x32xf32>
    %148 = arith.negf %147 : vector<8x32xf32>
    %149 = math.exp %148 : vector<8x32xf32>
    %cst_41 = arith.constant 1.000000e+00 : f32
    %150 = vector.broadcast %cst_41 : f32 to vector<8x32xf32>
    %151 = arith.addf %150, %149 : vector<8x32xf32>
    %152 = arith.divf %150, %151 : vector<8x32xf32>
    %153 = vector.extract_strided_slice %135 {offsets = [0, 64], sizes = [8, 32], strides = [1, 1]} : vector<8x128xf32> to vector<8x32xf32>
    %154 = math.tanh %153 : vector<8x32xf32>
    %155 = vector.extract_strided_slice %135 {offsets = [0, 96], sizes = [8, 32], strides = [1, 1]} : vector<8x128xf32> to vector<8x32xf32>
    %156 = arith.negf %155 : vector<8x32xf32>
    %157 = math.exp %156 : vector<8x32xf32>
    %cst_42 = arith.constant 1.000000e+00 : f32
    %158 = vector.broadcast %cst_42 : f32 to vector<8x32xf32>
    %159 = arith.addf %158, %157 : vector<8x32xf32>
    %160 = arith.divf %158, %159 : vector<8x32xf32>
    %161 = arith.mulf %152, %95 : vector<8x32xf32>
    %162 = arith.mulf %146, %154 : vector<8x32xf32>
    %163 = arith.addf %161, %162 : vector<8x32xf32>
    %164 = math.tanh %163 : vector<8x32xf32>
    %165 = arith.mulf %160, %164 : vector<8x32xf32>
    %166 = arith.subf %165, %91 : vector<8x32xf32>
    %167 = vector.broadcast %140 : vector<8x1xf32> to vector<8x32xf32>
    %168 = arith.mulf %167, %166 : vector<8x32xf32>
    %169 = arith.addf %91, %168 : vector<8x32xf32>
    %170 = arith.subf %163, %95 : vector<8x32xf32>
    %171 = vector.broadcast %140 : vector<8x1xf32> to vector<8x32xf32>
    %172 = arith.mulf %171, %170 : vector<8x32xf32>
    %173 = arith.addf %95, %172 : vector<8x32xf32>
    %c2 = arith.constant 2 : index
    %c0_43 = arith.constant 0 : index
    %c0_44 = arith.constant 0 : index
    %174 = vector.load %arg3[%c2, %c0_43, %c0_44] : memref<8x8x1xf32, #tpu.memory_space<vmem>>, vector<1x8x1xf32>
    %175 = vector.shape_cast %174 : vector<1x8x1xf32> to vector<8x1xf32>
    %176 = vector.extract_strided_slice %138 {offsets = [0, 0], sizes = [8, 32], strides = [1, 1]} : vector<8x128xf32> to vector<8x32xf32>
    %177 = arith.negf %176 : vector<8x32xf32>
    %178 = math.exp %177 : vector<8x32xf32>
    %cst_45 = arith.constant 1.000000e+00 : f32
    %179 = vector.broadcast %cst_45 : f32 to vector<8x32xf32>
    %180 = arith.addf %179, %178 : vector<8x32xf32>
    %181 = arith.divf %179, %180 : vector<8x32xf32>
    %182 = vector.extract_strided_slice %138 {offsets = [0, 32], sizes = [8, 32], strides = [1, 1]} : vector<8x128xf32> to vector<8x32xf32>
    %183 = arith.negf %182 : vector<8x32xf32>
    %184 = math.exp %183 : vector<8x32xf32>
    %cst_46 = arith.constant 1.000000e+00 : f32
    %185 = vector.broadcast %cst_46 : f32 to vector<8x32xf32>
    %186 = arith.addf %185, %184 : vector<8x32xf32>
    %187 = arith.divf %185, %186 : vector<8x32xf32>
    %188 = vector.extract_strided_slice %138 {offsets = [0, 64], sizes = [8, 32], strides = [1, 1]} : vector<8x128xf32> to vector<8x32xf32>
    %189 = math.tanh %188 : vector<8x32xf32>
    %190 = vector.extract_strided_slice %138 {offsets = [0, 96], sizes = [8, 32], strides = [1, 1]} : vector<8x128xf32> to vector<8x32xf32>
    %191 = arith.negf %190 : vector<8x32xf32>
    %192 = math.exp %191 : vector<8x32xf32>
    %cst_47 = arith.constant 1.000000e+00 : f32
    %193 = vector.broadcast %cst_47 : f32 to vector<8x32xf32>
    %194 = arith.addf %193, %192 : vector<8x32xf32>
    %195 = arith.divf %193, %194 : vector<8x32xf32>
    %196 = arith.mulf %187, %130 : vector<8x32xf32>
    %197 = arith.mulf %181, %189 : vector<8x32xf32>
    %198 = arith.addf %196, %197 : vector<8x32xf32>
    %199 = math.tanh %198 : vector<8x32xf32>
    %200 = arith.mulf %195, %199 : vector<8x32xf32>
    %201 = arith.subf %200, %126 : vector<8x32xf32>
    %202 = vector.broadcast %175 : vector<8x1xf32> to vector<8x32xf32>
    %203 = arith.mulf %202, %201 : vector<8x32xf32>
    %204 = arith.addf %126, %203 : vector<8x32xf32>
    %205 = arith.subf %198, %130 : vector<8x32xf32>
    %206 = vector.broadcast %175 : vector<8x1xf32> to vector<8x32xf32>
    %207 = arith.mulf %206, %205 : vector<8x32xf32>
    %208 = arith.addf %130, %207 : vector<8x32xf32>
    %209 = tpu.concatenate %204, %169 in 1 : vector<8x32xf32>, vector<8x32xf32> -> vector<8x64xf32>
    %cst_48 = arith.constant dense<0.000000e+00> : vector<8x256xf32>
    %210 = tpu.matmul %209, %0, %cst_48 {dimension_numbers = #tpu.dot_dimension_numbers<[1], [0], [0], [1], [0, 0, 1, 1], [], []>} : vector<8x64xf32>, vector<64x256xf32>, vector<8x256xf32> -> vector<8x256xf32>
    %211 = vector.extract_strided_slice %210 {offsets = [0, 128], sizes = [8, 128], strides = [1, 1]} : vector<8x256xf32> to vector<8x128xf32>
    %212 = vector.broadcast %1 : vector<1x128xf32> to vector<8x128xf32>
    %213 = arith.addf %211, %212 : vector<8x128xf32>
    %214 = vector.extract_strided_slice %16 {offsets = [16, 0], sizes = [8, 128], strides = [1, 1]} : vector<56x128xf32> to vector<8x128xf32>
    %215 = vector.extract_strided_slice %210 {offsets = [0, 0], sizes = [8, 128], strides = [1, 1]} : vector<8x256xf32> to vector<8x128xf32>
    %216 = arith.addf %214, %215 : vector<8x128xf32>
    %c2_49 = arith.constant 2 : index
    %c0_50 = arith.constant 0 : index
    %c0_51 = arith.constant 0 : index
    %217 = vector.load %arg3[%c2_49, %c0_50, %c0_51] : memref<8x8x1xf32, #tpu.memory_space<vmem>>, vector<1x8x1xf32>
    %218 = vector.shape_cast %217 : vector<1x8x1xf32> to vector<8x1xf32>
    %219 = vector.extract_strided_slice %213 {offsets = [0, 0], sizes = [8, 32], strides = [1, 1]} : vector<8x128xf32> to vector<8x32xf32>
    %220 = arith.negf %219 : vector<8x32xf32>
    %221 = math.exp %220 : vector<8x32xf32>
    %cst_52 = arith.constant 1.000000e+00 : f32
    %222 = vector.broadcast %cst_52 : f32 to vector<8x32xf32>
    %223 = arith.addf %222, %221 : vector<8x32xf32>
    %224 = arith.divf %222, %223 : vector<8x32xf32>
    %225 = vector.extract_strided_slice %213 {offsets = [0, 32], sizes = [8, 32], strides = [1, 1]} : vector<8x128xf32> to vector<8x32xf32>
    %226 = arith.negf %225 : vector<8x32xf32>
    %227 = math.exp %226 : vector<8x32xf32>
    %cst_53 = arith.constant 1.000000e+00 : f32
    %228 = vector.broadcast %cst_53 : f32 to vector<8x32xf32>
    %229 = arith.addf %228, %227 : vector<8x32xf32>
    %230 = arith.divf %228, %229 : vector<8x32xf32>
    %231 = vector.extract_strided_slice %213 {offsets = [0, 64], sizes = [8, 32], strides = [1, 1]} : vector<8x128xf32> to vector<8x32xf32>
    %232 = math.tanh %231 : vector<8x32xf32>
    %233 = vector.extract_strided_slice %213 {offsets = [0, 96], sizes = [8, 32], strides = [1, 1]} : vector<8x128xf32> to vector<8x32xf32>
    %234 = arith.negf %233 : vector<8x32xf32>
    %235 = math.exp %234 : vector<8x32xf32>
    %cst_54 = arith.constant 1.000000e+00 : f32
    %236 = vector.broadcast %cst_54 : f32 to vector<8x32xf32>
    %237 = arith.addf %236, %235 : vector<8x32xf32>
    %238 = arith.divf %236, %237 : vector<8x32xf32>
    %239 = arith.mulf %230, %173 : vector<8x32xf32>
    %240 = arith.mulf %224, %232 : vector<8x32xf32>
    %241 = arith.addf %239, %240 : vector<8x32xf32>
    %242 = math.tanh %241 : vector<8x32xf32>
    %243 = arith.mulf %238, %242 : vector<8x32xf32>
    %244 = arith.subf %243, %169 : vector<8x32xf32>
    %245 = vector.broadcast %218 : vector<8x1xf32> to vector<8x32xf32>
    %246 = arith.mulf %245, %244 : vector<8x32xf32>
    %247 = arith.addf %169, %246 : vector<8x32xf32>
    %248 = arith.subf %241, %173 : vector<8x32xf32>
    %249 = vector.broadcast %218 : vector<8x1xf32> to vector<8x32xf32>
    %250 = arith.mulf %249, %248 : vector<8x32xf32>
    %251 = arith.addf %173, %250 : vector<8x32xf32>
    %c3 = arith.constant 3 : index
    %c0_55 = arith.constant 0 : index
    %c0_56 = arith.constant 0 : index
    %252 = vector.load %arg3[%c3, %c0_55, %c0_56] : memref<8x8x1xf32, #tpu.memory_space<vmem>>, vector<1x8x1xf32>
    %253 = vector.shape_cast %252 : vector<1x8x1xf32> to vector<8x1xf32>
    %254 = vector.extract_strided_slice %216 {offsets = [0, 0], sizes = [8, 32], strides = [1, 1]} : vector<8x128xf32> to vector<8x32xf32>
    %255 = arith.negf %254 : vector<8x32xf32>
    %256 = math.exp %255 : vector<8x32xf32>
    %cst_57 = arith.constant 1.000000e+00 : f32
    %257 = vector.broadcast %cst_57 : f32 to vector<8x32xf32>
    %258 = arith.addf %257, %256 : vector<8x32xf32>
    %259 = arith.divf %257, %258 : vector<8x32xf32>
    %260 = vector.extract_strided_slice %216 {offsets = [0, 32], sizes = [8, 32], strides = [1, 1]} : vector<8x128xf32> to vector<8x32xf32>
    %261 = arith.negf %260 : vector<8x32xf32>
    %262 = math.exp %261 : vector<8x32xf32>
    %cst_58 = arith.constant 1.000000e+00 : f32
    %263 = vector.broadcast %cst_58 : f32 to vector<8x32xf32>
    %264 = arith.addf %263, %262 : vector<8x32xf32>
    %265 = arith.divf %263, %264 : vector<8x32xf32>
    %266 = vector.extract_strided_slice %216 {offsets = [0, 64], sizes = [8, 32], strides = [1, 1]} : vector<8x128xf32> to vector<8x32xf32>
    %267 = math.tanh %266 : vector<8x32xf32>
    %268 = vector.extract_strided_slice %216 {offsets = [0, 96], sizes = [8, 32], strides = [1, 1]} : vector<8x128xf32> to vector<8x32xf32>
    %269 = arith.negf %268 : vector<8x32xf32>
    %270 = math.exp %269 : vector<8x32xf32>
    %cst_59 = arith.constant 1.000000e+00 : f32
    %271 = vector.broadcast %cst_59 : f32 to vector<8x32xf32>
    %272 = arith.addf %271, %270 : vector<8x32xf32>
    %273 = arith.divf %271, %272 : vector<8x32xf32>
    %274 = arith.mulf %265, %208 : vector<8x32xf32>
    %275 = arith.mulf %259, %267 : vector<8x32xf32>
    %276 = arith.addf %274, %275 : vector<8x32xf32>
    %277 = math.tanh %276 : vector<8x32xf32>
    %278 = arith.mulf %273, %277 : vector<8x32xf32>
    %279 = arith.subf %278, %204 : vector<8x32xf32>
    %280 = vector.broadcast %253 : vector<8x1xf32> to vector<8x32xf32>
    %281 = arith.mulf %280, %279 : vector<8x32xf32>
    %282 = arith.addf %204, %281 : vector<8x32xf32>
    %283 = arith.subf %276, %208 : vector<8x32xf32>
    %284 = vector.broadcast %253 : vector<8x1xf32> to vector<8x32xf32>
    %285 = arith.mulf %284, %283 : vector<8x32xf32>
    %286 = arith.addf %208, %285 : vector<8x32xf32>
    %287 = tpu.concatenate %282, %247 in 1 : vector<8x32xf32>, vector<8x32xf32> -> vector<8x64xf32>
    %cst_60 = arith.constant dense<0.000000e+00> : vector<8x256xf32>
    %288 = tpu.matmul %287, %0, %cst_60 {dimension_numbers = #tpu.dot_dimension_numbers<[1], [0], [0], [1], [0, 0, 1, 1], [], []>} : vector<8x64xf32>, vector<64x256xf32>, vector<8x256xf32> -> vector<8x256xf32>
    %289 = vector.extract_strided_slice %288 {offsets = [0, 128], sizes = [8, 128], strides = [1, 1]} : vector<8x256xf32> to vector<8x128xf32>
    %290 = vector.broadcast %1 : vector<1x128xf32> to vector<8x128xf32>
    %291 = arith.addf %289, %290 : vector<8x128xf32>
    %292 = vector.extract_strided_slice %16 {offsets = [24, 0], sizes = [8, 128], strides = [1, 1]} : vector<56x128xf32> to vector<8x128xf32>
    %293 = vector.extract_strided_slice %288 {offsets = [0, 0], sizes = [8, 128], strides = [1, 1]} : vector<8x256xf32> to vector<8x128xf32>
    %294 = arith.addf %292, %293 : vector<8x128xf32>
    %c3_61 = arith.constant 3 : index
    %c0_62 = arith.constant 0 : index
    %c0_63 = arith.constant 0 : index
    %295 = vector.load %arg3[%c3_61, %c0_62, %c0_63] : memref<8x8x1xf32, #tpu.memory_space<vmem>>, vector<1x8x1xf32>
    %296 = vector.shape_cast %295 : vector<1x8x1xf32> to vector<8x1xf32>
    %297 = vector.extract_strided_slice %291 {offsets = [0, 0], sizes = [8, 32], strides = [1, 1]} : vector<8x128xf32> to vector<8x32xf32>
    %298 = arith.negf %297 : vector<8x32xf32>
    %299 = math.exp %298 : vector<8x32xf32>
    %cst_64 = arith.constant 1.000000e+00 : f32
    %300 = vector.broadcast %cst_64 : f32 to vector<8x32xf32>
    %301 = arith.addf %300, %299 : vector<8x32xf32>
    %302 = arith.divf %300, %301 : vector<8x32xf32>
    %303 = vector.extract_strided_slice %291 {offsets = [0, 32], sizes = [8, 32], strides = [1, 1]} : vector<8x128xf32> to vector<8x32xf32>
    %304 = arith.negf %303 : vector<8x32xf32>
    %305 = math.exp %304 : vector<8x32xf32>
    %cst_65 = arith.constant 1.000000e+00 : f32
    %306 = vector.broadcast %cst_65 : f32 to vector<8x32xf32>
    %307 = arith.addf %306, %305 : vector<8x32xf32>
    %308 = arith.divf %306, %307 : vector<8x32xf32>
    %309 = vector.extract_strided_slice %291 {offsets = [0, 64], sizes = [8, 32], strides = [1, 1]} : vector<8x128xf32> to vector<8x32xf32>
    %310 = math.tanh %309 : vector<8x32xf32>
    %311 = vector.extract_strided_slice %291 {offsets = [0, 96], sizes = [8, 32], strides = [1, 1]} : vector<8x128xf32> to vector<8x32xf32>
    %312 = arith.negf %311 : vector<8x32xf32>
    %313 = math.exp %312 : vector<8x32xf32>
    %cst_66 = arith.constant 1.000000e+00 : f32
    %314 = vector.broadcast %cst_66 : f32 to vector<8x32xf32>
    %315 = arith.addf %314, %313 : vector<8x32xf32>
    %316 = arith.divf %314, %315 : vector<8x32xf32>
    %317 = arith.mulf %308, %251 : vector<8x32xf32>
    %318 = arith.mulf %302, %310 : vector<8x32xf32>
    %319 = arith.addf %317, %318 : vector<8x32xf32>
    %320 = math.tanh %319 : vector<8x32xf32>
    %321 = arith.mulf %316, %320 : vector<8x32xf32>
    %322 = arith.subf %321, %247 : vector<8x32xf32>
    %323 = vector.broadcast %296 : vector<8x1xf32> to vector<8x32xf32>
    %324 = arith.mulf %323, %322 : vector<8x32xf32>
    %325 = arith.addf %247, %324 : vector<8x32xf32>
    %326 = arith.subf %319, %251 : vector<8x32xf32>
    %327 = vector.broadcast %296 : vector<8x1xf32> to vector<8x32xf32>
    %328 = arith.mulf %327, %326 : vector<8x32xf32>
    %329 = arith.addf %251, %328 : vector<8x32xf32>
    %c4 = arith.constant 4 : index
    %c0_67 = arith.constant 0 : index
    %c0_68 = arith.constant 0 : index
    %330 = vector.load %arg3[%c4, %c0_67, %c0_68] : memref<8x8x1xf32, #tpu.memory_space<vmem>>, vector<1x8x1xf32>
    %331 = vector.shape_cast %330 : vector<1x8x1xf32> to vector<8x1xf32>
    %332 = vector.extract_strided_slice %294 {offsets = [0, 0], sizes = [8, 32], strides = [1, 1]} : vector<8x128xf32> to vector<8x32xf32>
    %333 = arith.negf %332 : vector<8x32xf32>
    %334 = math.exp %333 : vector<8x32xf32>
    %cst_69 = arith.constant 1.000000e+00 : f32
    %335 = vector.broadcast %cst_69 : f32 to vector<8x32xf32>
    %336 = arith.addf %335, %334 : vector<8x32xf32>
    %337 = arith.divf %335, %336 : vector<8x32xf32>
    %338 = vector.extract_strided_slice %294 {offsets = [0, 32], sizes = [8, 32], strides = [1, 1]} : vector<8x128xf32> to vector<8x32xf32>
    %339 = arith.negf %338 : vector<8x32xf32>
    %340 = math.exp %339 : vector<8x32xf32>
    %cst_70 = arith.constant 1.000000e+00 : f32
    %341 = vector.broadcast %cst_70 : f32 to vector<8x32xf32>
    %342 = arith.addf %341, %340 : vector<8x32xf32>
    %343 = arith.divf %341, %342 : vector<8x32xf32>
    %344 = vector.extract_strided_slice %294 {offsets = [0, 64], sizes = [8, 32], strides = [1, 1]} : vector<8x128xf32> to vector<8x32xf32>
    %345 = math.tanh %344 : vector<8x32xf32>
    %346 = vector.extract_strided_slice %294 {offsets = [0, 96], sizes = [8, 32], strides = [1, 1]} : vector<8x128xf32> to vector<8x32xf32>
    %347 = arith.negf %346 : vector<8x32xf32>
    %348 = math.exp %347 : vector<8x32xf32>
    %cst_71 = arith.constant 1.000000e+00 : f32
    %349 = vector.broadcast %cst_71 : f32 to vector<8x32xf32>
    %350 = arith.addf %349, %348 : vector<8x32xf32>
    %351 = arith.divf %349, %350 : vector<8x32xf32>
    %352 = arith.mulf %343, %286 : vector<8x32xf32>
    %353 = arith.mulf %337, %345 : vector<8x32xf32>
    %354 = arith.addf %352, %353 : vector<8x32xf32>
    %355 = math.tanh %354 : vector<8x32xf32>
    %356 = arith.mulf %351, %355 : vector<8x32xf32>
    %357 = arith.subf %356, %282 : vector<8x32xf32>
    %358 = vector.broadcast %331 : vector<8x1xf32> to vector<8x32xf32>
    %359 = arith.mulf %358, %357 : vector<8x32xf32>
    %360 = arith.addf %282, %359 : vector<8x32xf32>
    %361 = arith.subf %354, %286 : vector<8x32xf32>
    %362 = vector.broadcast %331 : vector<8x1xf32> to vector<8x32xf32>
    %363 = arith.mulf %362, %361 : vector<8x32xf32>
    %364 = arith.addf %286, %363 : vector<8x32xf32>
    %365 = tpu.concatenate %360, %325 in 1 : vector<8x32xf32>, vector<8x32xf32> -> vector<8x64xf32>
    %cst_72 = arith.constant dense<0.000000e+00> : vector<8x256xf32>
    %366 = tpu.matmul %365, %0, %cst_72 {dimension_numbers = #tpu.dot_dimension_numbers<[1], [0], [0], [1], [0, 0, 1, 1], [], []>} : vector<8x64xf32>, vector<64x256xf32>, vector<8x256xf32> -> vector<8x256xf32>
    %367 = vector.extract_strided_slice %366 {offsets = [0, 128], sizes = [8, 128], strides = [1, 1]} : vector<8x256xf32> to vector<8x128xf32>
    %368 = vector.broadcast %1 : vector<1x128xf32> to vector<8x128xf32>
    %369 = arith.addf %367, %368 : vector<8x128xf32>
    %370 = vector.extract_strided_slice %16 {offsets = [32, 0], sizes = [8, 128], strides = [1, 1]} : vector<56x128xf32> to vector<8x128xf32>
    %371 = vector.extract_strided_slice %366 {offsets = [0, 0], sizes = [8, 128], strides = [1, 1]} : vector<8x256xf32> to vector<8x128xf32>
    %372 = arith.addf %370, %371 : vector<8x128xf32>
    %c4_73 = arith.constant 4 : index
    %c0_74 = arith.constant 0 : index
    %c0_75 = arith.constant 0 : index
    %373 = vector.load %arg3[%c4_73, %c0_74, %c0_75] : memref<8x8x1xf32, #tpu.memory_space<vmem>>, vector<1x8x1xf32>
    %374 = vector.shape_cast %373 : vector<1x8x1xf32> to vector<8x1xf32>
    %375 = vector.extract_strided_slice %369 {offsets = [0, 0], sizes = [8, 32], strides = [1, 1]} : vector<8x128xf32> to vector<8x32xf32>
    %376 = arith.negf %375 : vector<8x32xf32>
    %377 = math.exp %376 : vector<8x32xf32>
    %cst_76 = arith.constant 1.000000e+00 : f32
    %378 = vector.broadcast %cst_76 : f32 to vector<8x32xf32>
    %379 = arith.addf %378, %377 : vector<8x32xf32>
    %380 = arith.divf %378, %379 : vector<8x32xf32>
    %381 = vector.extract_strided_slice %369 {offsets = [0, 32], sizes = [8, 32], strides = [1, 1]} : vector<8x128xf32> to vector<8x32xf32>
    %382 = arith.negf %381 : vector<8x32xf32>
    %383 = math.exp %382 : vector<8x32xf32>
    %cst_77 = arith.constant 1.000000e+00 : f32
    %384 = vector.broadcast %cst_77 : f32 to vector<8x32xf32>
    %385 = arith.addf %384, %383 : vector<8x32xf32>
    %386 = arith.divf %384, %385 : vector<8x32xf32>
    %387 = vector.extract_strided_slice %369 {offsets = [0, 64], sizes = [8, 32], strides = [1, 1]} : vector<8x128xf32> to vector<8x32xf32>
    %388 = math.tanh %387 : vector<8x32xf32>
    %389 = vector.extract_strided_slice %369 {offsets = [0, 96], sizes = [8, 32], strides = [1, 1]} : vector<8x128xf32> to vector<8x32xf32>
    %390 = arith.negf %389 : vector<8x32xf32>
    %391 = math.exp %390 : vector<8x32xf32>
    %cst_78 = arith.constant 1.000000e+00 : f32
    %392 = vector.broadcast %cst_78 : f32 to vector<8x32xf32>
    %393 = arith.addf %392, %391 : vector<8x32xf32>
    %394 = arith.divf %392, %393 : vector<8x32xf32>
    %395 = arith.mulf %386, %329 : vector<8x32xf32>
    %396 = arith.mulf %380, %388 : vector<8x32xf32>
    %397 = arith.addf %395, %396 : vector<8x32xf32>
    %398 = math.tanh %397 : vector<8x32xf32>
    %399 = arith.mulf %394, %398 : vector<8x32xf32>
    %400 = arith.subf %399, %325 : vector<8x32xf32>
    %401 = vector.broadcast %374 : vector<8x1xf32> to vector<8x32xf32>
    %402 = arith.mulf %401, %400 : vector<8x32xf32>
    %403 = arith.addf %325, %402 : vector<8x32xf32>
    %404 = arith.subf %397, %329 : vector<8x32xf32>
    %405 = vector.broadcast %374 : vector<8x1xf32> to vector<8x32xf32>
    %406 = arith.mulf %405, %404 : vector<8x32xf32>
    %407 = arith.addf %329, %406 : vector<8x32xf32>
    %c5 = arith.constant 5 : index
    %c0_79 = arith.constant 0 : index
    %c0_80 = arith.constant 0 : index
    %408 = vector.load %arg3[%c5, %c0_79, %c0_80] : memref<8x8x1xf32, #tpu.memory_space<vmem>>, vector<1x8x1xf32>
    %409 = vector.shape_cast %408 : vector<1x8x1xf32> to vector<8x1xf32>
    %410 = vector.extract_strided_slice %372 {offsets = [0, 0], sizes = [8, 32], strides = [1, 1]} : vector<8x128xf32> to vector<8x32xf32>
    %411 = arith.negf %410 : vector<8x32xf32>
    %412 = math.exp %411 : vector<8x32xf32>
    %cst_81 = arith.constant 1.000000e+00 : f32
    %413 = vector.broadcast %cst_81 : f32 to vector<8x32xf32>
    %414 = arith.addf %413, %412 : vector<8x32xf32>
    %415 = arith.divf %413, %414 : vector<8x32xf32>
    %416 = vector.extract_strided_slice %372 {offsets = [0, 32], sizes = [8, 32], strides = [1, 1]} : vector<8x128xf32> to vector<8x32xf32>
    %417 = arith.negf %416 : vector<8x32xf32>
    %418 = math.exp %417 : vector<8x32xf32>
    %cst_82 = arith.constant 1.000000e+00 : f32
    %419 = vector.broadcast %cst_82 : f32 to vector<8x32xf32>
    %420 = arith.addf %419, %418 : vector<8x32xf32>
    %421 = arith.divf %419, %420 : vector<8x32xf32>
    %422 = vector.extract_strided_slice %372 {offsets = [0, 64], sizes = [8, 32], strides = [1, 1]} : vector<8x128xf32> to vector<8x32xf32>
    %423 = math.tanh %422 : vector<8x32xf32>
    %424 = vector.extract_strided_slice %372 {offsets = [0, 96], sizes = [8, 32], strides = [1, 1]} : vector<8x128xf32> to vector<8x32xf32>
    %425 = arith.negf %424 : vector<8x32xf32>
    %426 = math.exp %425 : vector<8x32xf32>
    %cst_83 = arith.constant 1.000000e+00 : f32
    %427 = vector.broadcast %cst_83 : f32 to vector<8x32xf32>
    %428 = arith.addf %427, %426 : vector<8x32xf32>
    %429 = arith.divf %427, %428 : vector<8x32xf32>
    %430 = arith.mulf %421, %364 : vector<8x32xf32>
    %431 = arith.mulf %415, %423 : vector<8x32xf32>
    %432 = arith.addf %430, %431 : vector<8x32xf32>
    %433 = math.tanh %432 : vector<8x32xf32>
    %434 = arith.mulf %429, %433 : vector<8x32xf32>
    %435 = arith.subf %434, %360 : vector<8x32xf32>
    %436 = vector.broadcast %409 : vector<8x1xf32> to vector<8x32xf32>
    %437 = arith.mulf %436, %435 : vector<8x32xf32>
    %438 = arith.addf %360, %437 : vector<8x32xf32>
    %439 = arith.subf %432, %364 : vector<8x32xf32>
    %440 = vector.broadcast %409 : vector<8x1xf32> to vector<8x32xf32>
    %441 = arith.mulf %440, %439 : vector<8x32xf32>
    %442 = arith.addf %364, %441 : vector<8x32xf32>
    %443 = tpu.concatenate %438, %403 in 1 : vector<8x32xf32>, vector<8x32xf32> -> vector<8x64xf32>
    %cst_84 = arith.constant dense<0.000000e+00> : vector<8x256xf32>
    %444 = tpu.matmul %443, %0, %cst_84 {dimension_numbers = #tpu.dot_dimension_numbers<[1], [0], [0], [1], [0, 0, 1, 1], [], []>} : vector<8x64xf32>, vector<64x256xf32>, vector<8x256xf32> -> vector<8x256xf32>
    %445 = vector.extract_strided_slice %444 {offsets = [0, 128], sizes = [8, 128], strides = [1, 1]} : vector<8x256xf32> to vector<8x128xf32>
    %446 = vector.broadcast %1 : vector<1x128xf32> to vector<8x128xf32>
    %447 = arith.addf %445, %446 : vector<8x128xf32>
    %448 = vector.extract_strided_slice %16 {offsets = [40, 0], sizes = [8, 128], strides = [1, 1]} : vector<56x128xf32> to vector<8x128xf32>
    %449 = vector.extract_strided_slice %444 {offsets = [0, 0], sizes = [8, 128], strides = [1, 1]} : vector<8x256xf32> to vector<8x128xf32>
    %450 = arith.addf %448, %449 : vector<8x128xf32>
    %c5_85 = arith.constant 5 : index
    %c0_86 = arith.constant 0 : index
    %c0_87 = arith.constant 0 : index
    %451 = vector.load %arg3[%c5_85, %c0_86, %c0_87] : memref<8x8x1xf32, #tpu.memory_space<vmem>>, vector<1x8x1xf32>
    %452 = vector.shape_cast %451 : vector<1x8x1xf32> to vector<8x1xf32>
    %453 = vector.extract_strided_slice %447 {offsets = [0, 0], sizes = [8, 32], strides = [1, 1]} : vector<8x128xf32> to vector<8x32xf32>
    %454 = arith.negf %453 : vector<8x32xf32>
    %455 = math.exp %454 : vector<8x32xf32>
    %cst_88 = arith.constant 1.000000e+00 : f32
    %456 = vector.broadcast %cst_88 : f32 to vector<8x32xf32>
    %457 = arith.addf %456, %455 : vector<8x32xf32>
    %458 = arith.divf %456, %457 : vector<8x32xf32>
    %459 = vector.extract_strided_slice %447 {offsets = [0, 32], sizes = [8, 32], strides = [1, 1]} : vector<8x128xf32> to vector<8x32xf32>
    %460 = arith.negf %459 : vector<8x32xf32>
    %461 = math.exp %460 : vector<8x32xf32>
    %cst_89 = arith.constant 1.000000e+00 : f32
    %462 = vector.broadcast %cst_89 : f32 to vector<8x32xf32>
    %463 = arith.addf %462, %461 : vector<8x32xf32>
    %464 = arith.divf %462, %463 : vector<8x32xf32>
    %465 = vector.extract_strided_slice %447 {offsets = [0, 64], sizes = [8, 32], strides = [1, 1]} : vector<8x128xf32> to vector<8x32xf32>
    %466 = math.tanh %465 : vector<8x32xf32>
    %467 = vector.extract_strided_slice %447 {offsets = [0, 96], sizes = [8, 32], strides = [1, 1]} : vector<8x128xf32> to vector<8x32xf32>
    %468 = arith.negf %467 : vector<8x32xf32>
    %469 = math.exp %468 : vector<8x32xf32>
    %cst_90 = arith.constant 1.000000e+00 : f32
    %470 = vector.broadcast %cst_90 : f32 to vector<8x32xf32>
    %471 = arith.addf %470, %469 : vector<8x32xf32>
    %472 = arith.divf %470, %471 : vector<8x32xf32>
    %473 = arith.mulf %464, %407 : vector<8x32xf32>
    %474 = arith.mulf %458, %466 : vector<8x32xf32>
    %475 = arith.addf %473, %474 : vector<8x32xf32>
    %476 = math.tanh %475 : vector<8x32xf32>
    %477 = arith.mulf %472, %476 : vector<8x32xf32>
    %478 = arith.subf %477, %403 : vector<8x32xf32>
    %479 = vector.broadcast %452 : vector<8x1xf32> to vector<8x32xf32>
    %480 = arith.mulf %479, %478 : vector<8x32xf32>
    %481 = arith.addf %403, %480 : vector<8x32xf32>
    %482 = arith.subf %475, %407 : vector<8x32xf32>
    %483 = vector.broadcast %452 : vector<8x1xf32> to vector<8x32xf32>
    %484 = arith.mulf %483, %482 : vector<8x32xf32>
    %485 = arith.addf %407, %484 : vector<8x32xf32>
    %c6 = arith.constant 6 : index
    %c0_91 = arith.constant 0 : index
    %c0_92 = arith.constant 0 : index
    %486 = vector.load %arg3[%c6, %c0_91, %c0_92] : memref<8x8x1xf32, #tpu.memory_space<vmem>>, vector<1x8x1xf32>
    %487 = vector.shape_cast %486 : vector<1x8x1xf32> to vector<8x1xf32>
    %488 = vector.extract_strided_slice %450 {offsets = [0, 0], sizes = [8, 32], strides = [1, 1]} : vector<8x128xf32> to vector<8x32xf32>
    %489 = arith.negf %488 : vector<8x32xf32>
    %490 = math.exp %489 : vector<8x32xf32>
    %cst_93 = arith.constant 1.000000e+00 : f32
    %491 = vector.broadcast %cst_93 : f32 to vector<8x32xf32>
    %492 = arith.addf %491, %490 : vector<8x32xf32>
    %493 = arith.divf %491, %492 : vector<8x32xf32>
    %494 = vector.extract_strided_slice %450 {offsets = [0, 32], sizes = [8, 32], strides = [1, 1]} : vector<8x128xf32> to vector<8x32xf32>
    %495 = arith.negf %494 : vector<8x32xf32>
    %496 = math.exp %495 : vector<8x32xf32>
    %cst_94 = arith.constant 1.000000e+00 : f32
    %497 = vector.broadcast %cst_94 : f32 to vector<8x32xf32>
    %498 = arith.addf %497, %496 : vector<8x32xf32>
    %499 = arith.divf %497, %498 : vector<8x32xf32>
    %500 = vector.extract_strided_slice %450 {offsets = [0, 64], sizes = [8, 32], strides = [1, 1]} : vector<8x128xf32> to vector<8x32xf32>
    %501 = math.tanh %500 : vector<8x32xf32>
    %502 = vector.extract_strided_slice %450 {offsets = [0, 96], sizes = [8, 32], strides = [1, 1]} : vector<8x128xf32> to vector<8x32xf32>
    %503 = arith.negf %502 : vector<8x32xf32>
    %504 = math.exp %503 : vector<8x32xf32>
    %cst_95 = arith.constant 1.000000e+00 : f32
    %505 = vector.broadcast %cst_95 : f32 to vector<8x32xf32>
    %506 = arith.addf %505, %504 : vector<8x32xf32>
    %507 = arith.divf %505, %506 : vector<8x32xf32>
    %508 = arith.mulf %499, %442 : vector<8x32xf32>
    %509 = arith.mulf %493, %501 : vector<8x32xf32>
    %510 = arith.addf %508, %509 : vector<8x32xf32>
    %511 = math.tanh %510 : vector<8x32xf32>
    %512 = arith.mulf %507, %511 : vector<8x32xf32>
    %513 = arith.subf %512, %438 : vector<8x32xf32>
    %514 = vector.broadcast %487 : vector<8x1xf32> to vector<8x32xf32>
    %515 = arith.mulf %514, %513 : vector<8x32xf32>
    %516 = arith.addf %438, %515 : vector<8x32xf32>
    %517 = arith.subf %510, %442 : vector<8x32xf32>
    %518 = vector.broadcast %487 : vector<8x1xf32> to vector<8x32xf32>
    %519 = arith.mulf %518, %517 : vector<8x32xf32>
    %520 = arith.addf %442, %519 : vector<8x32xf32>
    %521 = tpu.concatenate %516, %481 in 1 : vector<8x32xf32>, vector<8x32xf32> -> vector<8x64xf32>
    %cst_96 = arith.constant dense<0.000000e+00> : vector<8x256xf32>
    %522 = tpu.matmul %521, %0, %cst_96 {dimension_numbers = #tpu.dot_dimension_numbers<[1], [0], [0], [1], [0, 0, 1, 1], [], []>} : vector<8x64xf32>, vector<64x256xf32>, vector<8x256xf32> -> vector<8x256xf32>
    %523 = vector.extract_strided_slice %522 {offsets = [0, 128], sizes = [8, 128], strides = [1, 1]} : vector<8x256xf32> to vector<8x128xf32>
    %524 = vector.broadcast %1 : vector<1x128xf32> to vector<8x128xf32>
    %525 = arith.addf %523, %524 : vector<8x128xf32>
    %526 = vector.extract_strided_slice %16 {offsets = [48, 0], sizes = [8, 128], strides = [1, 1]} : vector<56x128xf32> to vector<8x128xf32>
    %527 = vector.extract_strided_slice %522 {offsets = [0, 0], sizes = [8, 128], strides = [1, 1]} : vector<8x256xf32> to vector<8x128xf32>
    %528 = arith.addf %526, %527 : vector<8x128xf32>
    %c6_97 = arith.constant 6 : index
    %c0_98 = arith.constant 0 : index
    %c0_99 = arith.constant 0 : index
    %529 = vector.load %arg3[%c6_97, %c0_98, %c0_99] : memref<8x8x1xf32, #tpu.memory_space<vmem>>, vector<1x8x1xf32>
    %530 = vector.shape_cast %529 : vector<1x8x1xf32> to vector<8x1xf32>
    %531 = vector.extract_strided_slice %525 {offsets = [0, 0], sizes = [8, 32], strides = [1, 1]} : vector<8x128xf32> to vector<8x32xf32>
    %532 = arith.negf %531 : vector<8x32xf32>
    %533 = math.exp %532 : vector<8x32xf32>
    %cst_100 = arith.constant 1.000000e+00 : f32
    %534 = vector.broadcast %cst_100 : f32 to vector<8x32xf32>
    %535 = arith.addf %534, %533 : vector<8x32xf32>
    %536 = arith.divf %534, %535 : vector<8x32xf32>
    %537 = vector.extract_strided_slice %525 {offsets = [0, 32], sizes = [8, 32], strides = [1, 1]} : vector<8x128xf32> to vector<8x32xf32>
    %538 = arith.negf %537 : vector<8x32xf32>
    %539 = math.exp %538 : vector<8x32xf32>
    %cst_101 = arith.constant 1.000000e+00 : f32
    %540 = vector.broadcast %cst_101 : f32 to vector<8x32xf32>
    %541 = arith.addf %540, %539 : vector<8x32xf32>
    %542 = arith.divf %540, %541 : vector<8x32xf32>
    %543 = vector.extract_strided_slice %525 {offsets = [0, 64], sizes = [8, 32], strides = [1, 1]} : vector<8x128xf32> to vector<8x32xf32>
    %544 = math.tanh %543 : vector<8x32xf32>
    %545 = vector.extract_strided_slice %525 {offsets = [0, 96], sizes = [8, 32], strides = [1, 1]} : vector<8x128xf32> to vector<8x32xf32>
    %546 = arith.negf %545 : vector<8x32xf32>
    %547 = math.exp %546 : vector<8x32xf32>
    %cst_102 = arith.constant 1.000000e+00 : f32
    %548 = vector.broadcast %cst_102 : f32 to vector<8x32xf32>
    %549 = arith.addf %548, %547 : vector<8x32xf32>
    %550 = arith.divf %548, %549 : vector<8x32xf32>
    %551 = arith.mulf %542, %485 : vector<8x32xf32>
    %552 = arith.mulf %536, %544 : vector<8x32xf32>
    %553 = arith.addf %551, %552 : vector<8x32xf32>
    %554 = math.tanh %553 : vector<8x32xf32>
    %555 = arith.mulf %550, %554 : vector<8x32xf32>
    %556 = arith.subf %555, %481 : vector<8x32xf32>
    %557 = vector.broadcast %530 : vector<8x1xf32> to vector<8x32xf32>
    %558 = arith.mulf %557, %556 : vector<8x32xf32>
    %559 = arith.addf %481, %558 : vector<8x32xf32>
    %560 = arith.subf %553, %485 : vector<8x32xf32>
    %561 = vector.broadcast %530 : vector<8x1xf32> to vector<8x32xf32>
    %562 = arith.mulf %561, %560 : vector<8x32xf32>
    %563 = arith.addf %485, %562 : vector<8x32xf32>
    %c7 = arith.constant 7 : index
    %c0_103 = arith.constant 0 : index
    %c0_104 = arith.constant 0 : index
    %564 = vector.load %arg3[%c7, %c0_103, %c0_104] : memref<8x8x1xf32, #tpu.memory_space<vmem>>, vector<1x8x1xf32>
    %565 = vector.shape_cast %564 : vector<1x8x1xf32> to vector<8x1xf32>
    %566 = vector.extract_strided_slice %528 {offsets = [0, 0], sizes = [8, 32], strides = [1, 1]} : vector<8x128xf32> to vector<8x32xf32>
    %567 = arith.negf %566 : vector<8x32xf32>
    %568 = math.exp %567 : vector<8x32xf32>
    %cst_105 = arith.constant 1.000000e+00 : f32
    %569 = vector.broadcast %cst_105 : f32 to vector<8x32xf32>
    %570 = arith.addf %569, %568 : vector<8x32xf32>
    %571 = arith.divf %569, %570 : vector<8x32xf32>
    %572 = vector.extract_strided_slice %528 {offsets = [0, 32], sizes = [8, 32], strides = [1, 1]} : vector<8x128xf32> to vector<8x32xf32>
    %573 = arith.negf %572 : vector<8x32xf32>
    %574 = math.exp %573 : vector<8x32xf32>
    %cst_106 = arith.constant 1.000000e+00 : f32
    %575 = vector.broadcast %cst_106 : f32 to vector<8x32xf32>
    %576 = arith.addf %575, %574 : vector<8x32xf32>
    %577 = arith.divf %575, %576 : vector<8x32xf32>
    %578 = vector.extract_strided_slice %528 {offsets = [0, 64], sizes = [8, 32], strides = [1, 1]} : vector<8x128xf32> to vector<8x32xf32>
    %579 = math.tanh %578 : vector<8x32xf32>
    %580 = vector.extract_strided_slice %528 {offsets = [0, 96], sizes = [8, 32], strides = [1, 1]} : vector<8x128xf32> to vector<8x32xf32>
    %581 = arith.negf %580 : vector<8x32xf32>
    %582 = math.exp %581 : vector<8x32xf32>
    %cst_107 = arith.constant 1.000000e+00 : f32
    %583 = vector.broadcast %cst_107 : f32 to vector<8x32xf32>
    %584 = arith.addf %583, %582 : vector<8x32xf32>
    %585 = arith.divf %583, %584 : vector<8x32xf32>
    %586 = arith.mulf %577, %520 : vector<8x32xf32>
    %587 = arith.mulf %571, %579 : vector<8x32xf32>
    %588 = arith.addf %586, %587 : vector<8x32xf32>
    %589 = math.tanh %588 : vector<8x32xf32>
    %590 = arith.mulf %585, %589 : vector<8x32xf32>
    %591 = arith.subf %590, %516 : vector<8x32xf32>
    %592 = vector.broadcast %565 : vector<8x1xf32> to vector<8x32xf32>
    %593 = arith.mulf %592, %591 : vector<8x32xf32>
    %594 = arith.addf %516, %593 : vector<8x32xf32>
    %595 = arith.subf %588, %520 : vector<8x32xf32>
    %596 = vector.broadcast %565 : vector<8x1xf32> to vector<8x32xf32>
    %597 = arith.mulf %596, %595 : vector<8x32xf32>
    %598 = arith.addf %520, %597 : vector<8x32xf32>
    %599 = tpu.concatenate %594, %559 in 1 : vector<8x32xf32>, vector<8x32xf32> -> vector<8x64xf32>
    %cst_108 = arith.constant dense<0.000000e+00> : vector<8x256xf32>
    %600 = tpu.matmul %599, %0, %cst_108 {dimension_numbers = #tpu.dot_dimension_numbers<[1], [0], [0], [1], [0, 0, 1, 1], [], []>} : vector<8x64xf32>, vector<64x256xf32>, vector<8x256xf32> -> vector<8x256xf32>
    %601 = vector.extract_strided_slice %600 {offsets = [0, 128], sizes = [8, 128], strides = [1, 1]} : vector<8x256xf32> to vector<8x128xf32>
    %602 = vector.broadcast %1 : vector<1x128xf32> to vector<8x128xf32>
    %603 = arith.addf %601, %602 : vector<8x128xf32>
    %c7_109 = arith.constant 7 : index
    %c0_110 = arith.constant 0 : index
    %c0_111 = arith.constant 0 : index
    %604 = vector.load %arg3[%c7_109, %c0_110, %c0_111] : memref<8x8x1xf32, #tpu.memory_space<vmem>>, vector<1x8x1xf32>
    %605 = vector.shape_cast %604 : vector<1x8x1xf32> to vector<8x1xf32>
    %606 = vector.extract_strided_slice %603 {offsets = [0, 0], sizes = [8, 32], strides = [1, 1]} : vector<8x128xf32> to vector<8x32xf32>
    %607 = arith.negf %606 : vector<8x32xf32>
    %608 = math.exp %607 : vector<8x32xf32>
    %cst_112 = arith.constant 1.000000e+00 : f32
    %609 = vector.broadcast %cst_112 : f32 to vector<8x32xf32>
    %610 = arith.addf %609, %608 : vector<8x32xf32>
    %611 = arith.divf %609, %610 : vector<8x32xf32>
    %612 = vector.extract_strided_slice %603 {offsets = [0, 32], sizes = [8, 32], strides = [1, 1]} : vector<8x128xf32> to vector<8x32xf32>
    %613 = arith.negf %612 : vector<8x32xf32>
    %614 = math.exp %613 : vector<8x32xf32>
    %cst_113 = arith.constant 1.000000e+00 : f32
    %615 = vector.broadcast %cst_113 : f32 to vector<8x32xf32>
    %616 = arith.addf %615, %614 : vector<8x32xf32>
    %617 = arith.divf %615, %616 : vector<8x32xf32>
    %618 = vector.extract_strided_slice %603 {offsets = [0, 64], sizes = [8, 32], strides = [1, 1]} : vector<8x128xf32> to vector<8x32xf32>
    %619 = math.tanh %618 : vector<8x32xf32>
    %620 = vector.extract_strided_slice %603 {offsets = [0, 96], sizes = [8, 32], strides = [1, 1]} : vector<8x128xf32> to vector<8x32xf32>
    %621 = arith.negf %620 : vector<8x32xf32>
    %622 = math.exp %621 : vector<8x32xf32>
    %cst_114 = arith.constant 1.000000e+00 : f32
    %623 = vector.broadcast %cst_114 : f32 to vector<8x32xf32>
    %624 = arith.addf %623, %622 : vector<8x32xf32>
    %625 = arith.divf %623, %624 : vector<8x32xf32>
    %626 = arith.mulf %617, %563 : vector<8x32xf32>
    %627 = arith.mulf %611, %619 : vector<8x32xf32>
    %628 = arith.addf %626, %627 : vector<8x32xf32>
    %629 = math.tanh %628 : vector<8x32xf32>
    %630 = arith.mulf %625, %629 : vector<8x32xf32>
    %631 = arith.subf %630, %559 : vector<8x32xf32>
    %632 = vector.broadcast %605 : vector<8x1xf32> to vector<8x32xf32>
    %633 = arith.mulf %632, %631 : vector<8x32xf32>
    %634 = arith.addf %559, %633 : vector<8x32xf32>
    %635 = arith.subf %628, %563 : vector<8x32xf32>
    %636 = vector.broadcast %605 : vector<8x1xf32> to vector<8x32xf32>
    %637 = arith.mulf %636, %635 : vector<8x32xf32>
    %638 = arith.addf %563, %637 : vector<8x32xf32>
    %639 = tpu.concatenate %91, %169, %247, %325, %403, %481, %559, %634 in 0 : vector<8x32xf32>, vector<8x32xf32>, vector<8x32xf32>, vector<8x32xf32>, vector<8x32xf32>, vector<8x32xf32>, vector<8x32xf32>, vector<8x32xf32> -> vector<64x32xf32>
    %c0_115 = arith.constant 0 : index
    %c0_116 = arith.constant 0 : index
    %640 = vector.load %arg10[%c0_115, %c0_116] : memref<32x128xf32, #tpu.memory_space<vmem>>, vector<32x128xf32>
    %cst_117 = arith.constant dense<0.000000e+00> : vector<64x128xf32>
    %641 = tpu.matmul %639, %640, %cst_117 {dimension_numbers = #tpu.dot_dimension_numbers<[1], [0], [0], [1], [0, 0, 1, 1], [], []>} : vector<64x32xf32>, vector<32x128xf32>, vector<64x128xf32> -> vector<64x128xf32>
    %c0_118 = arith.constant 0 : index
    %c0_119 = arith.constant 0 : index
    %642 = vector.load %arg11[%c0_118, %c0_119] : memref<1x128xf32, #tpu.memory_space<vmem>>, vector<1x128xf32>
    %643 = vector.broadcast %642 : vector<1x128xf32> to vector<64x128xf32>
    %644 = arith.addf %641, %643 : vector<64x128xf32>
    %c0_120 = arith.constant 0 : index
    %c0_121 = arith.constant 0 : index
    %645 = vector.load %arg12[%c0_120, %c0_121] : memref<64x128xf32, #tpu.memory_space<vmem>>, vector<64x128xf32>
    tpu.vector_store %arg12[%c0_120, %c0_121], %644 {strides = array<i32>} : memref<64x128xf32, #tpu.memory_space<vmem>>, vector<64x128xf32>,
    %646 = tpu.concatenate %594, %634, %598, %638 in 1 : vector<8x32xf32>, vector<8x32xf32>, vector<8x32xf32>, vector<8x32xf32> -> vector<8x128xf32>
    %c0_122 = arith.constant 0 : index
    %c0_123 = arith.constant 0 : index
    %647 = vector.load %arg13[%c0_122, %c0_123] : memref<8x128xf32, #tpu.memory_space<vmem>>, vector<8x128xf32>
    tpu.vector_store %arg13[%c0_122, %c0_123], %646 {strides = array<i32>} : memref<8x128xf32, #tpu.memory_space<vmem>>, vector<8x128xf32>,
    return
  }
  func.func @transform_0(%arg0: i32) -> (i32, i32) {
    %c0_i32 = arith.constant 0 : i32
    %c0_i32_0 = arith.constant 0 : i32
    %c0_i32_1 = arith.constant 0 : i32
    return %c0_i32, %c0_i32_0 : i32, i32
  }
  func.func @transform_1(%arg0: i32) -> (i32, i32) {
    %c0_i32 = arith.constant 0 : i32
    %c0_i32_0 = arith.constant 0 : i32
    %c0_i32_1 = arith.constant 0 : i32
    return %c0_i32, %c0_i32_0 : i32, i32
  }
  func.func @transform_2(%arg0: i32) -> (i32, i32, i32) {
    %c0_i32 = arith.constant 0 : i32
    %c0_i32_0 = arith.constant 0 : i32
    %c0_i32_1 = arith.constant 0 : i32
    %c0_i32_2 = arith.constant 0 : i32
    return %c0_i32, %c0_i32_0, %c0_i32_1 : i32, i32, i32
  }
  func.func @transform_3(%arg0: i32) -> (i32, i32) {
    %c0_i32 = arith.constant 0 : i32
    %c0_i32_0 = arith.constant 0 : i32
    %c0_i32_1 = arith.constant 0 : i32
    return %c0_i32, %c0_i32_0 : i32, i32
  }
  func.func @transform_4(%arg0: i32) -> (i32, i32) {
    %c0_i32 = arith.constant 0 : i32
    %c0_i32_0 = arith.constant 0 : i32
    %c0_i32_1 = arith.constant 0 : i32
    return %c0_i32, %c0_i32_0 : i32, i32
  }
  func.func @transform_5(%arg0: i32) -> (i32, i32) {
    %c0_i32 = arith.constant 0 : i32
    %c0_i32_0 = arith.constant 0 : i32
    %c0_i32_1 = arith.constant 0 : i32
    return %c0_i32, %c0_i32_0 : i32, i32
  }
  func.func @transform_6(%arg0: i32) -> (i32, i32) {
    %c0_i32 = arith.constant 0 : i32
    %c0_i32_0 = arith.constant 0 : i32
    %c0_i32_1 = arith.constant 0 : i32
    return %c0_i32, %c0_i32_0 : i32, i32
  }
  func.func @transform_7(%arg0: i32) -> (i32, i32) {
    %c0_i32 = arith.constant 0 : i32
    %c0_i32_0 = arith.constant 0 : i32
    %c0_i32_1 = arith.constant 0 : i32
    return %c0_i32, %c0_i32_0 : i32, i32
  }
  func.func @transform_8(%arg0: i32) -> (i32, i32) {
    %c0_i32 = arith.constant 0 : i32
    %c0_i32_0 = arith.constant 0 : i32
    %c0_i32_1 = arith.constant 0 : i32
    return %c0_i32, %c0_i32_0 : i32, i32
  }
  func.func @transform_9(%arg0: i32) -> (i32, i32) {
    %c0_i32 = arith.constant 0 : i32
    %c0_i32_0 = arith.constant 0 : i32
    %c0_i32_1 = arith.constant 0 : i32
    return %c0_i32, %c0_i32_0 : i32, i32
  }
  func.func @transform_10(%arg0: i32) -> (i32, i32) {
    %c0_i32 = arith.constant 0 : i32
    %c0_i32_0 = arith.constant 0 : i32
    %c0_i32_1 = arith.constant 0 : i32
    return %c0_i32, %c0_i32_0 : i32, i32
  }
  func.func @transform_11(%arg0: i32) -> (i32, i32) {
    %c0_i32 = arith.constant 0 : i32
    %c0_i32_0 = arith.constant 0 : i32
    %c0_i32_1 = arith.constant 0 : i32
    return %c0_i32, %c0_i32_0 : i32, i32
  }
  func.func @transform_12(%arg0: i32) -> (i32, i32) {
    %c0_i32 = arith.constant 0 : i32
    %c0_i32_0 = arith.constant 0 : i32
    %c0_i32_1 = arith.constant 0 : i32
    return %c0_i32, %c0_i32_0 : i32, i32
  }
}

</mosaic_0001>

<llo_original>
// kernel: _forward_core.1
$region0: #{_forward_core.1}
  #allocation0 [shape = 'u32[]', space=smem, size = 0x4, offset = 0x4, fixed_abs, tag = 'smem constant byte address 0x4 - core index']
  #allocation1 [shape = 'u32[144,128]{1,0:T(1,128)}', space=vmem, size = 0x12000, scoped, tag = 'internal scratch']
  %s0 = inlined_call_operand.vmem [shape: bf16[8,2048], index: 0, kind: input, shape index: {}]
  %s1 = inlined_call_operand.vmem [shape: f32[56,32], index: 1, kind: input, shape index: {}]
  %s2 = inlined_call_operand.vmem [shape: f32[8,8,1], index: 2, kind: input, shape index: {}]
  %s3 = inlined_call_operand.vmem [shape: bf16[2048,32], index: 3, kind: input, shape index: {}]
  %s4 = inlined_call_operand.vmem [shape: f32[1,32], index: 4, kind: input, shape index: {}]
  %s5 = inlined_call_operand.vmem [shape: f32[32,128], index: 5, kind: input, shape index: {}]
  %s6 = inlined_call_operand.vmem [shape: f32[1,128], index: 6, kind: input, shape index: {}]
  %s7 = inlined_call_operand.vmem [shape: f32[64,256], index: 7, kind: input, shape index: {}]
  %s8 = inlined_call_operand.vmem [shape: f32[1,128], index: 8, kind: input, shape index: {}]
  %s9 = inlined_call_operand.vmem [shape: f32[32,128], index: 9, kind: input, shape index: {}]
  %s10 = inlined_call_operand.vmem [shape: f32[1,128], index: 10, kind: input, shape index: {}]
  %s11 = inlined_call_operand.vmem [shape: f32[64,128], index: 11, kind: output, shape index: {0}]
  %s12 = inlined_call_operand.vmem [shape: f32[8,128], index: 12, kind: output, shape index: {1}]
  %13 = xla_tuple %s11, %s12
  %s14 = sld [smem:[#allocation0]]
  $region62: #{_forward_core.1} parent=0
    _
  %s16 = ssub.s32 1, %s14
  %s17 = scalar_select 0, %s16, %s14
  // Predicated region
  $region2: #{_forward_core.1} parent=0 // pred_check
    _
  $region3: #{_forward_core.1} parent=0 // pred_check_branch
    %19 = sbr.rel (0) target = $region5
  $region4: #{_forward_core.1} parent=0 // pred_region
    _
  $region5: #{_forward_core.1} parent=0 // pred_fallthru
    _
  // Predicated region
  $region6: #{_forward_core.1} parent=0 // pred_check
    _
  $region7: #{_forward_core.1} parent=0 // pred_check_branch
    %21 = sbr.rel (0) target = $region9
  $region8: #{_forward_core.1} parent=0 // pred_region
    _
  $region9: #{_forward_core.1} parent=0 // pred_fallthru
    _
  // Predicated region
  $region10: #{_forward_core.1} parent=0 // pred_check
    _
  $region11: #{_forward_core.1} parent=0 // pred_check_branch
    %23 = sbr.rel (0) target = $region13
  $region12: #{_forward_core.1} parent=0 // pred_region
    _
  $region13: #{_forward_core.1} parent=0 // pred_fallthru
    _
  // Predicated region
  $region14: #{_forward_core.1} parent=0 // pred_check
    _
  $region15: #{_forward_core.1} parent=0 // pred_check_branch
    %25 = sbr.rel (0) target = $region17
  $region16: #{_forward_core.1} parent=0 // pred_region
    _
  $region17: #{_forward_core.1} parent=0 // pred_fallthru
    _
  // Predicated region
  $region18: #{_forward_core.1} parent=0 // pred_check
    _
  $region19: #{_forward_core.1} parent=0 // pred_check_branch
    %27 = sbr.rel (0) target = $region21
  $region20: #{_forward_core.1} parent=0 // pred_region
    _
  $region21: #{_forward_core.1} parent=0 // pred_fallthru
    _
  // Predicated region
  $region22: #{_forward_core.1} parent=0 // pred_check
    _
  $region23: #{_forward_core.1} parent=0 // pred_check_branch
    %29 = sbr.rel (0) target = $region25
  $region24: #{_forward_core.1} parent=0 // pred_region
    _
  $region25: #{_forward_core.1} parent=0 // pred_fallthru
    _
  // Predicated region
  $region26: #{_forward_core.1} parent=0 // pred_check
    _
  $region27: #{_forward_core.1} parent=0 // pred_check_branch
    %31 = sbr.rel (0) target = $region29
  $region28: #{_forward_core.1} parent=0 // pred_region
    _
  $region29: #{_forward_core.1} parent=0 // pred_fallthru
    _
  // Predicated region
  $region30: #{_forward_core.1} parent=0 // pred_check
    _
  $region31: #{_forward_core.1} parent=0 // pred_check_branch
    %33 = sbr.rel (0) target = $region33
  $region32: #{_forward_core.1} parent=0 // pred_region
    _
  $region33: #{_forward_core.1} parent=0 // pred_fallthru
    _
  // Predicated region
  $region34: #{_forward_core.1} parent=0 // pred_check
    _
  $region35: #{_forward_core.1} parent=0 // pred_check_branch
    %35 = sbr.rel (0) target = $region37
  $region36: #{_forward_core.1} parent=0 // pred_region
    _
  $region37: #{_forward_core.1} parent=0 // pred_fallthru
    _
  // Predicated region
  $region38: #{_forward_core.1} parent=0 // pred_check
    _
  $region39: #{_forward_core.1} parent=0 // pred_check_branch
    %37 = sbr.rel (0) target = $region41
  $region40: #{_forward_core.1} parent=0 // pred_region
    _
  $region41: #{_forward_core.1} parent=0 // pred_fallthru
    _
  // Predicated region
  $region42: #{_forward_core.1} parent=0 // pred_check
    _
  $region43: #{_forward_core.1} parent=0 // pred_check_branch
    %39 = sbr.rel (0) target = $region45
  $region44: #{_forward_core.1} parent=0 // pred_region
    _
  $region45: #{_forward_core.1} parent=0 // pred_fallthru
    _
  %v41 = vld [vmem:[%s7] sm:$0xff]
  %v42 = vld [vmem:[%s7 + $0x8] sm:$0xff]
  %v43 = vld [vmem:[%s7 + $0x10] sm:$0xff]
  %v44 = vld [vmem:[%s7 + $0x18] sm:$0xff]
  %v45 = vld [vmem:[%s7 + $0x20] sm:$0xff]
  %v46 = vld [vmem:[%s7 + $0x28] sm:$0xff]
  %v47 = vld [vmem:[%s7 + $0x30] sm:$0xff]
  %v48 = vld [vmem:[%s7 + $0x38] sm:$0xff]
  %v49 = vld [vmem:[%s7 + $0x40] sm:$0xff]
  %v50 = vld [vmem:[%s7 + $0x48] sm:$0xff]
  %v51 = vld [vmem:[%s7 + $0x50] sm:$0xff]
  %v52 = vld [vmem:[%s7 + $0x58] sm:$0xff]
  %v53 = vld [vmem:[%s7 + $0x60] sm:$0xff]
  %v54 = vld [vmem:[%s7 + $0x68] sm:$0xff]
  %v55 = vld [vmem:[%s7 + $0x70] sm:$0xff]
  %v56 = vld [vmem:[%s7 + $0x78] sm:$0xff]
  %v57 = vld [vmem:[%s8] sm:$0x1]
  %v58 = vld [vmem:[%s5] sm:$0xff]
  %v59 = vld [vmem:[%s5 + $0x8] sm:$0xff]
  %v60 = vld [vmem:[%s5 + $0x10] sm:$0xff]
  %v61 = vld [vmem:[%s5 + $0x18] sm:$0xff]
  %v62 = vld [vmem:[%s6] sm:$0x1]
  %v63 = vld [vmem:[%s0] sm:$0xff]
  %v64 = vld [vmem:[%s0 + $0x8] sm:$0xff]
  %v65 = vld [vmem:[%s0 + $0x10] sm:$0xff]
  %v66 = vld [vmem:[%s0 + $0x18] sm:$0xff]
  %v67 = vld [vmem:[%s0 + $0x20] sm:$0xff]
  %v68 = vld [vmem:[%s0 + $0x28] sm:$0xff]
  %v69 = vld [vmem:[%s0 + $0x30] sm:$0xff]
  %v70 = vld [vmem:[%s0 + $0x38] sm:$0xff]
  %v71 = vld [vmem:[%s3] sm:$0xf]
  %v72 = vld [vmem:[%s3 + $0x4] sm:$0xf]
  %v73 = vld [vmem:[%s3 + $0x8] sm:$0xf]
  %v74 = vld [vmem:[%s3 + $0xc] sm:$0xf]
  %v75 = vld [vmem:[%s3 + $0x10] sm:$0xf]
  %v76 = vld [vmem:[%s3 + $0x14] sm:$0xf]
  %v77 = vld [vmem:[%s3 + $0x18] sm:$0xf]
  %v78 = vld [vmem:[%s3 + $0x1c] sm:$0xf]
  %v79 = vld [vmem:[%s3 + $0x20] sm:$0xf]
  %v80 = vld [vmem:[%s3 + $0x24] sm:$0xf]
  %v81 = vld [vmem:[%s3 + $0x28] sm:$0xf]
  %v82 = vld [vmem:[%s3 + $0x2c] sm:$0xf]
  %v83 = vld [vmem:[%s3 + $0x30] sm:$0xf]
  %v84 = vld [vmem:[%s3 + $0x34] sm:$0xf]
  %v85 = vld [vmem:[%s3 + $0x38] sm:$0xf]
  %v86 = vld [vmem:[%s3 + $0x3c] sm:$0xf]
  %v87 = vld [vmem:[%s3 + $0x40] sm:$0xf]
  %v88 = vld [vmem:[%s3 + $0x44] sm:$0xf]
  %v89 = vld [vmem:[%s3 + $0x48] sm:$0xf]
  %v90 = vld [vmem:[%s3 + $0x4c] sm:$0xf]
  %v91 = vld [vmem:[%s3 + $0x50] sm:$0xf]
  %v92 = vld [vmem:[%s3 + $0x54] sm:$0xf]
  %v93 = vld [vmem:[%s3 + $0x58] sm:$0xf]
  %v94 = vld [vmem:[%s3 + $0x5c] sm:$0xf]
  %v95 = vld [vmem:[%s3 + $0x60] sm:$0xf]
  %v96 = vld [vmem:[%s3 + $0x64] sm:$0xf]
  %v97 = vld [vmem:[%s3 + $0x68] sm:$0xf]
  %v98 = vld [vmem:[%s3 + $0x6c] sm:$0xf]
  %v99 = vld [vmem:[%s3 + $0x70] sm:$0xf]
  %v100 = vld [vmem:[%s3 + $0x74] sm:$0xf]
  %v101 = vld [vmem:[%s3 + $0x78] sm:$0xf]
  %v102 = vld [vmem:[%s3 + $0x7c] sm:$0xf]
  %v103 = vld [vmem:[%s3 + $0x80] sm:$0xf]
  %v104 = vld [vmem:[%s3 + $0x84] sm:$0xf]
  %v105 = vld [vmem:[%s3 + $0x88] sm:$0xf]
  %v106 = vld [vmem:[%s3 + $0x8c] sm:$0xf]
  %v107 = vld [vmem:[%s3 + $0x90] sm:$0xf]
  %v108 = vld [vmem:[%s3 + $0x94] sm:$0xf]
  %v109 = vld [vmem:[%s3 + $0x98] sm:$0xf]
  %v110 = vld [vmem:[%s3 + $0x9c] sm:$0xf]
  %v111 = vld [vmem:[%s3 + $0xa0] sm:$0xf]
  %v112 = vld [vmem:[%s3 + $0xa4] sm:$0xf]
  %v113 = vld [vmem:[%s3 + $0xa8] sm:$0xf]
  %v114 = vld [vmem:[%s3 + $0xac] sm:$0xf]
  %v115 = vld [vmem:[%s3 + $0xb0] sm:$0xf]
  %v116 = vld [vmem:[%s3 + $0xb4] sm:$0xf]
  %v117 = vld [vmem:[%s3 + $0xb8] sm:$0xf]
  %v118 = vld [vmem:[%s3 + $0xbc] sm:$0xf]
  %v119 = vld [vmem:[%s3 + $0xc0] sm:$0xf]
  %v120 = vld [vmem:[%s3 + $0xc4] sm:$0xf]
  %v121 = vld [vmem:[%s3 + $0xc8] sm:$0xf]
  %v122 = vld [vmem:[%s3 + $0xcc] sm:$0xf]
  %v123 = vld [vmem:[%s3 + $0xd0] sm:$0xf]
  %v124 = vld [vmem:[%s3 + $0xd4] sm:$0xf]
  %v125 = vld [vmem:[%s3 + $0xd8] sm:$0xf]
  %v126 = vld [vmem:[%s3 + $0xdc] sm:$0xf]
  %v127 = vld [vmem:[%s3 + $0xe0] sm:$0xf]
  %v128 = vld [vmem:[%s3 + $0xe4] sm:$0xf]
  %v129 = vld [vmem:[%s3 + $0xe8] sm:$0xf]
  %v130 = vld [vmem:[%s3 + $0xec] sm:$0xf]
  %v131 = vld [vmem:[%s3 + $0xf0] sm:$0xf]
  %v132 = vld [vmem:[%s3 + $0xf4] sm:$0xf]
  %v133 = vld [vmem:[%s3 + $0xf8] sm:$0xf]
  %v134 = vld [vmem:[%s3 + $0xfc] sm:$0xf]
  %v135 = vld [vmem:[%s3 + $0x100] sm:$0xf]
  %v136 = vld [vmem:[%s3 + $0x104] sm:$0xf]
  %v137 = vld [vmem:[%s3 + $0x108] sm:$0xf]
  %v138 = vld [vmem:[%s3 + $0x10c] sm:$0xf]
  %v139 = vld [vmem:[%s3 + $0x110] sm:$0xf]
  %v140 = vld [vmem:[%s3 + $0x114] sm:$0xf]
  %v141 = vld [vmem:[%s3 + $0x118] sm:$0xf]
  %v142 = vld [vmem:[%s3 + $0x11c] sm:$0xf]
  %v143 = vld [vmem:[%s3 + $0x120] sm:$0xf]
  %v144 = vld [vmem:[%s3 + $0x124] sm:$0xf]
  %v145 = vld [vmem:[%s3 + $0x128] sm:$0xf]
  %v146 = vld [vmem:[%s3 + $0x12c] sm:$0xf]
  %v147 = vld [vmem:[%s3 + $0x130] sm:$0xf]
  %v148 = vld [vmem:[%s3 + $0x134] sm:$0xf]
  %v149 = vld [vmem:[%s3 + $0x138] sm:$0xf]
  %v150 = vld [vmem:[%s3 + $0x13c] sm:$0xf]
  %v151 = vld [vmem:[%s3 + $0x140] sm:$0xf]
  %v152 = vld [vmem:[%s3 + $0x144] sm:$0xf]
  %v153 = vld [vmem:[%s3 + $0x148] sm:$0xf]
  %v154 = vld [vmem:[%s3 + $0x14c] sm:$0xf]
  %v155 = vld [vmem:[%s3 + $0x150] sm:$0xf]
  %v156 = vld [vmem:[%s3 + $0x154] sm:$0xf]
  %v157 = vld [vmem:[%s3 + $0x158] sm:$0xf]
  %v158 = vld [vmem:[%s3 + $0x15c] sm:$0xf]
  %v159 = vld [vmem:[%s3 + $0x160] sm:$0xf]
  %v160 = vld [vmem:[%s3 + $0x164] sm:$0xf]
  %v161 = vld [vmem:[%s3 + $0x168] sm:$0xf]
  %v162 = vld [vmem:[%s3 + $0x16c] sm:$0xf]
  %v163 = vld [vmem:[%s3 + $0x170] sm:$0xf]
  %v164 = vld [vmem:[%s3 + $0x174] sm:$0xf]
  %v165 = vld [vmem:[%s3 + $0x178] sm:$0xf]
  %v166 = vld [vmem:[%s3 + $0x17c] sm:$0xf]
  %v167 = vld [vmem:[%s3 + $0x180] sm:$0xf]
  %v168 = vld [vmem:[%s3 + $0x184] sm:$0xf]
  %v169 = vld [vmem:[%s3 + $0x188] sm:$0xf]
  %v170 = vld [vmem:[%s3 + $0x18c] sm:$0xf]
  %v171 = vld [vmem:[%s3 + $0x190] sm:$0xf]
  %v172 = vld [vmem:[%s3 + $0x194] sm:$0xf]
  %v173 = vld [vmem:[%s3 + $0x198] sm:$0xf]
  %v174 = vld [vmem:[%s3 + $0x19c] sm:$0xf]
  %v175 = vld [vmem:[%s3 + $0x1a0] sm:$0xf]
  %v176 = vld [vmem:[%s3 + $0x1a4] sm:$0xf]
  %v177 = vld [vmem:[%s3 + $0x1a8] sm:$0xf]
  %v178 = vld [vmem:[%s3 + $0x1ac] sm:$0xf]
  %v179 = vld [vmem:[%s3 + $0x1b0] sm:$0xf]
  %v180 = vld [vmem:[%s3 + $0x1b4] sm:$0xf]
  %v181 = vld [vmem:[%s3 + $0x1b8] sm:$0xf]
  %v182 = vld [vmem:[%s3 + $0x1bc] sm:$0xf]
  %v183 = vld [vmem:[%s3 + $0x1c0] sm:$0xf]
  %v184 = vld [vmem:[%s3 + $0x1c4] sm:$0xf]
  %v185 = vld [vmem:[%s3 + $0x1c8] sm:$0xf]
  %v186 = vld [vmem:[%s3 + $0x1cc] sm:$0xf]
  %v187 = vld [vmem:[%s3 + $0x1d0] sm:$0xf]
  %v188 = vld [vmem:[%s3 + $0x1d4] sm:$0xf]
  %v189 = vld [vmem:[%s3 + $0x1d8] sm:$0xf]
  %v190 = vld [vmem:[%s3 + $0x1dc] sm:$0xf]
  %v191 = vld [vmem:[%s3 + $0x1e0] sm:$0xf]
  %v192 = vld [vmem:[%s3 + $0x1e4] sm:$0xf]
  %v193 = vld [vmem:[%s3 + $0x1e8] sm:$0xf]
  %v194 = vld [vmem:[%s3 + $0x1ec] sm:$0xf]
  %v195 = vld [vmem:[%s3 + $0x1f0] sm:$0xf]
  %v196 = vld [vmem:[%s3 + $0x1f4] sm:$0xf]
  %v197 = vld [vmem:[%s3 + $0x1f8] sm:$0xf]
  %v198 = vld [vmem:[%s3 + $0x1fc] sm:$0xf]
  %v199 = vld [vmem:[%s3 + $0x200] sm:$0xf]
  %v200 = vld [vmem:[%s3 + $0x204] sm:$0xf]
  %v201 = vld [vmem:[%s3 + $0x208] sm:$0xf]
  %v202 = vld [vmem:[%s3 + $0x20c] sm:$0xf]
  %v203 = vld [vmem:[%s3 + $0x210] sm:$0xf]
  %v204 = vld [vmem:[%s3 + $0x214] sm:$0xf]
  %v205 = vld [vmem:[%s3 + $0x218] sm:$0xf]
  %v206 = vld [vmem:[%s3 + $0x21c] sm:$0xf]
  %v207 = vld [vmem:[%s3 + $0x220] sm:$0xf]
  %v208 = vld [vmem:[%s3 + $0x224] sm:$0xf]
  %v209 = vld [vmem:[%s3 + $0x228] sm:$0xf]
  %v210 = vld [vmem:[%s3 + $0x22c] sm:$0xf]
  %v211 = vld [vmem:[%s3 + $0x230] sm:$0xf]
  %v212 = vld [vmem:[%s3 + $0x234] sm:$0xf]
  %v213 = vld [vmem:[%s3 + $0x238] sm:$0xf]
  %v214 = vld [vmem:[%s3 + $0x23c] sm:$0xf]
  %v215 = vld [vmem:[%s3 + $0x240] sm:$0xf]
  %v216 = vld [vmem:[%s3 + $0x244] sm:$0xf]
  %v217 = vld [vmem:[%s3 + $0x248] sm:$0xf]
  %v218 = vld [vmem:[%s3 + $0x24c] sm:$0xf]
  %v219 = vld [vmem:[%s3 + $0x250] sm:$0xf]
  %v220 = vld [vmem:[%s3 + $0x254] sm:$0xf]
  %v221 = vld [vmem:[%s3 + $0x258] sm:$0xf]
  %v222 = vld [vmem:[%s3 + $0x25c] sm:$0xf]
  %v223 = vld [vmem:[%s3 + $0x260] sm:$0xf]
  %v224 = vld [vmem:[%s3 + $0x264] sm:$0xf]
  %v225 = vld [vmem:[%s3 + $0x268] sm:$0xf]
  %v226 = vld [vmem:[%s3 + $0x26c] sm:$0xf]
  %v227 = vld [vmem:[%s3 + $0x270] sm:$0xf]
  %v228 = vld [vmem:[%s3 + $0x274] sm:$0xf]
  %v229 = vld [vmem:[%s3 + $0x278] sm:$0xf]
  %v230 = vld [vmem:[%s3 + $0x27c] sm:$0xf]
  %v231 = vld [vmem:[%s3 + $0x280] sm:$0xf]
  %v232 = vld [vmem:[%s3 + $0x284] sm:$0xf]
  %v233 = vld [vmem:[%s3 + $0x288] sm:$0xf]
  %v234 = vld [vmem:[%s3 + $0x28c] sm:$0xf]
  %v235 = vld [vmem:[%s3 + $0x290] sm:$0xf]
  %v236 = vld [vmem:[%s3 + $0x294] sm:$0xf]
  %v237 = vld [vmem:[%s3 + $0x298] sm:$0xf]
  %v238 = vld [vmem:[%s3 + $0x29c] sm:$0xf]
  %v239 = vld [vmem:[%s3 + $0x2a0] sm:$0xf]
  %v240 = vld [vmem:[%s3 + $0x2a4] sm:$0xf]
  %v241 = vld [vmem:[%s3 + $0x2a8] sm:$0xf]
  %v242 = vld [vmem:[%s3 + $0x2ac] sm:$0xf]
  %v243 = vld [vmem:[%s3 + $0x2b0] sm:$0xf]
  %v244 = vld [vmem:[%s3 + $0x2b4] sm:$0xf]
  %v245 = vld [vmem:[%s3 + $0x2b8] sm:$0xf]
  %v246 = vld [vmem:[%s3 + $0x2bc] sm:$0xf]
  %v247 = vld [vmem:[%s3 + $0x2c0] sm:$0xf]
  %v248 = vld [vmem:[%s3 + $0x2c4] sm:$0xf]
  %v249 = vld [vmem:[%s3 + $0x2c8] sm:$0xf]
  %v250 = vld [vmem:[%s3 + $0x2cc] sm:$0xf]
  %v251 = vld [vmem:[%s3 + $0x2d0] sm:$0xf]
  %v252 = vld [vmem:[%s3 + $0x2d4] sm:$0xf]
  %v253 = vld [vmem:[%s3 + $0x2d8] sm:$0xf]
  %v254 = vld [vmem:[%s3 + $0x2dc] sm:$0xf]
  %v255 = vld [vmem:[%s3 + $0x2e0] sm:$0xf]
  %v256 = vld [vmem:[%s3 + $0x2e4] sm:$0xf]
  %v257 = vld [vmem:[%s3 + $0x2e8] sm:$0xf]
  %v258 = vld [vmem:[%s3 + $0x2ec] sm:$0xf]
  %v259 = vld [vmem:[%s3 + $0x2f0] sm:$0xf]
  %v260 = vld [vmem:[%s3 + $0x2f4] sm:$0xf]
  %v261 = vld [vmem:[%s3 + $0x2f8] sm:$0xf]
  %v262 = vld [vmem:[%s3 + $0x2fc] sm:$0xf]
  %v263 = vld [vmem:[%s3 + $0x300] sm:$0xf]
  %v264 = vld [vmem:[%s3 + $0x304] sm:$0xf]
  %v265 = vld [vmem:[%s3 + $0x308] sm:$0xf]
  %v266 = vld [vmem:[%s3 + $0x30c] sm:$0xf]
  %v267 = vld [vmem:[%s3 + $0x310] sm:$0xf]
  %v268 = vld [vmem:[%s3 + $0x314] sm:$0xf]
  %v269 = vld [vmem:[%s3 + $0x318] sm:$0xf]
  %v270 = vld [vmem:[%s3 + $0x31c] sm:$0xf]
  %v271 = vld [vmem:[%s3 + $0x320] sm:$0xf]
  %v272 = vld [vmem:[%s3 + $0x324] sm:$0xf]
  %v273 = vld [vmem:[%s3 + $0x328] sm:$0xf]
  %v274 = vld [vmem:[%s3 + $0x32c] sm:$0xf]
  %v275 = vld [vmem:[%s3 + $0x330] sm:$0xf]
  %v276 = vld [vmem:[%s3 + $0x334] sm:$0xf]
  %v277 = vld [vmem:[%s3 + $0x338] sm:$0xf]
  %v278 = vld [vmem:[%s3 + $0x33c] sm:$0xf]
  %v279 = vld [vmem:[%s3 + $0x340] sm:$0xf]
  %v280 = vld [vmem:[%s3 + $0x344] sm:$0xf]
  %v281 = vld [vmem:[%s3 + $0x348] sm:$0xf]
  %v282 = vld [vmem:[%s3 + $0x34c] sm:$0xf]
  %v283 = vld [vmem:[%s3 + $0x350] sm:$0xf]
  %v284 = vld [vmem:[%s3 + $0x354] sm:$0xf]
  %v285 = vld [vmem:[%s3 + $0x358] sm:$0xf]
  %v286 = vld [vmem:[%s3 + $0x35c] sm:$0xf]
  %v287 = vld [vmem:[%s3 + $0x360] sm:$0xf]
  %v288 = vld [vmem:[%s3 + $0x364] sm:$0xf]
  %v289 = vld [vmem:[%s3 + $0x368] sm:$0xf]
  %v290 = vld [vmem:[%s3 + $0x36c] sm:$0xf]
  %v291 = vld [vmem:[%s3 + $0x370] sm:$0xf]
  %v292 = vld [vmem:[%s3 + $0x374] sm:$0xf]
  %v293 = vld [vmem:[%s3 + $0x378] sm:$0xf]
  %v294 = vld [vmem:[%s3 + $0x37c] sm:$0xf]
  %v295 = vld [vmem:[%s3 + $0x380] sm:$0xf]
  %v296 = vld [vmem:[%s3 + $0x384] sm:$0xf]
  %v297 = vld [vmem:[%s3 + $0x388] sm:$0xf]
  %v298 = vld [vmem:[%s3 + $0x38c] sm:$0xf]
  %v299 = vld [vmem:[%s3 + $0x390] sm:$0xf]
  %v300 = vld [vmem:[%s3 + $0x394] sm:$0xf]
  %v301 = vld [vmem:[%s3 + $0x398] sm:$0xf]
  %v302 = vld [vmem:[%s3 + $0x39c] sm:$0xf]
  %v303 = vld [vmem:[%s3 + $0x3a0] sm:$0xf]
  %v304 = vld [vmem:[%s3 + $0x3a4] sm:$0xf]
  %v305 = vld [vmem:[%s3 + $0x3a8] sm:$0xf]
  %v306 = vld [vmem:[%s3 + $0x3ac] sm:$0xf]
  %v307 = vld [vmem:[%s3 + $0x3b0] sm:$0xf]
  %v308 = vld [vmem:[%s3 + $0x3b4] sm:$0xf]
  %v309 = vld [vmem:[%s3 + $0x3b8] sm:$0xf]
  %v310 = vld [vmem:[%s3 + $0x3bc] sm:$0xf]
  %v311 = vld [vmem:[%s3 + $0x3c0] sm:$0xf]
  %v312 = vld [vmem:[%s3 + $0x3c4] sm:$0xf]
  %v313 = vld [vmem:[%s3 + $0x3c8] sm:$0xf]
  %v314 = vld [vmem:[%s3 + $0x3cc] sm:$0xf]
  %v315 = vld [vmem:[%s3 + $0x3d0] sm:$0xf]
  %v316 = vld [vmem:[%s3 + $0x3d4] sm:$0xf]
  %v317 = vld [vmem:[%s3 + $0x3d8] sm:$0xf]
  %v318 = vld [vmem:[%s3 + $0x3dc] sm:$0xf]
  %v319 = vld [vmem:[%s3 + $0x3e0] sm:$0xf]
  %v320 = vld [vmem:[%s3 + $0x3e4] sm:$0xf]
  %v321 = vld [vmem:[%s3 + $0x3e8] sm:$0xf]
  %v322 = vld [vmem:[%s3 + $0x3ec] sm:$0xf]
  %v323 = vld [vmem:[%s3 + $0x3f0] sm:$0xf]
  %v324 = vld [vmem:[%s3 + $0x3f4] sm:$0xf]
  %v325 = vld [vmem:[%s3 + $0x3f8] sm:$0xf]
  %v326 = vld [vmem:[%s3 + $0x3fc] sm:$0xf]
  %v327 = vld [vmem:[%s4] sm:$0x1]
  %v329 = vlaneseq
  %v330 = vshrl.u32 %v329, 7
  %v331 = vsub.s32 0, %v330
  %v332 = vrot.slane %v327, %v331
  %v342 = vunpack.c.l.b16 %v63
  %v343 = vunpack.c.h.b16 %v63
  %v344 = vunpack.c.l.b16 %v64
  %v345 = vunpack.c.h.b16 %v64
  %v346 = vunpack.c.l.b16 %v65
  %v347 = vunpack.c.h.b16 %v65
  %v348 = vunpack.c.l.b16 %v66
  %v349 = vunpack.c.h.b16 %v66
  %v350 = vunpack.c.l.b16 %v67
  %v351 = vunpack.c.h.b16 %v67
  %v352 = vunpack.c.l.b16 %v68
  %v353 = vunpack.c.h.b16 %v68
  %v354 = vunpack.c.l.b16 %v69
  %v355 = vunpack.c.h.b16 %v69
  %v356 = vunpack.c.l.b16 %v70
  %v357 = vunpack.c.h.b16 %v70
  %v358 = vpack.c.b16 %v342, %v342
  %v359 = vpack.c.b16 %v343, %v343
  %v360 = vpack.c.b16 %v344, %v344
  %v361 = vpack.c.b16 %v345, %v345
  %v362 = vpack.c.b16 %v346, %v346
  %v363 = vpack.c.b16 %v347, %v347
  %v364 = vpack.c.b16 %v348, %v348
  %v365 = vpack.c.b16 %v349, %v349
  %v366 = vpack.c.b16 %v350, %v350
  %v367 = vpack.c.b16 %v351, %v351
  %v368 = vpack.c.b16 %v352, %v352
  %v369 = vpack.c.b16 %v353, %v353
  %v370 = vpack.c.b16 %v354, %v354
  %v371 = vpack.c.b16 %v355, %v355
  %v372 = vpack.c.b16 %v356, %v356
  %v373 = vpack.c.b16 %v357, %v357
  %v646 = vunpack.c.l.b16 %v71
  %v647 = vunpack.c.l.b16 %v72
  %v648 = vunpack.c.l.b16 %v73
  %v649 = vunpack.c.l.b16 %v74
  %v650 = vunpack.c.l.b16 %v75
  %v651 = vunpack.c.l.b16 %v76
  %v652 = vunpack.c.l.b16 %v77
  %v653 = vunpack.c.l.b16 %v78
  %v654 = vunpack.c.l.b16 %v79
  %v655 = vunpack.c.l.b16 %v80
  %v656 = vunpack.c.l.b16 %v81
  %v657 = vunpack.c.l.b16 %v82
  %v658 = vunpack.c.l.b16 %v83
  %v659 = vunpack.c.l.b16 %v84
  %v660 = vunpack.c.l.b16 %v85
  %v661 = vunpack.c.l.b16 %v86
  %v662 = vunpack.c.l.b16 %v87
  %v663 = vunpack.c.l.b16 %v88
  %v664 = vunpack.c.l.b16 %v89
  %v665 = vunpack.c.l.b16 %v90
  %v666 = vunpack.c.l.b16 %v91
  %v667 = vunpack.c.l.b16 %v92
  %v668 = vunpack.c.l.b16 %v93
  %v669 = vunpack.c.l.b16 %v94
  %v670 = vunpack.c.l.b16 %v95
  %v671 = vunpack.c.l.b16 %v96
  %v672 = vunpack.c.l.b16 %v97
  %v673 = vunpack.c.l.b16 %v98
  %v674 = vunpack.c.l.b16 %v99
  %v675 = vunpack.c.l.b16 %v100
  %v676 = vunpack.c.l.b16 %v101
  %v677 = vunpack.c.l.b16 %v102
  %v678 = vunpack.c.l.b16 %v103
  %v679 = vunpack.c.l.b16 %v104
  %v680 = vunpack.c.l.b16 %v105
  %v681 = vunpack.c.l.b16 %v106
  %v682 = vunpack.c.l.b16 %v107
  %v683 = vunpack.c.l.b16 %v108
  %v684 = vunpack.c.l.b16 %v109
  %v685 = vunpack.c.l.b16 %v110
  %v686 = vunpack.c.l.b16 %v111
  %v687 = vunpack.c.l.b16 %v112
  %v688 = vunpack.c.l.b16 %v113
  %v689 = vunpack.c.l.b16 %v114
  %v690 = vunpack.c.l.b16 %v115
  %v691 = vunpack.c.l.b16 %v116
  %v692 = vunpack.c.l.b16 %v117
  %v693 = vunpack.c.l.b16 %v118
  %v694 = vunpack.c.l.b16 %v119
  %v695 = vunpack.c.l.b16 %v120
  %v696 = vunpack.c.l.b16 %v121
  %v697 = vunpack.c.l.b16 %v122
  %v698 = vunpack.c.l.b16 %v123
  %v699 = vunpack.c.l.b16 %v124
  %v700 = vunpack.c.l.b16 %v125
  %v701 = vunpack.c.l.b16 %v126
  %v702 = vunpack.c.l.b16 %v127
  %v703 = vunpack.c.l.b16 %v128
  %v704 = vunpack.c.l.b16 %v129
  %v705 = vunpack.c.l.b16 %v130
  %v706 = vunpack.c.l.b16 %v131
  %v707 = vunpack.c.l.b16 %v132
  %v708 = vunpack.c.l.b16 %v133
  %v709 = vunpack.c.l.b16 %v134
  %v710 = vunpack.c.l.b16 %v135
  %v711 = vunpack.c.l.b16 %v136
  %v712 = vunpack.c.l.b16 %v137
  %v713 = vunpack.c.l.b16 %v138
  %v714 = vunpack.c.l.b16 %v139
  %v715 = vunpack.c.l.b16 %v140
  %v716 = vunpack.c.l.b16 %v141
  %v717 = vunpack.c.l.b16 %v142
  %v718 = vunpack.c.l.b16 %v143
  %v719 = vunpack.c.l.b16 %v144
  %v720 = vunpack.c.l.b16 %v145
  %v721 = vunpack.c.l.b16 %v146
  %v722 = vunpack.c.l.b16 %v147
  %v723 = vunpack.c.l.b16 %v148
  %v724 = vunpack.c.l.b16 %v149
  %v725 = vunpack.c.l.b16 %v150
  %v726 = vunpack.c.l.b16 %v151
  %v727 = vunpack.c.l.b16 %v152
  %v728 = vunpack.c.l.b16 %v153
  %v729 = vunpack.c.l.b16 %v154
  %v730 = vunpack.c.l.b16 %v155
  %v731 = vunpack.c.l.b16 %v156
  %v732 = vunpack.c.l.b16 %v157
  %v733 = vunpack.c.l.b16 %v158
  %v734 = vunpack.c.l.b16 %v159
  %v735 = vunpack.c.l.b16 %v160
  %v736 = vunpack.c.l.b16 %v161
  %v737 = vunpack.c.l.b16 %v162
  %v738 = vunpack.c.l.b16 %v163
  %v739 = vunpack.c.l.b16 %v164
  %v740 = vunpack.c.l.b16 %v165
  %v741 = vunpack.c.l.b16 %v166
  %v742 = vunpack.c.l.b16 %v167
  %v743 = vunpack.c.l.b16 %v168
  %v744 = vunpack.c.l.b16 %v169
  %v745 = vunpack.c.l.b16 %v170
  %v746 = vunpack.c.l.b16 %v171
  %v747 = vunpack.c.l.b16 %v172
  %v748 = vunpack.c.l.b16 %v173
  %v749 = vunpack.c.l.b16 %v174
  %v750 = vunpack.c.l.b16 %v175
  %v751 = vunpack.c.l.b16 %v176
  %v752 = vunpack.c.l.b16 %v177
  %v753 = vunpack.c.l.b16 %v178
  %v754 = vunpack.c.l.b16 %v179
  %v755 = vunpack.c.l.b16 %v180
  %v756 = vunpack.c.l.b16 %v181
  %v757 = vunpack.c.l.b16 %v182
  %v758 = vunpack.c.l.b16 %v183
  %v759 = vunpack.c.l.b16 %v184
  %v760 = vunpack.c.l.b16 %v185
  %v761 = vunpack.c.l.b16 %v186
  %v762 = vunpack.c.l.b16 %v187
  %v763 = vunpack.c.l.b16 %v188
  %v764 = vunpack.c.l.b16 %v189
  %v765 = vunpack.c.l.b16 %v190
  %v766 = vunpack.c.l.b16 %v191
  %v767 = vunpack.c.l.b16 %v192
  %v768 = vunpack.c.l.b16 %v193
  %v769 = vunpack.c.l.b16 %v194
  %v770 = vunpack.c.l.b16 %v195
  %v771 = vunpack.c.l.b16 %v196
  %v772 = vunpack.c.l.b16 %v197
  %v773 = vunpack.c.l.b16 %v198
  %v774 = vunpack.c.l.b16 %v199
  %v775 = vunpack.c.l.b16 %v200
  %v776 = vunpack.c.l.b16 %v201
  %v777 = vunpack.c.l.b16 %v202
  %v778 = vunpack.c.l.b16 %v203
  %v779 = vunpack.c.l.b16 %v204
  %v780 = vunpack.c.l.b16 %v205
  %v781 = vunpack.c.l.b16 %v206
  %v782 = vunpack.c.l.b16 %v207
  %v783 = vunpack.c.l.b16 %v208
  %v784 = vunpack.c.l.b16 %v209
  %v785 = vunpack.c.l.b16 %v210
  %v786 = vunpack.c.l.b16 %v211
  %v787 = vunpack.c.l.b16 %v212
  %v788 = vunpack.c.l.b16 %v213
  %v789 = vunpack.c.l.b16 %v214
  %v790 = vunpack.c.l.b16 %v215
  %v791 = vunpack.c.l.b16 %v216
  %v792 = vunpack.c.l.b16 %v217
  %v793 = vunpack.c.l.b16 %v218
  %v794 = vunpack.c.l.b16 %v219
  %v795 = vunpack.c.l.b16 %v220
  %v796 = vunpack.c.l.b16 %v221
  %v797 = vunpack.c.l.b16 %v222
  %v798 = vunpack.c.l.b16 %v223
  %v799 = vunpack.c.l.b16 %v224
  %v800 = vunpack.c.l.b16 %v225
  %v801 = vunpack.c.l.b16 %v226
  %v802 = vunpack.c.l.b16 %v227
  %v803 = vunpack.c.l.b16 %v228
  %v804 = vunpack.c.l.b16 %v229
  %v805 = vunpack.c.l.b16 %v230
  %v806 = vunpack.c.l.b16 %v231
  %v807 = vunpack.c.l.b16 %v232
  %v808 = vunpack.c.l.b16 %v233
  %v809 = vunpack.c.l.b16 %v234
  %v810 = vunpack.c.l.b16 %v235
  %v811 = vunpack.c.l.b16 %v236
  %v812 = vunpack.c.l.b16 %v237
  %v813 = vunpack.c.l.b16 %v238
  %v814 = vunpack.c.l.b16 %v239
  %v815 = vunpack.c.l.b16 %v240
  %v816 = vunpack.c.l.b16 %v241
  %v817 = vunpack.c.l.b16 %v242
  %v818 = vunpack.c.l.b16 %v243
  %v819 = vunpack.c.l.b16 %v244
  %v820 = vunpack.c.l.b16 %v245
  %v821 = vunpack.c.l.b16 %v246
  %v822 = vunpack.c.l.b16 %v247
  %v823 = vunpack.c.l.b16 %v248
  %v824 = vunpack.c.l.b16 %v249
  %v825 = vunpack.c.l.b16 %v250
  %v826 = vunpack.c.l.b16 %v251
  %v827 = vunpack.c.l.b16 %v252
  %v828 = vunpack.c.l.b16 %v253
  %v829 = vunpack.c.l.b16 %v254
  %v830 = vunpack.c.l.b16 %v255
  %v831 = vunpack.c.l.b16 %v256
  %v832 = vunpack.c.l.b16 %v257
  %v833 = vunpack.c.l.b16 %v258
  %v834 = vunpack.c.l.b16 %v259
  %v835 = vunpack.c.l.b16 %v260
  %v836 = vunpack.c.l.b16 %v261
  %v837 = vunpack.c.l.b16 %v262
  %v838 = vunpack.c.l.b16 %v263
  %v839 = vunpack.c.l.b16 %v264
  %v840 = vunpack.c.l.b16 %v265
  %v841 = vunpack.c.l.b16 %v266
  %v842 = vunpack.c.l.b16 %v267
  %v843 = vunpack.c.l.b16 %v268
  %v844 = vunpack.c.l.b16 %v269
  %v845 = vunpack.c.l.b16 %v270
  %v846 = vunpack.c.l.b16 %v271
  %v847 = vunpack.c.l.b16 %v272
  %v848 = vunpack.c.l.b16 %v273
  %v849 = vunpack.c.l.b16 %v274
  %v850 = vunpack.c.l.b16 %v275
  %v851 = vunpack.c.l.b16 %v276
  %v852 = vunpack.c.l.b16 %v277
  %v853 = vunpack.c.l.b16 %v278
  %v854 = vunpack.c.l.b16 %v279
  %v855 = vunpack.c.l.b16 %v280
  %v856 = vunpack.c.l.b16 %v281
  %v857 = vunpack.c.l.b16 %v282
  %v858 = vunpack.c.l.b16 %v283
  %v859 = vunpack.c.l.b16 %v284
  %v860 = vunpack.c.l.b16 %v285
  %v861 = vunpack.c.l.b16 %v286
  %v862 = vunpack.c.l.b16 %v287
  %v863 = vunpack.c.l.b16 %v288
  %v864 = vunpack.c.l.b16 %v289
  %v865 = vunpack.c.l.b16 %v290
  %v866 = vunpack.c.l.b16 %v291
  %v867 = vunpack.c.l.b16 %v292
  %v868 = vunpack.c.l.b16 %v293
  %v869 = vunpack.c.l.b16 %v294
  %v870 = vunpack.c.l.b16 %v295
  %v871 = vunpack.c.l.b16 %v296
  %v872 = vunpack.c.l.b16 %v297
  %v873 = vunpack.c.l.b16 %v298
  %v874 = vunpack.c.l.b16 %v299
  %v875 = vunpack.c.l.b16 %v300
  %v876 = vunpack.c.l.b16 %v301
  %v877 = vunpack.c.l.b16 %v302
  %v878 = vunpack.c.l.b16 %v303
  %v879 = vunpack.c.l.b16 %v304
  %v880 = vunpack.c.l.b16 %v305
  %v881 = vunpack.c.l.b16 %v306
  %v882 = vunpack.c.l.b16 %v307
  %v883 = vunpack.c.l.b16 %v308
  %v884 = vunpack.c.l.b16 %v309
  %v885 = vunpack.c.l.b16 %v310
  %v886 = vunpack.c.l.b16 %v311
  %v887 = vunpack.c.l.b16 %v312
  %v888 = vunpack.c.l.b16 %v313
  %v889 = vunpack.c.l.b16 %v314
  %v890 = vunpack.c.l.b16 %v315
  %v891 = vunpack.c.l.b16 %v316
  %v892 = vunpack.c.l.b16 %v317
  %v893 = vunpack.c.l.b16 %v318
  %v894 = vunpack.c.l.b16 %v319
  %v895 = vunpack.c.l.b16 %v320
  %v896 = vunpack.c.l.b16 %v321
  %v897 = vunpack.c.l.b16 %v322
  %v898 = vunpack.c.l.b16 %v323
  %v899 = vunpack.c.l.b16 %v324
  %v900 = vunpack.c.l.b16 %v325
  %v901 = vunpack.c.l.b16 %v326
  %v902 = vpack.c.b16 %v647, %v646
  %v903 = vpack.c.b16 %v649, %v648
  %v904 = vpack.c.b16 %v651, %v650
  %v905 = vpack.c.b16 %v653, %v652
  %v906 = vpack.c.b16 %v655, %v654
  %v907 = vpack.c.b16 %v657, %v656
  %v908 = vpack.c.b16 %v659, %v658
  %v909 = vpack.c.b16 %v661, %v660
  %v910 = vpack.c.b16 %v663, %v662
  %v911 = vpack.c.b16 %v665, %v664
  %v912 = vpack.c.b16 %v667, %v666
  %v913 = vpack.c.b16 %v669, %v668
  %v914 = vpack.c.b16 %v671, %v670
  %v915 = vpack.c.b16 %v673, %v672
  %v916 = vpack.c.b16 %v675, %v674
  %v917 = vpack.c.b16 %v677, %v676
  %v918 = vpack.c.b16 %v679, %v678
  %v919 = vpack.c.b16 %v681, %v680
  %v920 = vpack.c.b16 %v683, %v682
  %v921 = vpack.c.b16 %v685, %v684
  %v922 = vpack.c.b16 %v687, %v686
  %v923 = vpack.c.b16 %v689, %v688
  %v924 = vpack.c.b16 %v691, %v690
  %v925 = vpack.c.b16 %v693, %v692
  %v926 = vpack.c.b16 %v695, %v694
  %v927 = vpack.c.b16 %v697, %v696
  %v928 = vpack.c.b16 %v699, %v698
  %v929 = vpack.c.b16 %v701, %v700
  %v930 = vpack.c.b16 %v703, %v702
  %v931 = vpack.c.b16 %v705, %v704
  %v932 = vpack.c.b16 %v707, %v706
  %v933 = vpack.c.b16 %v709, %v708
  %v934 = vpack.c.b16 %v711, %v710
  %v935 = vpack.c.b16 %v713, %v712
  %v936 = vpack.c.b16 %v715, %v714
  %v937 = vpack.c.b16 %v717, %v716
  %v938 = vpack.c.b16 %v719, %v718
  %v939 = vpack.c.b16 %v721, %v720
  %v940 = vpack.c.b16 %v723, %v722
  %v941 = vpack.c.b16 %v725, %v724
  %v942 = vpack.c.b16 %v727, %v726
  %v943 = vpack.c.b16 %v729, %v728
  %v944 = vpack.c.b16 %v731, %v730
  %v945 = vpack.c.b16 %v733, %v732
  %v946 = vpack.c.b16 %v735, %v734
  %v947 = vpack.c.b16 %v737, %v736
  %v948 = vpack.c.b16 %v739, %v738
  %v949 = vpack.c.b16 %v741, %v740
  %v950 = vpack.c.b16 %v743, %v742
  %v951 = vpack.c.b16 %v745, %v744
  %v952 = vpack.c.b16 %v747, %v746
  %v953 = vpack.c.b16 %v749, %v748
  %v954 = vpack.c.b16 %v751, %v750
  %v955 = vpack.c.b16 %v753, %v752
  %v956 = vpack.c.b16 %v755, %v754
  %v957 = vpack.c.b16 %v757, %v756
  %v958 = vpack.c.b16 %v759, %v758
  %v959 = vpack.c.b16 %v761, %v760
  %v960 = vpack.c.b16 %v763, %v762
  %v961 = vpack.c.b16 %v765, %v764
  %v962 = vpack.c.b16 %v767, %v766
  %v963 = vpack.c.b16 %v769, %v768
  %v964 = vpack.c.b16 %v771, %v770
  %v965 = vpack.c.b16 %v773, %v772
  %v966 = vpack.c.b16 %v775, %v774
  %v967 = vpack.c.b16 %v777, %v776
  %v968 = vpack.c.b16 %v779, %v778
  %v969 = vpack.c.b16 %v781, %v780
  %v970 = vpack.c.b16 %v783, %v782
  %v971 = vpack.c.b16 %v785, %v784
  %v972 = vpack.c.b16 %v787, %v786
  %v973 = vpack.c.b16 %v789, %v788
  %v974 = vpack.c.b16 %v791, %v790
  %v975 = vpack.c.b16 %v793, %v792
  %v976 = vpack.c.b16 %v795, %v794
  %v977 = vpack.c.b16 %v797, %v796
  %v978 = vpack.c.b16 %v799, %v798
  %v979 = vpack.c.b16 %v801, %v800
  %v980 = vpack.c.b16 %v803, %v802
  %v981 = vpack.c.b16 %v805, %v804
  %v982 = vpack.c.b16 %v807, %v806
  %v983 = vpack.c.b16 %v809, %v808
  %v984 = vpack.c.b16 %v811, %v810
  %v985 = vpack.c.b16 %v813, %v812
  %v986 = vpack.c.b16 %v815, %v814
  %v987 = vpack.c.b16 %v817, %v816
  %v988 = vpack.c.b16 %v819, %v818
  %v989 = vpack.c.b16 %v821, %v820
  %v990 = vpack.c.b16 %v823, %v822
  %v991 = vpack.c.b16 %v825, %v824
  %v992 = vpack.c.b16 %v827, %v826
  %v993 = vpack.c.b16 %v829, %v828
  %v994 = vpack.c.b16 %v831, %v830
  %v995 = vpack.c.b16 %v833, %v832
  %v996 = vpack.c.b16 %v835, %v834
  %v997 = vpack.c.b16 %v837, %v836
  %v998 = vpack.c.b16 %v839, %v838
  %v999 = vpack.c.b16 %v841, %v840
  %v1000 = vpack.c.b16 %v843, %v842
  %v1001 = vpack.c.b16 %v845, %v844
  %v1002 = vpack.c.b16 %v847, %v846
  %v1003 = vpack.c.b16 %v849, %v848
  %v1004 = vpack.c.b16 %v851, %v850
  %v1005 = vpack.c.b16 %v853, %v852
  %v1006 = vpack.c.b16 %v855, %v854
  %v1007 = vpack.c.b16 %v857, %v856
  %v1008 = vpack.c.b16 %v859, %v858
  %v1009 = vpack.c.b16 %v861, %v860
  %v1010 = vpack.c.b16 %v863, %v862
  %v1011 = vpack.c.b16 %v865, %v864
  %v1012 = vpack.c.b16 %v867, %v866
  %v1013 = vpack.c.b16 %v869, %v868
  %v1014 = vpack.c.b16 %v871, %v870
  %v1015 = vpack.c.b16 %v873, %v872
  %v1016 = vpack.c.b16 %v875, %v874
  %v1017 = vpack.c.b16 %v877, %v876
  %v1018 = vpack.c.b16 %v879, %v878
  %v1019 = vpack.c.b16 %v881, %v880
  %v1020 = vpack.c.b16 %v883, %v882
  %v1021 = vpack.c.b16 %v885, %v884
  %v1022 = vpack.c.b16 %v887, %v886
  %v1023 = vpack.c.b16 %v889, %v888
  %v1024 = vpack.c.b16 %v891, %v890
  %v1025 = vpack.c.b16 %v893, %v892
  %v1026 = vpack.c.b16 %v895, %v894
  %v1027 = vpack.c.b16 %v897, %v896
  %v1028 = vpack.c.b16 %v899, %v898
  %v1029 = vpack.c.b16 %v901, %v900
  %1158 = vmatprep.subr.bf16.mxu0 0
  %1159 = vmatpush1.bf16.msra.mxu0 %v902
  %1160 = vmatprep.subr.bf16.mxu0 0
  %1161 = vmatpush1.bf16.msra.mxu0 %v903
  %1162 = vmatprep.subr.bf16.mxu0 0
  %1163 = vmatpush1.bf16.msra.mxu0 %v904
  %1164 = vmatprep.subr.bf16.mxu0 0
  %1165 = vmatpush1.bf16.msra.mxu0 %v905
  %1166 = vmatprep.subr.bf16.mxu0 0
  %1167 = vmatpush1.bf16.msra.mxu0 %v906
  %1168 = vmatprep.subr.bf16.mxu0 0
  %1169 = vmatpush1.bf16.msra.mxu0 %v907
  %1170 = vmatprep.subr.bf16.mxu0 0
  %1171 = vmatpush1.bf16.msra.mxu0 %v908
  %1172 = vmatprep.subr.bf16.mxu0 0
  %1173 = vmatpush1.bf16.msra.mxu0 %v909
  %1174 = vmatprep.subr.bf16.mxu0 0
  %1175 = vmatpush1.bf16.msra.mxu0 %v910
  %1176 = vmatprep.subr.bf16.mxu0 0
  %1177 = vmatpush1.bf16.msra.mxu0 %v911
  %1178 = vmatprep.subr.bf16.mxu0 0
  %1179 = vmatpush1.bf16.msra.mxu0 %v912
  %1180 = vmatprep.subr.bf16.mxu0 0
  %1181 = vmatpush1.bf16.msra.mxu0 %v913
  %1182 = vmatprep.subr.bf16.mxu0 0
  %1183 = vmatpush1.bf16.msra.mxu0 %v914
  %1184 = vmatprep.subr.bf16.mxu0 0
  %1185 = vmatpush1.bf16.msra.mxu0 %v915
  %1186 = vmatprep.subr.bf16.mxu0 0
  %1187 = vmatpush1.bf16.msra.mxu0 %v916
  %1188 = vmatprep.subr.bf16.mxu0 0
  %1189 = vmatpush1.bf16.msra.mxu0 %v917
  %1190 = vmatprep.mubr.bf16.mxu0 %v359
  %1191 = vmatmul.mubr.bf16.gmra.mrb[0].mxu0 %v358
  %v1192 = vpop.f32.mrb[0].mxu0
  %v1193 = vadd.f32 %v332, %v1192
  %v1194 = vpop.f32.mrb[0].mxu0
  %v1195 = vpop.f32.mrb[0].mxu0
  %v1196 = vpop.f32.mrb[0].mxu0
  %1197 = vdwg.mxu0
  %1198 = vmatprep.subr.bf16.mxu0 0
  %1199 = vmatpush1.bf16.msra.mxu0 %v918
  %1200 = vmatprep.subr.bf16.mxu0 0
  %1201 = vmatpush1.bf16.msra.mxu0 %v919
  %1202 = vmatprep.subr.bf16.mxu0 0
  %1203 = vmatpush1.bf16.msra.mxu0 %v920
  %1204 = vmatprep.subr.bf16.mxu0 0
  %1205 = vmatpush1.bf16.msra.mxu0 %v921
  %1206 = vmatprep.subr.bf16.mxu0 0
  %1207 = vmatpush1.bf16.msra.mxu0 %v922
  %1208 = vmatprep.subr.bf16.mxu0 0
  %1209 = vmatpush1.bf16.msra.mxu0 %v923
  %1210 = vmatprep.subr.bf16.mxu0 0
  %1211 = vmatpush1.bf16.msra.mxu0 %v924
  %1212 = vmatprep.subr.bf16.mxu0 0
  %1213 = vmatpush1.bf16.msra.mxu0 %v925
  %1214 = vmatprep.subr.bf16.mxu0 0
  %1215 = vmatpush1.bf16.msra.mxu0 %v926
  %1216 = vmatprep.subr.bf16.mxu0 0
  %1217 = vmatpush1.bf16.msra.mxu0 %v927
  %1218 = vmatprep.subr.bf16.mxu0 0
  %1219 = vmatpush1.bf16.msra.mxu0 %v928
  %1220 = vmatprep.subr.bf16.mxu0 0
  %1221 = vmatpush1.bf16.msra.mxu0 %v929
  %1222 = vmatprep.subr.bf16.mxu0 0
  %1223 = vmatpush1.bf16.msra.mxu0 %v930
  %1224 = vmatprep.subr.bf16.mxu0 0
  %1225 = vmatpush1.bf16.msra.mxu0 %v931
  %1226 = vmatprep.subr.bf16.mxu0 0
  %1227 = vmatpush1.bf16.msra.mxu0 %v932
  %1228 = vmatprep.subr.bf16.mxu0 0
  %1229 = vmatpush1.bf16.msra.mxu0 %v933
  %1230 = vmatprep.mubr.bf16.mxu0 %v361
  %1231 = vmatmul.mubr.bf16.gmra.mrb[0].mxu0 %v360
  %v1232 = vpop.f32.mrb[0].mxu0
  %v1233 = vadd.f32 %v1193, %v1232
  %v1234 = vpop.f32.mrb[0].mxu0
  %v1235 = vpop.f32.mrb[0].mxu0
  %v1236 = vpop.f32.mrb[0].mxu0
  %1237 = vdwg.mxu0
  %1238 = vmatprep.subr.bf16.mxu0 0
  %1239 = vmatpush1.bf16.msra.mxu0 %v934
  %1240 = vmatprep.subr.bf16.mxu0 0
  %1241 = vmatpush1.bf16.msra.mxu0 %v935
  %1242 = vmatprep.subr.bf16.mxu0 0
  %1243 = vmatpush1.bf16.msra.mxu0 %v936
  %1244 = vmatprep.subr.bf16.mxu0 0
  %1245 = vmatpush1.bf16.msra.mxu0 %v937
  %1246 = vmatprep.subr.bf16.mxu0 0
  %1247 = vmatpush1.bf16.msra.mxu0 %v938
  %1248 = vmatprep.subr.bf16.mxu0 0
  %1249 = vmatpush1.bf16.msra.mxu0 %v939
  %1250 = vmatprep.subr.bf16.mxu0 0
  %1251 = vmatpush1.bf16.msra.mxu0 %v940
  %1252 = vmatprep.subr.bf16.mxu0 0
  %1253 = vmatpush1.bf16.msra.mxu0 %v941
  %1254 = vmatprep.subr.bf16.mxu0 0
  %1255 = vmatpush1.bf16.msra.mxu0 %v942
  %1256 = vmatprep.subr.bf16.mxu0 0
  %1257 = vmatpush1.bf16.msra.mxu0 %v943
  %1258 = vmatprep.subr.bf16.mxu0 0
  %1259 = vmatpush1.bf16.msra.mxu0 %v944
  %1260 = vmatprep.subr.bf16.mxu0 0
  %1261 = vmatpush1.bf16.msra.mxu0 %v945
  %1262 = vmatprep.subr.bf16.mxu0 0
  %1263 = vmatpush1.bf16.msra.mxu0 %v946
  %1264 = vmatprep.subr.bf16.mxu0 0
  %1265 = vmatpush1.bf16.msra.mxu0 %v947
  %1266 = vmatprep.subr.bf16.mxu0 0
  %1267 = vmatpush1.bf16.msra.mxu0 %v948
  %1268 = vmatprep.subr.bf16.mxu0 0
  %1269 = vmatpush1.bf16.msra.mxu0 %v949
  %1270 = vmatprep.mubr.bf16.mxu0 %v363
  %1271 = vmatmul.mubr.bf16.gmra.mrb[0].mxu0 %v362
  %v1272 = vpop.f32.mrb[0].mxu0
  %v1273 = vadd.f32 %v1233, %v1272
  %v1274 = vpop.f32.mrb[0].mxu0
  %v1275 = vpop.f32.mrb[0].mxu0
  %v1276 = vpop.f32.mrb[0].mxu0
  %1277 = vdwg.mxu0
  %1278 = vmatprep.subr.bf16.mxu0 0
  %1279 = vmatpush1.bf16.msra.mxu0 %v950
  %1280 = vmatprep.subr.bf16.mxu0 0
  %1281 = vmatpush1.bf16.msra.mxu0 %v951
  %1282 = vmatprep.subr.bf16.mxu0 0
  %1283 = vmatpush1.bf16.msra.mxu0 %v952
  %1284 = vmatprep.subr.bf16.mxu0 0
  %1285 = vmatpush1.bf16.msra.mxu0 %v953
  %1286 = vmatprep.subr.bf16.mxu0 0
  %1287 = vmatpush1.bf16.msra.mxu0 %v954
  %1288 = vmatprep.subr.bf16.mxu0 0
  %1289 = vmatpush1.bf16.msra.mxu0 %v955
  %1290 = vmatprep.subr.bf16.mxu0 0
  %1291 = vmatpush1.bf16.msra.mxu0 %v956
  %1292 = vmatprep.subr.bf16.mxu0 0
  %1293 = vmatpush1.bf16.msra.mxu0 %v957
  %1294 = vmatprep.subr.bf16.mxu0 0
  %1295 = vmatpush1.bf16.msra.mxu0 %v958
  %1296 = vmatprep.subr.bf16.mxu0 0
  %1297 = vmatpush1.bf16.msra.mxu0 %v959
  %1298 = vmatprep.subr.bf16.mxu0 0
  %1299 = vmatpush1.bf16.msra.mxu0 %v960
  %1300 = vmatprep.subr.bf16.mxu0 0
  %1301 = vmatpush1.bf16.msra.mxu0 %v961
  %1302 = vmatprep.subr.bf16.mxu0 0
  %1303 = vmatpush1.bf16.msra.mxu0 %v962
  %1304 = vmatprep.subr.bf16.mxu0 0
  %1305 = vmatpush1.bf16.msra.mxu0 %v963
  %1306 = vmatprep.subr.bf16.mxu0 0
  %1307 = vmatpush1.bf16.msra.mxu0 %v964
  %1308 = vmatprep.subr.bf16.mxu0 0
  %1309 = vmatpush1.bf16.msra.mxu0 %v965
  %1310 = vmatprep.mubr.bf16.mxu0 %v365
  %1311 = vmatmul.mubr.bf16.gmra.mrb[0].mxu0 %v364
  %v1312 = vpop.f32.mrb[0].mxu0
  %v1313 = vadd.f32 %v1273, %v1312
  %v1314 = vpop.f32.mrb[0].mxu0
  %v1315 = vpop.f32.mrb[0].mxu0
  %v1316 = vpop.f32.mrb[0].mxu0
  %1317 = vdwg.mxu0
  %1318 = vmatprep.subr.bf16.mxu0 0
  %1319 = vmatpush1.bf16.msra.mxu0 %v966
  %1320 = vmatprep.subr.bf16.mxu0 0
  %1321 = vmatpush1.bf16.msra.mxu0 %v967
  %1322 = vmatprep.subr.bf16.mxu0 0
  %1323 = vmatpush1.bf16.msra.mxu0 %v968
  %1324 = vmatprep.subr.bf16.mxu0 0
  %1325 = vmatpush1.bf16.msra.mxu0 %v969
  %1326 = vmatprep.subr.bf16.mxu0 0
  %1327 = vmatpush1.bf16.msra.mxu0 %v970
  %1328 = vmatprep.subr.bf16.mxu0 0
  %1329 = vmatpush1.bf16.msra.mxu0 %v971
  %1330 = vmatprep.subr.bf16.mxu0 0
  %1331 = vmatpush1.bf16.msra.mxu0 %v972
  %1332 = vmatprep.subr.bf16.mxu0 0
  %1333 = vmatpush1.bf16.msra.mxu0 %v973
  %1334 = vmatprep.subr.bf16.mxu0 0
  %1335 = vmatpush1.bf16.msra.mxu0 %v974
  %1336 = vmatprep.subr.bf16.mxu0 0
  %1337 = vmatpush1.bf16.msra.mxu0 %v975
  %1338 = vmatprep.subr.bf16.mxu0 0
  %1339 = vmatpush1.bf16.msra.mxu0 %v976
  %1340 = vmatprep.subr.bf16.mxu0 0
  %1341 = vmatpush1.bf16.msra.mxu0 %v977
  %1342 = vmatprep.subr.bf16.mxu0 0
  %1343 = vmatpush1.bf16.msra.mxu0 %v978
  %1344 = vmatprep.subr.bf16.mxu0 0
  %1345 = vmatpush1.bf16.msra.mxu0 %v979
  %1346 = vmatprep.subr.bf16.mxu0 0
  %1347 = vmatpush1.bf16.msra.mxu0 %v980
  %1348 = vmatprep.subr.bf16.mxu0 0
  %1349 = vmatpush1.bf16.msra.mxu0 %v981
  %1350 = vmatprep.mubr.bf16.mxu0 %v367
  %1351 = vmatmul.mubr.bf16.gmra.mrb[0].mxu0 %v366
  %v1352 = vpop.f32.mrb[0].mxu0
  %v1353 = vadd.f32 %v1313, %v1352
  %v1354 = vpop.f32.mrb[0].mxu0
  %v1355 = vpop.f32.mrb[0].mxu0
  %v1356 = vpop.f32.mrb[0].mxu0
  %1357 = vdwg.mxu0
  %1358 = vmatprep.subr.bf16.mxu0 0
  %1359 = vmatpush1.bf16.msra.mxu0 %v982
  %1360 = vmatprep.subr.bf16.mxu0 0
  %1361 = vmatpush1.bf16.msra.mxu0 %v983
  %1362 = vmatprep.subr.bf16.mxu0 0
  %1363 = vmatpush1.bf16.msra.mxu0 %v984
  %1364 = vmatprep.subr.bf16.mxu0 0
  %1365 = vmatpush1.bf16.msra.mxu0 %v985
  %1366 = vmatprep.subr.bf16.mxu0 0
  %1367 = vmatpush1.bf16.msra.mxu0 %v986
  %1368 = vmatprep.subr.bf16.mxu0 0
  %1369 = vmatpush1.bf16.msra.mxu0 %v987
  %1370 = vmatprep.subr.bf16.mxu0 0
  %1371 = vmatpush1.bf16.msra.mxu0 %v988
  %1372 = vmatprep.subr.bf16.mxu0 0
  %1373 = vmatpush1.bf16.msra.mxu0 %v989
  %1374 = vmatprep.subr.bf16.mxu0 0
  %1375 = vmatpush1.bf16.msra.mxu0 %v990
  %1376 = vmatprep.subr.bf16.mxu0 0
  %1377 = vmatpush1.bf16.msra.mxu0 %v991
  %1378 = vmatprep.subr.bf16.mxu0 0
  %1379 = vmatpush1.bf16.msra.mxu0 %v992
  %1380 = vmatprep.subr.bf16.mxu0 0
  %1381 = vmatpush1.bf16.msra.mxu0 %v993
  %1382 = vmatprep.subr.bf16.mxu0 0
  %1383 = vmatpush1.bf16.msra.mxu0 %v994
  %1384 = vmatprep.subr.bf16.mxu0 0
  %1385 = vmatpush1.bf16.msra.mxu0 %v995
  %1386 = vmatprep.subr.bf16.mxu0 0
  %1387 = vmatpush1.bf16.msra.mxu0 %v996
  %1388 = vmatprep.subr.bf16.mxu0 0
  %1389 = vmatpush1.bf16.msra.mxu0 %v997
  %1390 = vmatprep.mubr.bf16.mxu0 %v369
  %1391 = vmatmul.mubr.bf16.gmra.mrb[0].mxu0 %v368
  %v1392 = vpop.f32.mrb[0].mxu0
  %v1393 = vadd.f32 %v1353, %v1392
  %v1394 = vpop.f32.mrb[0].mxu0
  %v1395 = vpop.f32.mrb[0].mxu0
  %v1396 = vpop.f32.mrb[0].mxu0
  %1397 = vdwg.mxu0
  %1398 = vmatprep.subr.bf16.mxu0 0
  %1399 = vmatpush1.bf16.msra.mxu0 %v998
  %1400 = vmatprep.subr.bf16.mxu0 0
  %1401 = vmatpush1.bf16.msra.mxu0 %v999
  %1402 = vmatprep.subr.bf16.mxu0 0
  %1403 = vmatpush1.bf16.msra.mxu0 %v1000
  %1404 = vmatprep.subr.bf16.mxu0 0
  %1405 = vmatpush1.bf16.msra.mxu0 %v1001
  %1406 = vmatprep.subr.bf16.mxu0 0
  %1407 = vmatpush1.bf16.msra.mxu0 %v1002
  %1408 = vmatprep.subr.bf16.mxu0 0
  %1409 = vmatpush1.bf16.msra.mxu0 %v1003
  %1410 = vmatprep.subr.bf16.mxu0 0
  %1411 = vmatpush1.bf16.msra.mxu0 %v1004
  %1412 = vmatprep.subr.bf16.mxu0 0
  %1413 = vmatpush1.bf16.msra.mxu0 %v1005
  %1414 = vmatprep.subr.bf16.mxu0 0
  %1415 = vmatpush1.bf16.msra.mxu0 %v1006
  %1416 = vmatprep.subr.bf16.mxu0 0
  %1417 = vmatpush1.bf16.msra.mxu0 %v1007
  %1418 = vmatprep.subr.bf16.mxu0 0
  %1419 = vmatpush1.bf16.msra.mxu0 %v1008
  %1420 = vmatprep.subr.bf16.mxu0 0
  %1421 = vmatpush1.bf16.msra.mxu0 %v1009
  %1422 = vmatprep.subr.bf16.mxu0 0
  %1423 = vmatpush1.bf16.msra.mxu0 %v1010
  %1424 = vmatprep.subr.bf16.mxu0 0
  %1425 = vmatpush1.bf16.msra.mxu0 %v1011
  %1426 = vmatprep.subr.bf16.mxu0 0
  %1427 = vmatpush1.bf16.msra.mxu0 %v1012
  %1428 = vmatprep.subr.bf16.mxu0 0
  %1429 = vmatpush1.bf16.msra.mxu0 %v1013
  %1430 = vmatprep.mubr.bf16.mxu0 %v371
  %1431 = vmatmul.mubr.bf16.gmra.mrb[0].mxu0 %v370
  %v1432 = vpop.f32.mrb[0].mxu0
  %v1433 = vadd.f32 %v1393, %v1432
  %v1434 = vpop.f32.mrb[0].mxu0
  %v1435 = vpop.f32.mrb[0].mxu0
  %v1436 = vpop.f32.mrb[0].mxu0
  %1437 = vdwg.mxu0
  %1438 = vmatprep.subr.bf16.mxu0 0
  %1439 = vmatpush1.bf16.msra.mxu0 %v1014
  %1440 = vmatprep.subr.bf16.mxu0 0
  %1441 = vmatpush1.bf16.msra.mxu0 %v1015
  %1442 = vmatprep.subr.bf16.mxu0 0
  %1443 = vmatpush1.bf16.msra.mxu0 %v1016
  %1444 = vmatprep.subr.bf16.mxu0 0
  %1445 = vmatpush1.bf16.msra.mxu0 %v1017
  %1446 = vmatprep.subr.bf16.mxu0 0
  %1447 = vmatpush1.bf16.msra.mxu0 %v1018
  %1448 = vmatprep.subr.bf16.mxu0 0
  %1449 = vmatpush1.bf16.msra.mxu0 %v1019
  %1450 = vmatprep.subr.bf16.mxu0 0
  %1451 = vmatpush1.bf16.msra.mxu0 %v1020
  %1452 = vmatprep.subr.bf16.mxu0 0
  %1453 = vmatpush1.bf16.msra.mxu0 %v1021
  %1454 = vmatprep.subr.bf16.mxu0 0
  %1455 = vmatpush1.bf16.msra.mxu0 %v1022
  %1456 = vmatprep.subr.bf16.mxu0 0
  %1457 = vmatpush1.bf16.msra.mxu0 %v1023
  %1458 = vmatprep.subr.bf16.mxu0 0
  %1459 = vmatpush1.bf16.msra.mxu0 %v1024
  %1460 = vmatprep.subr.bf16.mxu0 0
  %1461 = vmatpush1.bf16.msra.mxu0 %v1025
  %1462 = vmatprep.subr.bf16.mxu0 0
  %1463 = vmatpush1.bf16.msra.mxu0 %v1026
  %1464 = vmatprep.subr.bf16.mxu0 0
  %1465 = vmatpush1.bf16.msra.mxu0 %v1027
  %1466 = vmatprep.subr.bf16.mxu0 0
  %1467 = vmatpush1.bf16.msra.mxu0 %v1028
  %1468 = vmatprep.subr.bf16.mxu0 0
  %1469 = vmatpush1.bf16.msra.mxu0 %v1029
  %1470 = vmatprep.mubr.bf16.mxu0 %v373
  %1471 = vmatmul.mubr.bf16.gmra.mrb[0].mxu0 %v372
  %v1472 = vpop.f32.mrb[0].mxu0
  %v1473 = vadd.f32 %v1433, %v1472
  %v1474 = vpop.f32.mrb[0].mxu0
  %v1475 = vpop.f32.mrb[0].mxu0
  %v1476 = vpop.f32.mrb[0].mxu0
  %1477 = vdwg.mxu0
  %v1479 = vlaneseq
  %v1480 = vshrl.u32 %v1479, 7
  %v1481 = vsub.s32 0, %v1480
  %v1482 = vrot.slane %v62, %v1481
  %vm1484 = vcmask 261120
  %v1486 = vsel %vm1484, %v1473, 0
  %1488 = vmatprep.subr.mxu0 0.0
  %1489 = vmatpush1.msra.mxu0 %v58
  %1490 = vmatprep.subr.mxu0 0.0
  %1491 = vmatpush1.msra.mxu0 %v59
  %1492 = vmatprep.subr.mxu0 0.0
  %1493 = vmatpush1.msra.mxu0 %v60
  %1494 = vmatprep.subr.mxu0 0.0
  %1495 = vmatpush1.msra.mxu0 %v61
  %1496 = vmatprep.subr.mxu0 0.0
  %1497 = vmatpush1.msra.mxu0 0.0
  %1498 = vmatprep.subr.mxu0 0.0
  %1499 = vmatpush1.msra.mxu0 0.0
  %1500 = vmatprep.subr.mxu0 0.0
  %1501 = vmatpush1.msra.mxu0 0.0
  %1502 = vmatprep.subr.mxu0 0.0
  %1503 = vmatpush1.msra.mxu0 0.0
  %1504 = vmatprep.subr.mxu0 0.0
  %1505 = vmatpush1.msra.mxu0 0.0
  %1506 = vmatprep.subr.mxu0 0.0
  %1507 = vmatpush1.msra.mxu0 0.0
  %1508 = vmatprep.subr.mxu0 0.0
  %1509 = vmatpush1.msra.mxu0 0.0
  %1510 = vmatprep.subr.mxu0 0.0
  %1511 = vmatpush1.msra.mxu0 0.0
  %1512 = vmatprep.subr.mxu0 0.0
  %1513 = vmatpush1.msra.mxu0 0.0
  %1514 = vmatprep.subr.mxu0 0.0
  %1515 = vmatpush1.msra.mxu0 0.0
  %1516 = vmatprep.subr.mxu0 0.0
  %1517 = vmatpush1.msra.mxu0 0.0
  %1518 = vmatprep.subr.mxu0 0.0
  %1519 = vmatpush1.msra.mxu0 0.0
  %1520 = vmatprep.subr.mxu0 0.0
  %1521 = vmatpush1.msra.mxu0 0.0
  %1522 = vmatprep.subr.mxu0 0.0
  %1523 = vmatpush1.msra.mxu0 0.0
  %1524 = vmatprep.subr.mxu0 0.0
  %1525 = vmatpush1.msra.mxu0 0.0
  %1526 = vmatprep.subr.mxu0 0.0
  %1527 = vmatpush1.msra.mxu0 0.0
  %1528 = vmatprep.subr.mxu0 0.0
  %1529 = vmatpush1.msra.mxu0 0.0
  %1530 = vmatprep.subr.mxu0 0.0
  %1531 = vmatpush1.msra.mxu0 0.0
  %1532 = vmatprep.subr.mxu0 0.0
  %1533 = vmatpush1.msra.mxu0 0.0
  %1534 = vmatprep.subr.mxu0 0.0
  %1535 = vmatpush1.msra.mxu0 0.0
  %1536 = vmatprep.subr.mxu0 0.0
  %1537 = vmatpush1.msra.mxu0 0.0
  %1538 = vmatprep.subr.mxu0 0.0
  %1539 = vmatpush1.msra.mxu0 0.0
  %1540 = vmatprep.subr.mxu0 0.0
  %1541 = vmatpush1.msra.mxu0 0.0
  %1542 = vmatprep.subr.mxu0 0.0
  %1543 = vmatpush1.msra.mxu0 0.0
  %1544 = vmatprep.subr.mxu0 0.0
  %1545 = vmatpush1.msra.mxu0 0.0
  %1546 = vmatprep.subr.mxu0 0.0
  %1547 = vmatpush1.msra.mxu0 0.0
  %1548 = vmatprep.subr.mxu0 0.0
  %1549 = vmatpush1.msra.mxu0 0.0
  %1550 = vmatprep.subr.mxu0 0.0
  %1551 = vmatpush1.msra.mxu0 0.0
  %1552 = vmatprep.mubr.f32.mxu0 0.0
  %1553 = vmatmul.mubr.f32.gmra.mrb[0].mxu0 %v1486
  %v1554 = vpop.f32.mrb[0].mxu0
  %v1555 = vadd.f32 %v1482, %v1554
  %v1556 = vpop.f32.mrb[0].mxu0
  %1557 = vdwg.mxu0
  %v1558 = vld [vmem:[%s1] sm:$0xff]
  %v1559 = vld [vmem:[%s1 + $0x8] sm:$0xff]
  %v1560 = vld [vmem:[%s1 + $0x10] sm:$0xff]
  %v1561 = vld [vmem:[%s1 + $0x18] sm:$0xff]
  %v1562 = vld [vmem:[%s1 + $0x20] sm:$0xff]
  %v1563 = vld [vmem:[%s1 + $0x28] sm:$0xff]
  %v1564 = vld [vmem:[%s1 + $0x30] sm:$0xff]
  %v1566 = vsel %vm1484, %v1558, 0
  %v1569 = vsel %vm1484, %v1559, 0
  %v1572 = vsel %vm1484, %v1560, 0
  %v1575 = vsel %vm1484, %v1561, 0
  %v1578 = vsel %vm1484, %v1562, 0
  %v1581 = vsel %vm1484, %v1563, 0
  %v1584 = vsel %vm1484, %v1564, 0
  %1586 = vmatprep.subr.mxu0 0.0
  %1587 = vmatpush1.msra.mxu0 %v58
  %1588 = vmatprep.subr.mxu0 0.0
  %1589 = vmatpush1.msra.mxu0 %v59
  %1590 = vmatprep.subr.mxu0 0.0
  %1591 = vmatpush1.msra.mxu0 %v60
  %1592 = vmatprep.subr.mxu0 0.0
  %1593 = vmatpush1.msra.mxu0 %v61
  %1594 = vmatprep.subr.mxu0 0.0
  %1595 = vmatpush1.msra.mxu0 0.0
  %1596 = vmatprep.subr.mxu0 0.0
  %1597 = vmatpush1.msra.mxu0 0.0
  %1598 = vmatprep.subr.mxu0 0.0
  %1599 = vmatpush1.msra.mxu0 0.0
  %1600 = vmatprep.subr.mxu0 0.0
  %1601 = vmatpush1.msra.mxu0 0.0
  %1602 = vmatprep.subr.mxu0 0.0
  %1603 = vmatpush1.msra.mxu0 0.0
  %1604 = vmatprep.subr.mxu0 0.0
  %1605 = vmatpush1.msra.mxu0 0.0
  %1606 = vmatprep.subr.mxu0 0.0
  %1607 = vmatpush1.msra.mxu0 0.0
  %1608 = vmatprep.subr.mxu0 0.0
  %1609 = vmatpush1.msra.mxu0 0.0
  %1610 = vmatprep.subr.mxu0 0.0
  %1611 = vmatpush1.msra.mxu0 0.0
  %1612 = vmatprep.subr.mxu0 0.0
  %1613 = vmatpush1.msra.mxu0 0.0
  %1614 = vmatprep.subr.mxu0 0.0
  %1615 = vmatpush1.msra.mxu0 0.0
  %1616 = vmatprep.subr.mxu0 0.0
  %1617 = vmatpush1.msra.mxu0 0.0
  %1618 = vmatprep.subr.mxu0 0.0
  %1619 = vmatpush1.msra.mxu0 0.0
  %1620 = vmatprep.subr.mxu0 0.0
  %1621 = vmatpush1.msra.mxu0 0.0
  %1622 = vmatprep.subr.mxu0 0.0
  %1623 = vmatpush1.msra.mxu0 0.0
  %1624 = vmatprep.subr.mxu0 0.0
  %1625 = vmatpush1.msra.mxu0 0.0
  %1626 = vmatprep.subr.mxu0 0.0
  %1627 = vmatpush1.msra.mxu0 0.0
  %1628 = vmatprep.subr.mxu0 0.0
  %1629 = vmatpush1.msra.mxu0 0.0
  %1630 = vmatprep.subr.mxu0 0.0
  %1631 = vmatpush1.msra.mxu0 0.0
  %1632 = vmatprep.subr.mxu0 0.0
  %1633 = vmatpush1.msra.mxu0 0.0
  %1634 = vmatprep.subr.mxu0 0.0
  %1635 = vmatpush1.msra.mxu0 0.0
  %1636 = vmatprep.subr.mxu0 0.0
  %1637 = vmatpush1.msra.mxu0 0.0
  %1638 = vmatprep.subr.mxu0 0.0
  %1639 = vmatpush1.msra.mxu0 0.0
  %1640 = vmatprep.subr.mxu0 0.0
  %1641 = vmatpush1.msra.mxu0 0.0
  %1642 = vmatprep.subr.mxu0 0.0
  %1643 = vmatpush1.msra.mxu0 0.0
  %1644 = vmatprep.subr.mxu0 0.0
  %1645 = vmatpush1.msra.mxu0 0.0
  %1646 = vmatprep.subr.mxu0 0.0
  %1647 = vmatpush1.msra.mxu0 0.0
  %1648 = vmatprep.subr.mxu0 0.0
  %1649 = vmatpush1.msra.mxu0 0.0
  %1650 = vmatprep.mubr.f32.mxu0 0.0
  %1651 = vmatmul.mubr.f32.gmra.mrb[0].mxu0 %v1566
  %v1652 = vpop.f32.mrb[0].mxu0
  %v1653 = vadd.f32 %v1482, %v1652
  %v1654 = vpop.f32.mrb[0].mxu0
  %1655 = vmatprep.mubr.f32.mxu0 0.0
  %1656 = vmatmul.mubr.f32.gmra.mrb[0].mxu0 %v1569
  %v1657 = vpop.f32.mrb[0].mxu0
  %v1658 = vadd.f32 %v1482, %v1657
  %v1659 = vpop.f32.mrb[0].mxu0
  %1660 = vmatprep.mubr.f32.mxu0 0.0
  %1661 = vmatmul.mubr.f32.gmra.mrb[0].mxu0 %v1572
  %v1662 = vpop.f32.mrb[0].mxu0
  %v1663 = vadd.f32 %v1482, %v1662
  %v1664 = vpop.f32.mrb[0].mxu0
  %1665 = vmatprep.mubr.f32.mxu0 0.0
  %1666 = vmatmul.mubr.f32.gmra.mrb[0].mxu0 %v1575
  %v1667 = vpop.f32.mrb[0].mxu0
  %v1668 = vadd.f32 %v1482, %v1667
  %v1669 = vpop.f32.mrb[0].mxu0
  %1670 = vmatprep.mubr.f32.mxu0 0.0
  %1671 = vmatmul.mubr.f32.gmra.mrb[0].mxu0 %v1578
  %v1672 = vpop.f32.mrb[0].mxu0
  %v1673 = vadd.f32 %v1482, %v1672
  %v1674 = vpop.f32.mrb[0].mxu0
  %1675 = vmatprep.mubr.f32.mxu0 0.0
  %1676 = vmatmul.mubr.f32.gmra.mrb[0].mxu0 %v1581
  %v1677 = vpop.f32.mrb[0].mxu0
  %v1678 = vadd.f32 %v1482, %v1677
  %v1679 = vpop.f32.mrb[0].mxu0
  %1680 = vmatprep.mubr.f32.mxu0 0.0
  %1681 = vmatmul.mubr.f32.gmra.mrb[0].mxu0 %v1584
  %v1682 = vpop.f32.mrb[0].mxu0
  %v1683 = vadd.f32 %v1482, %v1682
  %v1684 = vpop.f32.mrb[0].mxu0
  %1685 = vdwg.mxu0
  %v1686 = vld [vmem:[%s2] sm:$0xff]
  %v1687 = vxor.u32 %v1555, 2147483648
  %v1688 = vmul.f32 %v1687, 1.442695
  %v1689 = vpow.pop %v1688
  %v1690 = vadd.f32 %v1689, 1.0
  %v1691 = vrcp.pop %v1690
  %v1692 = vmul.f32 1.0, %v1691
  %v1693 = vtanh.pop %v1555
  %v1694 = vmul.f32 %v1692, 0.0
  %1696 = vrot.lane.b32.xlu0 %v1693, 64
  %v1697 = vpop.permute.xlu0 %1696
  %v1699 = vmul.f32 %v1692, %v1697
  %1701 = vrot.lane.b32.xlu0 %v1699, 32
  %v1702 = vpop.permute.xlu0 %1701
  %v1704 = vadd.f32 %v1694, %v1702
  %v1705 = vtanh.pop %v1704
  %1707 = vrot.lane.b32.xlu0 %v1705, 64
  %v1708 = vpop.permute.xlu0 %1707
  %v1710 = vmul.f32 %v1692, %v1708
  %1712 = vset.pattern.permute.xlu0 0
  %1713 = vperm.xlu0 %1712, %v1686
  %v1714 = vpop.permute.xlu0 %1713
  %v1716 = vmul.f32 %v1714, %v1710
  %v1717 = vadd.f32 %v1716, 0.0
  %v1718 = vmul.f32 %v1714, %v1704
  %v1719 = vadd.f32 %v1718, 0.0
  %1721 = vrot.lane.b32.xlu0 %v1717, 32
  %v1722 = vpop.permute.xlu0 %1721
  %v1724 = vsel %vm1484, %v1722, 0.0
  %vm1725 = vcmask 523264
  %v1727 = vsel %vm1725, %v1724, 0
  %1729 = vmatprep.subr.mxu0 %v42
  %1730 = vmatpush1.msra.mxu0 %v41
  %1731 = vmatprep.subr.mxu0 %v44
  %1732 = vmatpush1.msra.mxu0 %v43
  %1733 = vmatprep.subr.mxu0 %v46
  %1734 = vmatpush1.msra.mxu0 %v45
  %1735 = vmatprep.subr.mxu0 %v48
  %1736 = vmatpush1.msra.mxu0 %v47
  %1737 = vmatprep.subr.mxu0 %v50
  %1738 = vmatpush1.msra.mxu0 %v49
  %1739 = vmatprep.subr.mxu0 %v52
  %1740 = vmatpush1.msra.mxu0 %v51
  %1741 = vmatprep.subr.mxu0 %v54
  %1742 = vmatpush1.msra.mxu0 %v53
  %1743 = vmatprep.subr.mxu0 %v56
  %1744 = vmatpush1.msra.mxu0 %v55
  %1745 = vmatprep.subr.mxu0 0.0
  %1746 = vmatpush1.msra.mxu0 0.0
  %1747 = vmatprep.subr.mxu0 0.0
  %1748 = vmatpush1.msra.mxu0 0.0
  %1749 = vmatprep.subr.mxu0 0.0
  %1750 = vmatpush1.msra.mxu0 0.0
  %1751 = vmatprep.subr.mxu0 0.0
  %1752 = vmatpush1.msra.mxu0 0.0
  %1753 = vmatprep.subr.mxu0 0.0
  %1754 = vmatpush1.msra.mxu0 0.0
  %1755 = vmatprep.subr.mxu0 0.0
  %1756 = vmatpush1.msra.mxu0 0.0
  %1757 = vmatprep.subr.mxu0 0.0
  %1758 = vmatpush1.msra.mxu0 0.0
  %1759 = vmatprep.subr.mxu0 0.0
  %1760 = vmatpush1.msra.mxu0 0.0
  %1761 = vmatprep.subr.mxu0 0.0
  %1762 = vmatpush1.msra.mxu0 0.0
  %1763 = vmatprep.subr.mxu0 0.0
  %1764 = vmatpush1.msra.mxu0 0.0
  %1765 = vmatprep.subr.mxu0 0.0
  %1766 = vmatpush1.msra.mxu0 0.0
  %1767 = vmatprep.subr.mxu0 0.0
  %1768 = vmatpush1.msra.mxu0 0.0
  %1769 = vmatprep.subr.mxu0 0.0
  %1770 = vmatpush1.msra.mxu0 0.0
  %1771 = vmatprep.subr.mxu0 0.0
  %1772 = vmatpush1.msra.mxu0 0.0
  %1773 = vmatprep.subr.mxu0 0.0
  %1774 = vmatpush1.msra.mxu0 0.0
  %1775 = vmatprep.subr.mxu0 0.0
  %1776 = vmatpush1.msra.mxu0 0.0
  %1777 = vmatprep.subr.mxu0 0.0
  %1778 = vmatpush1.msra.mxu0 0.0
  %1779 = vmatprep.subr.mxu0 0.0
  %1780 = vmatpush1.msra.mxu0 0.0
  %1781 = vmatprep.subr.mxu0 0.0
  %1782 = vmatpush1.msra.mxu0 0.0
  %1783 = vmatprep.subr.mxu0 0.0
  %1784 = vmatpush1.msra.mxu0 0.0
  %1785 = vmatprep.subr.mxu0 0.0
  %1786 = vmatpush1.msra.mxu0 0.0
  %1787 = vmatprep.subr.mxu0 0.0
  %1788 = vmatpush1.msra.mxu0 0.0
  %1789 = vmatprep.subr.mxu0 0.0
  %1790 = vmatpush1.msra.mxu0 0.0
  %1791 = vmatprep.subr.mxu0 0.0
  %1792 = vmatpush1.msra.mxu0 0.0
  %1793 = vmatprep.mubr.f32.mxu0 0.0
  %1794 = vmatmul.mubr.f32.gmra.mrb[0].mxu0 %v1727
  %v1795 = vpop.f32.mrb[0].mxu0
  %v1796 = vadd.f32 0.0, %v1795
  %v1797 = vpop.f32.mrb[0].mxu0
  %v1798 = vadd.f32 0.0, %v1797
  %1799 = vdwg.mxu0
  %v1801 = vlaneseq
  %v1802 = vshrl.u32 %v1801, 7
  %v1803 = vsub.s32 0, %v1802
  %v1804 = vrot.slane %v57, %v1803
  %v1806 = vadd.f32 %v1798, %v1804
  %v1807 = vadd.f32 %v1653, %v1796
  %v1808 = vxor.u32 %v1806, 2147483648
  %v1809 = vmul.f32 %v1808, 1.442695
  %v1810 = vpow.pop %v1809
  %v1811 = vadd.f32 %v1810, 1.0
  %v1812 = vrcp.pop %v1811
  %v1813 = vmul.f32 1.0, %v1812
  %v1814 = vtanh.pop %v1806
  %v1815 = vmul.f32 %v1813, 0.0
  %1817 = vrot.lane.b32.xlu0 %v1814, 64
  %v1818 = vpop.permute.xlu0 %1817
  %v1820 = vmul.f32 %v1813, %v1818
  %1822 = vrot.lane.b32.xlu0 %v1820, 32
  %v1823 = vpop.permute.xlu0 %1822
  %v1825 = vadd.f32 %v1815, %v1823
  %v1826 = vtanh.pop %v1825
  %1828 = vrot.lane.b32.xlu0 %v1826, 64
  %v1829 = vpop.permute.xlu0 %1828
  %v1831 = vmul.f32 %v1813, %v1829
  %v1832 = vmul.f32 %v1714, %v1831
  %v1833 = vadd.f32 %v1832, 0.0
  %v1834 = vmul.f32 %v1714, %v1825
  %v1835 = vadd.f32 %v1834, 0.0
  %s1836 = scalar_lea.vmem %s2, 8
  %v1837 = vld [vmem:[%s1836] sm:$0xff]
  %v1838 = vxor.u32 %v1807, 2147483648
  %v1839 = vmul.f32 %v1838, 1.442695
  %v1840 = vpow.pop %v1839
  %v1841 = vadd.f32 %v1840, 1.0
  %v1842 = vrcp.pop %v1841
  %v1843 = vmul.f32 1.0, %v1842
  %v1844 = vtanh.pop %v1807
  %v1845 = vmul.f32 %v1843, %v1719
  %1847 = vrot.lane.b32.xlu0 %v1844, 64
  %v1848 = vpop.permute.xlu0 %1847
  %v1850 = vmul.f32 %v1843, %v1848
  %1852 = vrot.lane.b32.xlu0 %v1850, 32
  %v1853 = vpop.permute.xlu0 %1852
  %v1855 = vadd.f32 %v1845, %v1853
  %v1856 = vtanh.pop %v1855
  %1858 = vrot.lane.b32.xlu0 %v1856, 64
  %v1859 = vpop.permute.xlu0 %1858
  %v1861 = vmul.f32 %v1843, %v1859
  %v1862 = vsub.f32 %v1861, %v1717
  %1864 = vset.pattern.permute.xlu0 0
  %1865 = vperm.xlu0 %1864, %v1837
  %v1866 = vpop.permute.xlu0 %1865
  %v1868 = vmul.f32 %v1866, %v1862
  %v1869 = vadd.f32 %v1717, %v1868
  %v1870 = vsub.f32 %v1855, %v1719
  %v1871 = vmul.f32 %v1866, %v1870
  %v1872 = vadd.f32 %v1719, %v1871
  %1874 = vrot.lane.b32.xlu0 %v1869, 32
  %v1875 = vpop.permute.xlu0 %1874
  %1878 = vrot.lane.b32.xlu0 %v1833, 64
  %v1879 = vpop.permute.xlu0 %1878
  %v1881 = vsel %vm1484, %v1875, %v1879
  %v1883 = vsel %vm1725, %v1881, 0
  %1885 = vmatprep.subr.mxu0 %v42
  %1886 = vmatpush1.msra.mxu0 %v41
  %1887 = vmatprep.subr.mxu0 %v44
  %1888 = vmatpush1.msra.mxu0 %v43
  %1889 = vmatprep.subr.mxu0 %v46
  %1890 = vmatpush1.msra.mxu0 %v45
  %1891 = vmatprep.subr.mxu0 %v48
  %1892 = vmatpush1.msra.mxu0 %v47
  %1893 = vmatprep.subr.mxu0 %v50
  %1894 = vmatpush1.msra.mxu0 %v49
  %1895 = vmatprep.subr.mxu0 %v52
  %1896 = vmatpush1.msra.mxu0 %v51
  %1897 = vmatprep.subr.mxu0 %v54
  %1898 = vmatpush1.msra.mxu0 %v53
  %1899 = vmatprep.subr.mxu0 %v56
  %1900 = vmatpush1.msra.mxu0 %v55
  %1901 = vmatprep.subr.mxu0 0.0
  %1902 = vmatpush1.msra.mxu0 0.0
  %1903 = vmatprep.subr.mxu0 0.0
  %1904 = vmatpush1.msra.mxu0 0.0
  %1905 = vmatprep.subr.mxu0 0.0
  %1906 = vmatpush1.msra.mxu0 0.0
  %1907 = vmatprep.subr.mxu0 0.0
  %1908 = vmatpush1.msra.mxu0 0.0
  %1909 = vmatprep.subr.mxu0 0.0
  %1910 = vmatpush1.msra.mxu0 0.0
  %1911 = vmatprep.subr.mxu0 0.0
  %1912 = vmatpush1.msra.mxu0 0.0
  %1913 = vmatprep.subr.mxu0 0.0
  %1914 = vmatpush1.msra.mxu0 0.0
  %1915 = vmatprep.subr.mxu0 0.0
  %1916 = vmatpush1.msra.mxu0 0.0
  %1917 = vmatprep.subr.mxu0 0.0
  %1918 = vmatpush1.msra.mxu0 0.0
  %1919 = vmatprep.subr.mxu0 0.0
  %1920 = vmatpush1.msra.mxu0 0.0
  %1921 = vmatprep.subr.mxu0 0.0
  %1922 = vmatpush1.msra.mxu0 0.0
  %1923 = vmatprep.subr.mxu0 0.0
  %1924 = vmatpush1.msra.mxu0 0.0
  %1925 = vmatprep.subr.mxu0 0.0
  %1926 = vmatpush1.msra.mxu0 0.0
  %1927 = vmatprep.subr.mxu0 0.0
  %1928 = vmatpush1.msra.mxu0 0.0
  %1929 = vmatprep.subr.mxu0 0.0
  %1930 = vmatpush1.msra.mxu0 0.0
  %1931 = vmatprep.subr.mxu0 0.0
  %1932 = vmatpush1.msra.mxu0 0.0
  %1933 = vmatprep.subr.mxu0 0.0
  %1934 = vmatpush1.msra.mxu0 0.0
  %1935 = vmatprep.subr.mxu0 0.0
  %1936 = vmatpush1.msra.mxu0 0.0
  %1937 = vmatprep.subr.mxu0 0.0
  %1938 = vmatpush1.msra.mxu0 0.0
  %1939 = vmatprep.subr.mxu0 0.0
  %1940 = vmatpush1.msra.mxu0 0.0
  %1941 = vmatprep.subr.mxu0 0.0
  %1942 = vmatpush1.msra.mxu0 0.0
  %1943 = vmatprep.subr.mxu0 0.0
  %1944 = vmatpush1.msra.mxu0 0.0
  %1945 = vmatprep.subr.mxu0 0.0
  %1946 = vmatpush1.msra.mxu0 0.0
  %1947 = vmatprep.subr.mxu0 0.0
  %1948 = vmatpush1.msra.mxu0 0.0
  %1949 = vmatprep.mubr.f32.mxu0 0.0
  %1950 = vmatmul.mubr.f32.gmra.mrb[0].mxu0 %v1883
  %v1951 = vpop.f32.mrb[0].mxu0
  %v1952 = vadd.f32 0.0, %v1951
  %v1953 = vpop.f32.mrb[0].mxu0
  %v1954 = vadd.f32 0.0, %v1953
  %1955 = vdwg.mxu0
  %v1956 = vadd.f32 %v1954, %v1804
  %v1957 = vadd.f32 %v1658, %v1952
  %v1958 = vxor.u32 %v1956, 2147483648
  %v1959 = vmul.f32 %v1958, 1.442695
  %v1960 = vpow.pop %v1959
  %v1961 = vadd.f32 %v1960, 1.0
  %v1962 = vrcp.pop %v1961
  %v1963 = vmul.f32 1.0, %v1962
  %v1964 = vtanh.pop %v1956
  %v1965 = vmul.f32 %v1963, %v1835
  %1967 = vrot.lane.b32.xlu0 %v1964, 64
  %v1968 = vpop.permute.xlu0 %1967
  %v1970 = vmul.f32 %v1963, %v1968
  %1972 = vrot.lane.b32.xlu0 %v1970, 32
  %v1973 = vpop.permute.xlu0 %1972
  %v1975 = vadd.f32 %v1965, %v1973
  %v1976 = vtanh.pop %v1975
  %1978 = vrot.lane.b32.xlu0 %v1976, 64
  %v1979 = vpop.permute.xlu0 %1978
  %v1981 = vmul.f32 %v1963, %v1979
  %v1982 = vsub.f32 %v1981, %v1833
  %v1983 = vmul.f32 %v1866, %v1982
  %v1984 = vadd.f32 %v1833, %v1983
  %v1985 = vsub.f32 %v1975, %v1835
  %v1986 = vmul.f32 %v1866, %v1985
  %v1987 = vadd.f32 %v1835, %v1986
  %s1988 = scalar_lea.vmem %s2, 16
  %v1989 = vld [vmem:[%s1988] sm:$0xff]
  %v1990 = vxor.u32 %v1957, 2147483648
  %v1991 = vmul.f32 %v1990, 1.442695
  %v1992 = vpow.pop %v1991
  %v1993 = vadd.f32 %v1992, 1.0
  %v1994 = vrcp.pop %v1993
  %v1995 = vmul.f32 1.0, %v1994
  %v1996 = vtanh.pop %v1957
  %v1997 = vmul.f32 %v1995, %v1872
  %1999 = vrot.lane.b32.xlu0 %v1996, 64
  %v2000 = vpop.permute.xlu0 %1999
  %v2002 = vmul.f32 %v1995, %v2000
  %2004 = vrot.lane.b32.xlu0 %v2002, 32
  %v2005 = vpop.permute.xlu0 %2004
  %v2007 = vadd.f32 %v1997, %v2005
  %v2008 = vtanh.pop %v2007
  %2010 = vrot.lane.b32.xlu0 %v2008, 64
  %v2011 = vpop.permute.xlu0 %2010
  %v2013 = vmul.f32 %v1995, %v2011
  %v2014 = vsub.f32 %v2013, %v1869
  %2016 = vset.pattern.permute.xlu0 0
  %2017 = vperm.xlu0 %2016, %v1989
  %v2018 = vpop.permute.xlu0 %2017
  %v2020 = vmul.f32 %v2018, %v2014
  %v2021 = vadd.f32 %v1869, %v2020
  %v2022 = vsub.f32 %v2007, %v1872
  %v2023 = vmul.f32 %v2018, %v2022
  %v2024 = vadd.f32 %v1872, %v2023
  %2026 = vrot.lane.b32.xlu0 %v2021, 32
  %v2027 = vpop.permute.xlu0 %2026
  %2030 = vrot.lane.b32.xlu0 %v1984, 64
  %v2031 = vpop.permute.xlu0 %2030
  %v2033 = vsel %vm1484, %v2027, %v2031
  %v2035 = vsel %vm1725, %v2033, 0
  %2037 = vmatprep.subr.mxu0 %v42
  %2038 = vmatpush1.msra.mxu0 %v41
  %2039 = vmatprep.subr.mxu0 %v44
  %2040 = vmatpush1.msra.mxu0 %v43
  %2041 = vmatprep.subr.mxu0 %v46
  %2042 = vmatpush1.msra.mxu0 %v45
  %2043 = vmatprep.subr.mxu0 %v48
  %2044 = vmatpush1.msra.mxu0 %v47
  %2045 = vmatprep.subr.mxu0 %v50
  %2046 = vmatpush1.msra.mxu0 %v49
  %2047 = vmatprep.subr.mxu0 %v52
  %2048 = vmatpush1.msra.mxu0 %v51
  %2049 = vmatprep.subr.mxu0 %v54
  %2050 = vmatpush1.msra.mxu0 %v53
  %2051 = vmatprep.subr.mxu0 %v56
  %2052 = vmatpush1.msra.mxu0 %v55
  %2053 = vmatprep.subr.mxu0 0.0
  %2054 = vmatpush1.msra.mxu0 0.0
  %2055 = vmatprep.subr.mxu0 0.0
  %2056 = vmatpush1.msra.mxu0 0.0
  %2057 = vmatprep.subr.mxu0 0.0
  %2058 = vmatpush1.msra.mxu0 0.0
  %2059 = vmatprep.subr.mxu0 0.0
  %2060 = vmatpush1.msra.mxu0 0.0
  %2061 = vmatprep.subr.mxu0 0.0
  %2062 = vmatpush1.msra.mxu0 0.0
  %2063 = vmatprep.subr.mxu0 0.0
  %2064 = vmatpush1.msra.mxu0 0.0
  %2065 = vmatprep.subr.mxu0 0.0
  %2066 = vmatpush1.msra.mxu0 0.0
  %2067 = vmatprep.subr.mxu0 0.0
  %2068 = vmatpush1.msra.mxu0 0.0
  %2069 = vmatprep.subr.mxu0 0.0
  %2070 = vmatpush1.msra.mxu0 0.0
  %2071 = vmatprep.subr.mxu0 0.0
  %2072 = vmatpush1.msra.mxu0 0.0
  %2073 = vmatprep.subr.mxu0 0.0
  %2074 = vmatpush1.msra.mxu0 0.0
  %2075 = vmatprep.subr.mxu0 0.0
  %2076 = vmatpush1.msra.mxu0 0.0
  %2077 = vmatprep.subr.mxu0 0.0
  %2078 = vmatpush1.msra.mxu0 0.0
  %2079 = vmatprep.subr.mxu0 0.0
  %2080 = vmatpush1.msra.mxu0 0.0
  %2081 = vmatprep.subr.mxu0 0.0
  %2082 = vmatpush1.msra.mxu0 0.0
  %2083 = vmatprep.subr.mxu0 0.0
  %2084 = vmatpush1.msra.mxu0 0.0
  %2085 = vmatprep.subr.mxu0 0.0
  %2086 = vmatpush1.msra.mxu0 0.0
  %2087 = vmatprep.subr.mxu0 0.0
  %2088 = vmatpush1.msra.mxu0 0.0
  %2089 = vmatprep.subr.mxu0 0.0
  %2090 = vmatpush1.msra.mxu0 0.0
  %2091 = vmatprep.subr.mxu0 0.0
  %2092 = vmatpush1.msra.mxu0 0.0
  %2093 = vmatprep.subr.mxu0 0.0
  %2094 = vmatpush1.msra.mxu0 0.0
  %2095 = vmatprep.subr.mxu0 0.0
  %2096 = vmatpush1.msra.mxu0 0.0
  %2097 = vmatprep.subr.mxu0 0.0
  %2098 = vmatpush1.msra.mxu0 0.0
  %2099 = vmatprep.subr.mxu0 0.0
  %2100 = vmatpush1.msra.mxu0 0.0
  %2101 = vmatprep.mubr.f32.mxu0 0.0
  %2102 = vmatmul.mubr.f32.gmra.mrb[0].mxu0 %v2035
  %v2103 = vpop.f32.mrb[0].mxu0
  %v2104 = vadd.f32 0.0, %v2103
  %v2105 = vpop.f32.mrb[0].mxu0
  %v2106 = vadd.f32 0.0, %v2105
  %2107 = vdwg.mxu0
  %v2108 = vadd.f32 %v2106, %v1804
  %v2109 = vadd.f32 %v1663, %v2104
  %v2110 = vxor.u32 %v2108, 2147483648
  %v2111 = vmul.f32 %v2110, 1.442695
  %v2112 = vpow.pop %v2111
  %v2113 = vadd.f32 %v2112, 1.0
  %v2114 = vrcp.pop %v2113
  %v2115 = vmul.f32 1.0, %v2114
  %v2116 = vtanh.pop %v2108
  %v2117 = vmul.f32 %v2115, %v1987
  %2119 = vrot.lane.b32.xlu0 %v2116, 64
  %v2120 = vpop.permute.xlu0 %2119
  %v2122 = vmul.f32 %v2115, %v2120
  %2124 = vrot.lane.b32.xlu0 %v2122, 32
  %v2125 = vpop.permute.xlu0 %2124
  %v2127 = vadd.f32 %v2117, %v2125
  %v2128 = vtanh.pop %v2127
  %2130 = vrot.lane.b32.xlu0 %v2128, 64
  %v2131 = vpop.permute.xlu0 %2130
  %v2133 = vmul.f32 %v2115, %v2131
  %v2134 = vsub.f32 %v2133, %v1984
  %v2135 = vmul.f32 %v2018, %v2134
  %v2136 = vadd.f32 %v1984, %v2135
  %v2137 = vsub.f32 %v2127, %v1987
  %v2138 = vmul.f32 %v2018, %v2137
  %v2139 = vadd.f32 %v1987, %v2138
  %s2140 = scalar_lea.vmem %s2, 24
  %v2141 = vld [vmem:[%s2140] sm:$0xff]
  %v2142 = vxor.u32 %v2109, 2147483648
  %v2143 = vmul.f32 %v2142, 1.442695
  %v2144 = vpow.pop %v2143
  %v2145 = vadd.f32 %v2144, 1.0
  %v2146 = vrcp.pop %v2145
  %v2147 = vmul.f32 1.0, %v2146
  %v2148 = vtanh.pop %v2109
  %v2149 = vmul.f32 %v2147, %v2024
  %2151 = vrot.lane.b32.xlu0 %v2148, 64
  %v2152 = vpop.permute.xlu0 %2151
  %v2154 = vmul.f32 %v2147, %v2152
  %2156 = vrot.lane.b32.xlu0 %v2154, 32
  %v2157 = vpop.permute.xlu0 %2156
  %v2159 = vadd.f32 %v2149, %v2157
  %v2160 = vtanh.pop %v2159
  %2162 = vrot.lane.b32.xlu0 %v2160, 64
  %v2163 = vpop.permute.xlu0 %2162
  %v2165 = vmul.f32 %v2147, %v2163
  %v2166 = vsub.f32 %v2165, %v2021
  %2168 = vset.pattern.permute.xlu0 0
  %2169 = vperm.xlu0 %2168, %v2141
  %v2170 = vpop.permute.xlu0 %2169
  %v2172 = vmul.f32 %v2170, %v2166
  %v2173 = vadd.f32 %v2021, %v2172
  %v2174 = vsub.f32 %v2159, %v2024
  %v2175 = vmul.f32 %v2170, %v2174
  %v2176 = vadd.f32 %v2024, %v2175
  %2178 = vrot.lane.b32.xlu0 %v2173, 32
  %v2179 = vpop.permute.xlu0 %2178
  %2182 = vrot.lane.b32.xlu0 %v2136, 64
  %v2183 = vpop.permute.xlu0 %2182
  %v2185 = vsel %vm1484, %v2179, %v2183
  %v2187 = vsel %vm1725, %v2185, 0
  %2189 = vmatprep.subr.mxu0 %v42
  %2190 = vmatpush1.msra.mxu0 %v41
  %2191 = vmatprep.subr.mxu0 %v44
  %2192 = vmatpush1.msra.mxu0 %v43
  %2193 = vmatprep.subr.mxu0 %v46
  %2194 = vmatpush1.msra.mxu0 %v45
  %2195 = vmatprep.subr.mxu0 %v48
  %2196 = vmatpush1.msra.mxu0 %v47
  %2197 = vmatprep.subr.mxu0 %v50
  %2198 = vmatpush1.msra.mxu0 %v49
  %2199 = vmatprep.subr.mxu0 %v52
  %2200 = vmatpush1.msra.mxu0 %v51
  %2201 = vmatprep.subr.mxu0 %v54
  %2202 = vmatpush1.msra.mxu0 %v53
  %2203 = vmatprep.subr.mxu0 %v56
  %2204 = vmatpush1.msra.mxu0 %v55
  %2205 = vmatprep.subr.mxu0 0.0
  %2206 = vmatpush1.msra.mxu0 0.0
  %2207 = vmatprep.subr.mxu0 0.0
  %2208 = vmatpush1.msra.mxu0 0.0
  %2209 = vmatprep.subr.mxu0 0.0
  %2210 = vmatpush1.msra.mxu0 0.0
  %2211 = vmatprep.subr.mxu0 0.0
  %2212 = vmatpush1.msra.mxu0 0.0
  %2213 = vmatprep.subr.mxu0 0.0
  %2214 = vmatpush1.msra.mxu0 0.0
  %2215 = vmatprep.subr.mxu0 0.0
  %2216 = vmatpush1.msra.mxu0 0.0
  %2217 = vmatprep.subr.mxu0 0.0
  %2218 = vmatpush1.msra.mxu0 0.0
  %2219 = vmatprep.subr.mxu0 0.0
  %2220 = vmatpush1.msra.mxu0 0.0
  %2221 = vmatprep.subr.mxu0 0.0
  %2222 = vmatpush1.msra.mxu0 0.0
  %2223 = vmatprep.subr.mxu0 0.0
  %2224 = vmatpush1.msra.mxu0 0.0
  %2225 = vmatprep.subr.mxu0 0.0
  %2226 = vmatpush1.msra.mxu0 0.0
  %2227 = vmatprep.subr.mxu0 0.0
  %2228 = vmatpush1.msra.mxu0 0.0
  %2229 = vmatprep.subr.mxu0 0.0
  %2230 = vmatpush1.msra.mxu0 0.0
  %2231 = vmatprep.subr.mxu0 0.0
  %2232 = vmatpush1.msra.mxu0 0.0
  %2233 = vmatprep.subr.mxu0 0.0
  %2234 = vmatpush1.msra.mxu0 0.0
  %2235 = vmatprep.subr.mxu0 0.0
  %2236 = vmatpush1.msra.mxu0 0.0
  %2237 = vmatprep.subr.mxu0 0.0
  %2238 = vmatpush1.msra.mxu0 0.0
  %2239 = vmatprep.subr.mxu0 0.0
  %2240 = vmatpush1.msra.mxu0 0.0
  %2241 = vmatprep.subr.mxu0 0.0
  %2242 = vmatpush1.msra.mxu0 0.0
  %2243 = vmatprep.subr.mxu0 0.0
  %2244 = vmatpush1.msra.mxu0 0.0
  %2245 = vmatprep.subr.mxu0 0.0
  %2246 = vmatpush1.msra.mxu0 0.0
  %2247 = vmatprep.subr.mxu0 0.0
  %2248 = vmatpush1.msra.mxu0 0.0
  %2249 = vmatprep.subr.mxu0 0.0
  %2250 = vmatpush1.msra.mxu0 0.0
  %2251 = vmatprep.subr.mxu0 0.0
  %2252 = vmatpush1.msra.mxu0 0.0
  %2253 = vmatprep.mubr.f32.mxu0 0.0
  %2254 = vmatmul.mubr.f32.gmra.mrb[0].mxu0 %v2187
  %v2255 = vpop.f32.mrb[0].mxu0
  %v2256 = vadd.f32 0.0, %v2255
  %v2257 = vpop.f32.mrb[0].mxu0
  %v2258 = vadd.f32 0.0, %v2257
  %2259 = vdwg.mxu0
  %v2260 = vadd.f32 %v2258, %v1804
  %v2261 = vadd.f32 %v1668, %v2256
  %v2262 = vxor.u32 %v2260, 2147483648
  %v2263 = vmul.f32 %v2262, 1.442695
  %v2264 = vpow.pop %v2263
  %v2265 = vadd.f32 %v2264, 1.0
  %v2266 = vrcp.pop %v2265
  %v2267 = vmul.f32 1.0, %v2266
  %v2268 = vtanh.pop %v2260
  %v2269 = vmul.f32 %v2267, %v2139
  %2271 = vrot.lane.b32.xlu0 %v2268, 64
  %v2272 = vpop.permute.xlu0 %2271
  %v2274 = vmul.f32 %v2267, %v2272
  %2276 = vrot.lane.b32.xlu0 %v2274, 32
  %v2277 = vpop.permute.xlu0 %2276
  %v2279 = vadd.f32 %v2269, %v2277
  %v2280 = vtanh.pop %v2279
  %2282 = vrot.lane.b32.xlu0 %v2280, 64
  %v2283 = vpop.permute.xlu0 %2282
  %v2285 = vmul.f32 %v2267, %v2283
  %v2286 = vsub.f32 %v2285, %v2136
  %v2287 = vmul.f32 %v2170, %v2286
  %v2288 = vadd.f32 %v2136, %v2287
  %v2289 = vsub.f32 %v2279, %v2139
  %v2290 = vmul.f32 %v2170, %v2289
  %v2291 = vadd.f32 %v2139, %v2290
  %s2292 = scalar_lea.vmem %s2, 32
  %v2293 = vld [vmem:[%s2292] sm:$0xff]
  %v2294 = vxor.u32 %v2261, 2147483648
  %v2295 = vmul.f32 %v2294, 1.442695
  %v2296 = vpow.pop %v2295
  %v2297 = vadd.f32 %v2296, 1.0
  %v2298 = vrcp.pop %v2297
  %v2299 = vmul.f32 1.0, %v2298
  %v2300 = vtanh.pop %v2261
  %v2301 = vmul.f32 %v2299, %v2176
  %2303 = vrot.lane.b32.xlu0 %v2300, 64
  %v2304 = vpop.permute.xlu0 %2303
  %v2306 = vmul.f32 %v2299, %v2304
  %2308 = vrot.lane.b32.xlu0 %v2306, 32
  %v2309 = vpop.permute.xlu0 %2308
  %v2311 = vadd.f32 %v2301, %v2309
  %v2312 = vtanh.pop %v2311
  %2314 = vrot.lane.b32.xlu0 %v2312, 64
  %v2315 = vpop.permute.xlu0 %2314
  %v2317 = vmul.f32 %v2299, %v2315
  %v2318 = vsub.f32 %v2317, %v2173
  %2320 = vset.pattern.permute.xlu0 0
  %2321 = vperm.xlu0 %2320, %v2293
  %v2322 = vpop.permute.xlu0 %2321
  %v2324 = vmul.f32 %v2322, %v2318
  %v2325 = vadd.f32 %v2173, %v2324
  %v2326 = vsub.f32 %v2311, %v2176
  %v2327 = vmul.f32 %v2322, %v2326
  %v2328 = vadd.f32 %v2176, %v2327
  %2330 = vrot.lane.b32.xlu0 %v2325, 32
  %v2331 = vpop.permute.xlu0 %2330
  %2334 = vrot.lane.b32.xlu0 %v2288, 64
  %v2335 = vpop.permute.xlu0 %2334
  %v2337 = vsel %vm1484, %v2331, %v2335
  %v2339 = vsel %vm1725, %v2337, 0
  %2341 = vmatprep.subr.mxu0 %v42
  %2342 = vmatpush1.msra.mxu0 %v41
  %2343 = vmatprep.subr.mxu0 %v44
  %2344 = vmatpush1.msra.mxu0 %v43
  %2345 = vmatprep.subr.mxu0 %v46
  %2346 = vmatpush1.msra.mxu0 %v45
  %2347 = vmatprep.subr.mxu0 %v48
  %2348 = vmatpush1.msra.mxu0 %v47
  %2349 = vmatprep.subr.mxu0 %v50
  %2350 = vmatpush1.msra.mxu0 %v49
  %2351 = vmatprep.subr.mxu0 %v52
  %2352 = vmatpush1.msra.mxu0 %v51
  %2353 = vmatprep.subr.mxu0 %v54
  %2354 = vmatpush1.msra.mxu0 %v53
  %2355 = vmatprep.subr.mxu0 %v56
  %2356 = vmatpush1.msra.mxu0 %v55
  %2357 = vmatprep.subr.mxu0 0.0
  %2358 = vmatpush1.msra.mxu0 0.0
  %2359 = vmatprep.subr.mxu0 0.0
  %2360 = vmatpush1.msra.mxu0 0.0
  %2361 = vmatprep.subr.mxu0 0.0
  %2362 = vmatpush1.msra.mxu0 0.0
  %2363 = vmatprep.subr.mxu0 0.0
  %2364 = vmatpush1.msra.mxu0 0.0
  %2365 = vmatprep.subr.mxu0 0.0
  %2366 = vmatpush1.msra.mxu0 0.0
  %2367 = vmatprep.subr.mxu0 0.0
  %2368 = vmatpush1.msra.mxu0 0.0
  %2369 = vmatprep.subr.mxu0 0.0
  %2370 = vmatpush1.msra.mxu0 0.0
  %2371 = vmatprep.subr.mxu0 0.0
  %2372 = vmatpush1.msra.mxu0 0.0
  %2373 = vmatprep.subr.mxu0 0.0
  %2374 = vmatpush1.msra.mxu0 0.0
  %2375 = vmatprep.subr.mxu0 0.0
  %2376 = vmatpush1.msra.mxu0 0.0
  %2377 = vmatprep.subr.mxu0 0.0
  %2378 = vmatpush1.msra.mxu0 0.0
  %2379 = vmatprep.subr.mxu0 0.0
  %2380 = vmatpush1.msra.mxu0 0.0
  %2381 = vmatprep.subr.mxu0 0.0
  %2382 = vmatpush1.msra.mxu0 0.0
  %2383 = vmatprep.subr.mxu0 0.0
  %2384 = vmatpush1.msra.mxu0 0.0
  %2385 = vmatprep.subr.mxu0 0.0
  %2386 = vmatpush1.msra.mxu0 0.0
  %2387 = vmatprep.subr.mxu0 0.0
  %2388 = vmatpush1.msra.mxu0 0.0
  %2389 = vmatprep.subr.mxu0 0.0
  %2390 = vmatpush1.msra.mxu0 0.0
  %2391 = vmatprep.subr.mxu0 0.0
  %2392 = vmatpush1.msra.mxu0 0.0
  %2393 = vmatprep.subr.mxu0 0.0
  %2394 = vmatpush1.msra.mxu0 0.0
  %2395 = vmatprep.subr.mxu0 0.0
  %2396 = vmatpush1.msra.mxu0 0.0
  %2397 = vmatprep.subr.mxu0 0.0
  %2398 = vmatpush1.msra.mxu0 0.0
  %2399 = vmatprep.subr.mxu0 0.0
  %2400 = vmatpush1.msra.mxu0 0.0
  %2401 = vmatprep.subr.mxu0 0.0
  %2402 = vmatpush1.msra.mxu0 0.0
  %2403 = vmatprep.subr.mxu0 0.0
  %2404 = vmatpush1.msra.mxu0 0.0
  %2405 = vmatprep.mubr.f32.mxu0 0.0
  %2406 = vmatmul.mubr.f32.gmra.mrb[0].mxu0 %v2339
  %v2407 = vpop.f32.mrb[0].mxu0
  %v2408 = vadd.f32 0.0, %v2407
  %v2409 = vpop.f32.mrb[0].mxu0
  %v2410 = vadd.f32 0.0, %v2409
  %2411 = vdwg.mxu0
  %v2412 = vadd.f32 %v2410, %v1804
  %v2413 = vadd.f32 %v1673, %v2408
  %v2414 = vxor.u32 %v2412, 2147483648
  %v2415 = vmul.f32 %v2414, 1.442695
  %v2416 = vpow.pop %v2415
  %v2417 = vadd.f32 %v2416, 1.0
  %v2418 = vrcp.pop %v2417
  %v2419 = vmul.f32 1.0, %v2418
  %v2420 = vtanh.pop %v2412
  %v2421 = vmul.f32 %v2419, %v2291
  %2423 = vrot.lane.b32.xlu0 %v2420, 64
  %v2424 = vpop.permute.xlu0 %2423
  %v2426 = vmul.f32 %v2419, %v2424
  %2428 = vrot.lane.b32.xlu0 %v2426, 32
  %v2429 = vpop.permute.xlu0 %2428
  %v2431 = vadd.f32 %v2421, %v2429
  %v2432 = vtanh.pop %v2431
  %2434 = vrot.lane.b32.xlu0 %v2432, 64
  %v2435 = vpop.permute.xlu0 %2434
  %v2437 = vmul.f32 %v2419, %v2435
  %v2438 = vsub.f32 %v2437, %v2288
  %v2439 = vmul.f32 %v2322, %v2438
  %v2440 = vadd.f32 %v2288, %v2439
  %v2441 = vsub.f32 %v2431, %v2291
  %v2442 = vmul.f32 %v2322, %v2441
  %v2443 = vadd.f32 %v2291, %v2442
  %s2444 = scalar_lea.vmem %s2, 40
  %v2445 = vld [vmem:[%s2444] sm:$0xff]
  %v2446 = vxor.u32 %v2413, 2147483648
  %v2447 = vmul.f32 %v2446, 1.442695
  %v2448 = vpow.pop %v2447
  %v2449 = vadd.f32 %v2448, 1.0
  %v2450 = vrcp.pop %v2449
  %v2451 = vmul.f32 1.0, %v2450
  %v2452 = vtanh.pop %v2413
  %v2453 = vmul.f32 %v2451, %v2328
  %2455 = vrot.lane.b32.xlu0 %v2452, 64
  %v2456 = vpop.permute.xlu0 %2455
  %v2458 = vmul.f32 %v2451, %v2456
  %2460 = vrot.lane.b32.xlu0 %v2458, 32
  %v2461 = vpop.permute.xlu0 %2460
  %v2463 = vadd.f32 %v2453, %v2461
  %v2464 = vtanh.pop %v2463
  %2466 = vrot.lane.b32.xlu0 %v2464, 64
  %v2467 = vpop.permute.xlu0 %2466
  %v2469 = vmul.f32 %v2451, %v2467
  %v2470 = vsub.f32 %v2469, %v2325
  %2472 = vset.pattern.permute.xlu0 0
  %2473 = vperm.xlu0 %2472, %v2445
  %v2474 = vpop.permute.xlu0 %2473
  %v2476 = vmul.f32 %v2474, %v2470
  %v2477 = vadd.f32 %v2325, %v2476
  %v2478 = vsub.f32 %v2463, %v2328
  %v2479 = vmul.f32 %v2474, %v2478
  %v2480 = vadd.f32 %v2328, %v2479
  %2482 = vrot.lane.b32.xlu0 %v2477, 32
  %v2483 = vpop.permute.xlu0 %2482
  %2486 = vrot.lane.b32.xlu0 %v2440, 64
  %v2487 = vpop.permute.xlu0 %2486
  %v2489 = vsel %vm1484, %v2483, %v2487
  %v2491 = vsel %vm1725, %v2489, 0
  %2493 = vmatprep.subr.mxu0 %v42
  %2494 = vmatpush1.msra.mxu0 %v41
  %2495 = vmatprep.subr.mxu0 %v44
  %2496 = vmatpush1.msra.mxu0 %v43
  %2497 = vmatprep.subr.mxu0 %v46
  %2498 = vmatpush1.msra.mxu0 %v45
  %2499 = vmatprep.subr.mxu0 %v48
  %2500 = vmatpush1.msra.mxu0 %v47
  %2501 = vmatprep.subr.mxu0 %v50
  %2502 = vmatpush1.msra.mxu0 %v49
  %2503 = vmatprep.subr.mxu0 %v52
  %2504 = vmatpush1.msra.mxu0 %v51
  %2505 = vmatprep.subr.mxu0 %v54
  %2506 = vmatpush1.msra.mxu0 %v53
  %2507 = vmatprep.subr.mxu0 %v56
  %2508 = vmatpush1.msra.mxu0 %v55
  %2509 = vmatprep.subr.mxu0 0.0
  %2510 = vmatpush1.msra.mxu0 0.0
  %2511 = vmatprep.subr.mxu0 0.0
  %2512 = vmatpush1.msra.mxu0 0.0
  %2513 = vmatprep.subr.mxu0 0.0
  %2514 = vmatpush1.msra.mxu0 0.0
  %2515 = vmatprep.subr.mxu0 0.0
  %2516 = vmatpush1.msra.mxu0 0.0
  %2517 = vmatprep.subr.mxu0 0.0
  %2518 = vmatpush1.msra.mxu0 0.0
  %2519 = vmatprep.subr.mxu0 0.0
  %2520 = vmatpush1.msra.mxu0 0.0
  %2521 = vmatprep.subr.mxu0 0.0
  %2522 = vmatpush1.msra.mxu0 0.0
  %2523 = vmatprep.subr.mxu0 0.0
  %2524 = vmatpush1.msra.mxu0 0.0
  %2525 = vmatprep.subr.mxu0 0.0
  %2526 = vmatpush1.msra.mxu0 0.0
  %2527 = vmatprep.subr.mxu0 0.0
  %2528 = vmatpush1.msra.mxu0 0.0
  %2529 = vmatprep.subr.mxu0 0.0
  %2530 = vmatpush1.msra.mxu0 0.0
  %2531 = vmatprep.subr.mxu0 0.0
  %2532 = vmatpush1.msra.mxu0 0.0
  %2533 = vmatprep.subr.mxu0 0.0
  %2534 = vmatpush1.msra.mxu0 0.0
  %2535 = vmatprep.subr.mxu0 0.0
  %2536 = vmatpush1.msra.mxu0 0.0
  %2537 = vmatprep.subr.mxu0 0.0
  %2538 = vmatpush1.msra.mxu0 0.0
  %2539 = vmatprep.subr.mxu0 0.0
  %2540 = vmatpush1.msra.mxu0 0.0
  %2541 = vmatprep.subr.mxu0 0.0
  %2542 = vmatpush1.msra.mxu0 0.0
  %2543 = vmatprep.subr.mxu0 0.0
  %2544 = vmatpush1.msra.mxu0 0.0
  %2545 = vmatprep.subr.mxu0 0.0
  %2546 = vmatpush1.msra.mxu0 0.0
  %2547 = vmatprep.subr.mxu0 0.0
  %2548 = vmatpush1.msra.mxu0 0.0
  %2549 = vmatprep.subr.mxu0 0.0
  %2550 = vmatpush1.msra.mxu0 0.0
  %2551 = vmatprep.subr.mxu0 0.0
  %2552 = vmatpush1.msra.mxu0 0.0
  %2553 = vmatprep.subr.mxu0 0.0
  %2554 = vmatpush1.msra.mxu0 0.0
  %2555 = vmatprep.subr.mxu0 0.0
  %2556 = vmatpush1.msra.mxu0 0.0
  %2557 = vmatprep.mubr.f32.mxu0 0.0
  %2558 = vmatmul.mubr.f32.gmra.mrb[0].mxu0 %v2491
  %v2559 = vpop.f32.mrb[0].mxu0
  %v2560 = vadd.f32 0.0, %v2559
  %v2561 = vpop.f32.mrb[0].mxu0
  %v2562 = vadd.f32 0.0, %v2561
  %2563 = vdwg.mxu0
  %v2564 = vadd.f32 %v2562, %v1804
  %v2565 = vadd.f32 %v1678, %v2560
  %v2566 = vxor.u32 %v2564, 2147483648
  %v2567 = vmul.f32 %v2566, 1.442695
  %v2568 = vpow.pop %v2567
  %v2569 = vadd.f32 %v2568, 1.0
  %v2570 = vrcp.pop %v2569
  %v2571 = vmul.f32 1.0, %v2570
  %v2572 = vtanh.pop %v2564
  %v2573 = vmul.f32 %v2571, %v2443
  %2575 = vrot.lane.b32.xlu0 %v2572, 64
  %v2576 = vpop.permute.xlu0 %2575
  %v2578 = vmul.f32 %v2571, %v2576
  %2580 = vrot.lane.b32.xlu0 %v2578, 32
  %v2581 = vpop.permute.xlu0 %2580
  %v2583 = vadd.f32 %v2573, %v2581
  %v2584 = vtanh.pop %v2583
  %2586 = vrot.lane.b32.xlu0 %v2584, 64
  %v2587 = vpop.permute.xlu0 %2586
  %v2589 = vmul.f32 %v2571, %v2587
  %v2590 = vsub.f32 %v2589, %v2440
  %v2591 = vmul.f32 %v2474, %v2590
  %v2592 = vadd.f32 %v2440, %v2591
  %v2593 = vsub.f32 %v2583, %v2443
  %v2594 = vmul.f32 %v2474, %v2593
  %v2595 = vadd.f32 %v2443, %v2594
  %s2596 = scalar_lea.vmem %s2, 48
  %v2597 = vld [vmem:[%s2596] sm:$0xff]
  %v2598 = vxor.u32 %v2565, 2147483648
  %v2599 = vmul.f32 %v2598, 1.442695
  %v2600 = vpow.pop %v2599
  %v2601 = vadd.f32 %v2600, 1.0
  %v2602 = vrcp.pop %v2601
  %v2603 = vmul.f32 1.0, %v2602
  %v2604 = vtanh.pop %v2565
  %v2605 = vmul.f32 %v2603, %v2480
  %2607 = vrot.lane.b32.xlu0 %v2604, 64
  %v2608 = vpop.permute.xlu0 %2607
  %v2610 = vmul.f32 %v2603, %v2608
  %2612 = vrot.lane.b32.xlu0 %v2610, 32
  %v2613 = vpop.permute.xlu0 %2612
  %v2615 = vadd.f32 %v2605, %v2613
  %v2616 = vtanh.pop %v2615
  %2618 = vrot.lane.b32.xlu0 %v2616, 64
  %v2619 = vpop.permute.xlu0 %2618
  %v2621 = vmul.f32 %v2603, %v2619
  %v2622 = vsub.f32 %v2621, %v2477
  %2624 = vset.pattern.permute.xlu0 0
  %2625 = vperm.xlu0 %2624, %v2597
  %v2626 = vpop.permute.xlu0 %2625
  %v2628 = vmul.f32 %v2626, %v2622
  %v2629 = vadd.f32 %v2477, %v2628
  %v2630 = vsub.f32 %v2615, %v2480
  %v2631 = vmul.f32 %v2626, %v2630
  %v2632 = vadd.f32 %v2480, %v2631
  %2634 = vrot.lane.b32.xlu0 %v2629, 32
  %v2635 = vpop.permute.xlu0 %2634
  %2638 = vrot.lane.b32.xlu0 %v2592, 64
  %v2639 = vpop.permute.xlu0 %2638
  %v2641 = vsel %vm1484, %v2635, %v2639
  %v2643 = vsel %vm1725, %v2641, 0
  %2645 = vmatprep.subr.mxu0 %v42
  %2646 = vmatpush1.msra.mxu0 %v41
  %2647 = vmatprep.subr.mxu0 %v44
  %2648 = vmatpush1.msra.mxu0 %v43
  %2649 = vmatprep.subr.mxu0 %v46
  %2650 = vmatpush1.msra.mxu0 %v45
  %2651 = vmatprep.subr.mxu0 %v48
  %2652 = vmatpush1.msra.mxu0 %v47
  %2653 = vmatprep.subr.mxu0 %v50
  %2654 = vmatpush1.msra.mxu0 %v49
  %2655 = vmatprep.subr.mxu0 %v52
  %2656 = vmatpush1.msra.mxu0 %v51
  %2657 = vmatprep.subr.mxu0 %v54
  %2658 = vmatpush1.msra.mxu0 %v53
  %2659 = vmatprep.subr.mxu0 %v56
  %2660 = vmatpush1.msra.mxu0 %v55
  %2661 = vmatprep.subr.mxu0 0.0
  %2662 = vmatpush1.msra.mxu0 0.0
  %2663 = vmatprep.subr.mxu0 0.0
  %2664 = vmatpush1.msra.mxu0 0.0
  %2665 = vmatprep.subr.mxu0 0.0
  %2666 = vmatpush1.msra.mxu0 0.0
  %2667 = vmatprep.subr.mxu0 0.0
  %2668 = vmatpush1.msra.mxu0 0.0
  %2669 = vmatprep.subr.mxu0 0.0
  %2670 = vmatpush1.msra.mxu0 0.0
  %2671 = vmatprep.subr.mxu0 0.0
  %2672 = vmatpush1.msra.mxu0 0.0
  %2673 = vmatprep.subr.mxu0 0.0
  %2674 = vmatpush1.msra.mxu0 0.0
  %2675 = vmatprep.subr.mxu0 0.0
  %2676 = vmatpush1.msra.mxu0 0.0
  %2677 = vmatprep.subr.mxu0 0.0
  %2678 = vmatpush1.msra.mxu0 0.0
  %2679 = vmatprep.subr.mxu0 0.0
  %2680 = vmatpush1.msra.mxu0 0.0
  %2681 = vmatprep.subr.mxu0 0.0
  %2682 = vmatpush1.msra.mxu0 0.0
  %2683 = vmatprep.subr.mxu0 0.0
  %2684 = vmatpush1.msra.mxu0 0.0
  %2685 = vmatprep.subr.mxu0 0.0
  %2686 = vmatpush1.msra.mxu0 0.0
  %2687 = vmatprep.subr.mxu0 0.0
  %2688 = vmatpush1.msra.mxu0 0.0
  %2689 = vmatprep.subr.mxu0 0.0
  %2690 = vmatpush1.msra.mxu0 0.0
  %2691 = vmatprep.subr.mxu0 0.0
  %2692 = vmatpush1.msra.mxu0 0.0
  %2693 = vmatprep.subr.mxu0 0.0
  %2694 = vmatpush1.msra.mxu0 0.0
  %2695 = vmatprep.subr.mxu0 0.0
  %2696 = vmatpush1.msra.mxu0 0.0
  %2697 = vmatprep.subr.mxu0 0.0
  %2698 = vmatpush1.msra.mxu0 0.0
  %2699 = vmatprep.subr.mxu0 0.0
  %2700 = vmatpush1.msra.mxu0 0.0
  %2701 = vmatprep.subr.mxu0 0.0
  %2702 = vmatpush1.msra.mxu0 0.0
  %2703 = vmatprep.subr.mxu0 0.0
  %2704 = vmatpush1.msra.mxu0 0.0
  %2705 = vmatprep.subr.mxu0 0.0
  %2706 = vmatpush1.msra.mxu0 0.0
  %2707 = vmatprep.subr.mxu0 0.0
  %2708 = vmatpush1.msra.mxu0 0.0
  %2709 = vmatprep.mubr.f32.mxu0 0.0
  %2710 = vmatmul.mubr.f32.gmra.mrb[0].mxu0 %v2643
  %v2711 = vpop.f32.mrb[0].mxu0
  %v2712 = vadd.f32 0.0, %v2711
  %v2713 = vpop.f32.mrb[0].mxu0
  %v2714 = vadd.f32 0.0, %v2713
  %2715 = vdwg.mxu0
  %v2716 = vadd.f32 %v2714, %v1804
  %v2717 = vadd.f32 %v1683, %v2712
  %v2718 = vxor.u32 %v2716, 2147483648
  %v2719 = vmul.f32 %v2718, 1.442695
  %v2720 = vpow.pop %v2719
  %v2721 = vadd.f32 %v2720, 1.0
  %v2722 = vrcp.pop %v2721
  %v2723 = vmul.f32 1.0, %v2722
  %v2724 = vtanh.pop %v2716
  %v2725 = vmul.f32 %v2723, %v2595
  %2727 = vrot.lane.b32.xlu0 %v2724, 64
  %v2728 = vpop.permute.xlu0 %2727
  %v2730 = vmul.f32 %v2723, %v2728
  %2732 = vrot.lane.b32.xlu0 %v2730, 32
  %v2733 = vpop.permute.xlu0 %2732
  %v2735 = vadd.f32 %v2725, %v2733
  %v2736 = vtanh.pop %v2735
  %2738 = vrot.lane.b32.xlu0 %v2736, 64
  %v2739 = vpop.permute.xlu0 %2738
  %v2741 = vmul.f32 %v2723, %v2739
  %v2742 = vsub.f32 %v2741, %v2592
  %v2743 = vmul.f32 %v2626, %v2742
  %v2744 = vadd.f32 %v2592, %v2743
  %v2745 = vsub.f32 %v2735, %v2595
  %v2746 = vmul.f32 %v2626, %v2745
  %v2747 = vadd.f32 %v2595, %v2746
  %s2748 = scalar_lea.vmem %s2, 56
  %v2749 = vld [vmem:[%s2748] sm:$0xff]
  %v2750 = vxor.u32 %v2717, 2147483648
  %v2751 = vmul.f32 %v2750, 1.442695
  %v2752 = vpow.pop %v2751
  %v2753 = vadd.f32 %v2752, 1.0
  %v2754 = vrcp.pop %v2753
  %v2755 = vmul.f32 1.0, %v2754
  %v2756 = vtanh.pop %v2717
  %v2757 = vmul.f32 %v2755, %v2632
  %2759 = vrot.lane.b32.xlu0 %v2756, 64
  %v2760 = vpop.permute.xlu0 %2759
  %v2762 = vmul.f32 %v2755, %v2760
  %2764 = vrot.lane.b32.xlu0 %v2762, 32
  %v2765 = vpop.permute.xlu0 %2764
  %v2767 = vadd.f32 %v2757, %v2765
  %v2768 = vtanh.pop %v2767
  %2770 = vrot.lane.b32.xlu0 %v2768, 64
  %v2771 = vpop.permute.xlu0 %2770
  %v2773 = vmul.f32 %v2755, %v2771
  %v2774 = vsub.f32 %v2773, %v2629
  %2776 = vset.pattern.permute.xlu0 0
  %2777 = vperm.xlu0 %2776, %v2749
  %v2778 = vpop.permute.xlu0 %2777
  %v2780 = vmul.f32 %v2778, %v2774
  %v2781 = vadd.f32 %v2629, %v2780
  %v2782 = vsub.f32 %v2767, %v2632
  %v2783 = vmul.f32 %v2778, %v2782
  %v2784 = vadd.f32 %v2632, %v2783
  %2786 = vrot.lane.b32.xlu0 %v2781, 32
  %v2787 = vpop.permute.xlu0 %2786
  %2790 = vrot.lane.b32.xlu0 %v2744, 64
  %v2791 = vpop.permute.xlu0 %2790
  %v2793 = vsel %vm1484, %v2787, %v2791
  %v2795 = vsel %vm1725, %v2793, 0
  %2797 = vmatprep.subr.mxu0 %v42
  %2798 = vmatpush1.msra.mxu0 %v41
  %2799 = vmatprep.subr.mxu0 %v44
  %2800 = vmatpush1.msra.mxu0 %v43
  %2801 = vmatprep.subr.mxu0 %v46
  %2802 = vmatpush1.msra.mxu0 %v45
  %2803 = vmatprep.subr.mxu0 %v48
  %2804 = vmatpush1.msra.mxu0 %v47
  %2805 = vmatprep.subr.mxu0 %v50
  %2806 = vmatpush1.msra.mxu0 %v49
  %2807 = vmatprep.subr.mxu0 %v52
  %2808 = vmatpush1.msra.mxu0 %v51
  %2809 = vmatprep.subr.mxu0 %v54
  %2810 = vmatpush1.msra.mxu0 %v53
  %2811 = vmatprep.subr.mxu0 %v56
  %2812 = vmatpush1.msra.mxu0 %v55
  %2813 = vmatprep.subr.mxu0 0.0
  %2814 = vmatpush1.msra.mxu0 0.0
  %2815 = vmatprep.subr.mxu0 0.0
  %2816 = vmatpush1.msra.mxu0 0.0
  %2817 = vmatprep.subr.mxu0 0.0
  %2818 = vmatpush1.msra.mxu0 0.0
  %2819 = vmatprep.subr.mxu0 0.0
  %2820 = vmatpush1.msra.mxu0 0.0
  %2821 = vmatprep.subr.mxu0 0.0
  %2822 = vmatpush1.msra.mxu0 0.0
  %2823 = vmatprep.subr.mxu0 0.0
  %2824 = vmatpush1.msra.mxu0 0.0
  %2825 = vmatprep.subr.mxu0 0.0
  %2826 = vmatpush1.msra.mxu0 0.0
  %2827 = vmatprep.subr.mxu0 0.0
  %2828 = vmatpush1.msra.mxu0 0.0
  %2829 = vmatprep.subr.mxu0 0.0
  %2830 = vmatpush1.msra.mxu0 0.0
  %2831 = vmatprep.subr.mxu0 0.0
  %2832 = vmatpush1.msra.mxu0 0.0
  %2833 = vmatprep.subr.mxu0 0.0
  %2834 = vmatpush1.msra.mxu0 0.0
  %2835 = vmatprep.subr.mxu0 0.0
  %2836 = vmatpush1.msra.mxu0 0.0
  %2837 = vmatprep.subr.mxu0 0.0
  %2838 = vmatpush1.msra.mxu0 0.0
  %2839 = vmatprep.subr.mxu0 0.0
  %2840 = vmatpush1.msra.mxu0 0.0
  %2841 = vmatprep.subr.mxu0 0.0
  %2842 = vmatpush1.msra.mxu0 0.0
  %2843 = vmatprep.subr.mxu0 0.0
  %2844 = vmatpush1.msra.mxu0 0.0
  %2845 = vmatprep.subr.mxu0 0.0
  %2846 = vmatpush1.msra.mxu0 0.0
  %2847 = vmatprep.subr.mxu0 0.0
  %2848 = vmatpush1.msra.mxu0 0.0
  %2849 = vmatprep.subr.mxu0 0.0
  %2850 = vmatpush1.msra.mxu0 0.0
  %2851 = vmatprep.subr.mxu0 0.0
  %2852 = vmatpush1.msra.mxu0 0.0
  %2853 = vmatprep.subr.mxu0 0.0
  %2854 = vmatpush1.msra.mxu0 0.0
  %2855 = vmatprep.subr.mxu0 0.0
  %2856 = vmatpush1.msra.mxu0 0.0
  %2857 = vmatprep.subr.mxu0 0.0
  %2858 = vmatpush1.msra.mxu0 0.0
  %2859 = vmatprep.subr.mxu0 0.0
  %2860 = vmatpush1.msra.mxu0 0.0
  %2861 = vmatprep.mubr.f32.mxu0 0.0
  %2862 = vmatmul.mubr.f32.gmra.mrb[0].mxu0 %v2795
  %v2863 = vpop.f32.mrb[0].mxu0
  %v2864 = vpop.f32.mrb[0].mxu0
  %v2865 = vadd.f32 0.0, %v2864
  %2866 = vdwg.mxu0
  %v2867 = vadd.f32 %v2865, %v1804
  %v2868 = vxor.u32 %v2867, 2147483648
  %v2869 = vmul.f32 %v2868, 1.442695
  %v2870 = vpow.pop %v2869
  %v2871 = vadd.f32 %v2870, 1.0
  %v2872 = vrcp.pop %v2871
  %v2873 = vmul.f32 1.0, %v2872
  %v2874 = vtanh.pop %v2867
  %v2875 = vmul.f32 %v2873, %v2747
  %2877 = vrot.lane.b32.xlu0 %v2874, 64
  %v2878 = vpop.permute.xlu0 %2877
  %v2880 = vmul.f32 %v2873, %v2878
  %2882 = vrot.lane.b32.xlu0 %v2880, 32
  %v2883 = vpop.permute.xlu0 %2882
  %v2885 = vadd.f32 %v2875, %v2883
  %v2886 = vtanh.pop %v2885
  %2888 = vrot.lane.b32.xlu0 %v2886, 64
  %v2889 = vpop.permute.xlu0 %2888
  %v2891 = vmul.f32 %v2873, %v2889
  %v2892 = vsub.f32 %v2891, %v2744
  %v2893 = vmul.f32 %v2778, %v2892
  %v2894 = vadd.f32 %v2744, %v2893
  %v2895 = vsub.f32 %v2885, %v2747
  %v2896 = vmul.f32 %v2778, %v2895
  %v2897 = vadd.f32 %v2747, %v2896
  %v2898 = vld [vmem:[%s9] sm:$0xff]
  %v2899 = vld [vmem:[%s9 + $0x8] sm:$0xff]
  %v2900 = vld [vmem:[%s9 + $0x10] sm:$0xff]
  %v2901 = vld [vmem:[%s9 + $0x18] sm:$0xff]
  %v2902 = vld [vmem:[%s10] sm:$0x1]
  %v2904 = vlaneseq
  %v2905 = vshrl.u32 %v2904, 7
  %v2906 = vsub.s32 0, %v2905
  %v2907 = vrot.slane %v2902, %v2906
  %2910 = vrot.lane.b32.xlu0 %v1833, 32
  %v2911 = vpop.permute.xlu0 %2910
  %2912 = vrot.lane.b32.xlu0 %v1984, 32
  %v2913 = vpop.permute.xlu0 %2912
  %2914 = vrot.lane.b32.xlu0 %v2136, 32
  %v2915 = vpop.permute.xlu0 %2914
  %2916 = vrot.lane.b32.xlu0 %v2288, 32
  %v2917 = vpop.permute.xlu0 %2916
  %2918 = vrot.lane.b32.xlu0 %v2440, 32
  %v2919 = vpop.permute.xlu0 %2918
  %2920 = vrot.lane.b32.xlu0 %v2592, 32
  %v2921 = vpop.permute.xlu0 %2920
  %2922 = vrot.lane.b32.xlu0 %v2744, 32
  %v2923 = vpop.permute.xlu0 %2922
  %2924 = vrot.lane.b32.xlu0 %v2894, 32
  %v2925 = vpop.permute.xlu0 %2924
  %v2926 = vsel %vm1484, %v2911, 0
  %v2928 = vsel %vm1484, %v2913, 0
  %v2930 = vsel %vm1484, %v2915, 0
  %v2932 = vsel %vm1484, %v2917, 0
  %v2934 = vsel %vm1484, %v2919, 0
  %v2936 = vsel %vm1484, %v2921, 0
  %v2938 = vsel %vm1484, %v2923, 0
  %v2940 = vsel %vm1484, %v2925, 0
  %2942 = vmatprep.subr.mxu0 0.0
  %2943 = vmatpush1.msra.mxu0 %v2898
  %2944 = vmatprep.subr.mxu0 0.0
  %2945 = vmatpush1.msra.mxu0 %v2899
  %2946 = vmatprep.subr.mxu0 0.0
  %2947 = vmatpush1.msra.mxu0 %v2900
  %2948 = vmatprep.subr.mxu0 0.0
  %2949 = vmatpush1.msra.mxu0 %v2901
  %2950 = vmatprep.subr.mxu0 0.0
  %2951 = vmatpush1.msra.mxu0 0.0
  %2952 = vmatprep.subr.mxu0 0.0
  %2953 = vmatpush1.msra.mxu0 0.0
  %2954 = vmatprep.subr.mxu0 0.0
  %2955 = vmatpush1.msra.mxu0 0.0
  %2956 = vmatprep.subr.mxu0 0.0
  %2957 = vmatpush1.msra.mxu0 0.0
  %2958 = vmatprep.subr.mxu0 0.0
  %2959 = vmatpush1.msra.mxu0 0.0
  %2960 = vmatprep.subr.mxu0 0.0
  %2961 = vmatpush1.msra.mxu0 0.0
  %2962 = vmatprep.subr.mxu0 0.0
  %2963 = vmatpush1.msra.mxu0 0.0
  %2964 = vmatprep.subr.mxu0 0.0
  %2965 = vmatpush1.msra.mxu0 0.0
  %2966 = vmatprep.subr.mxu0 0.0
  %2967 = vmatpush1.msra.mxu0 0.0
  %2968 = vmatprep.subr.mxu0 0.0
  %2969 = vmatpush1.msra.mxu0 0.0
  %2970 = vmatprep.subr.mxu0 0.0
  %2971 = vmatpush1.msra.mxu0 0.0
  %2972 = vmatprep.subr.mxu0 0.0
  %2973 = vmatpush1.msra.mxu0 0.0
  %2974 = vmatprep.subr.mxu0 0.0
  %2975 = vmatpush1.msra.mxu0 0.0
  %2976 = vmatprep.subr.mxu0 0.0
  %2977 = vmatpush1.msra.mxu0 0.0
  %2978 = vmatprep.subr.mxu0 0.0
  %2979 = vmatpush1.msra.mxu0 0.0
  %2980 = vmatprep.subr.mxu0 0.0
  %2981 = vmatpush1.msra.mxu0 0.0
  %2982 = vmatprep.subr.mxu0 0.0
  %2983 = vmatpush1.msra.mxu0 0.0
  %2984 = vmatprep.subr.mxu0 0.0
  %2985 = vmatpush1.msra.mxu0 0.0
  %2986 = vmatprep.subr.mxu0 0.0
  %2987 = vmatpush1.msra.mxu0 0.0
  %2988 = vmatprep.subr.mxu0 0.0
  %2989 = vmatpush1.msra.mxu0 0.0
  %2990 = vmatprep.subr.mxu0 0.0
  %2991 = vmatpush1.msra.mxu0 0.0
  %2992 = vmatprep.subr.mxu0 0.0
  %2993 = vmatpush1.msra.mxu0 0.0
  %2994 = vmatprep.subr.mxu0 0.0
  %2995 = vmatpush1.msra.mxu0 0.0
  %2996 = vmatprep.subr.mxu0 0.0
  %2997 = vmatpush1.msra.mxu0 0.0
  %2998 = vmatprep.subr.mxu0 0.0
  %2999 = vmatpush1.msra.mxu0 0.0
  %3000 = vmatprep.subr.mxu0 0.0
  %3001 = vmatpush1.msra.mxu0 0.0
  %3002 = vmatprep.subr.mxu0 0.0
  %3003 = vmatpush1.msra.mxu0 0.0
  %3004 = vmatprep.subr.mxu0 0.0
  %3005 = vmatpush1.msra.mxu0 0.0
  %3006 = vmatprep.mubr.f32.mxu0 0.0
  %3007 = vmatmul.mubr.f32.gmra.mrb[0].mxu0 %v2926
  %v3008 = vpop.f32.mrb[0].mxu0
  %v3009 = vadd.f32 %v2907, %v3008
  %v3010 = vpop.f32.mrb[0].mxu0
  %3011 = vmatprep.mubr.f32.mxu0 0.0
  %3012 = vmatmul.mubr.f32.gmra.mrb[0].mxu0 %v2928
  %v3013 = vpop.f32.mrb[0].mxu0
  %v3014 = vadd.f32 %v2907, %v3013
  %v3015 = vpop.f32.mrb[0].mxu0
  %3016 = vmatprep.mubr.f32.mxu0 0.0
  %3017 = vmatmul.mubr.f32.gmra.mrb[0].mxu0 %v2930
  %v3018 = vpop.f32.mrb[0].mxu0
  %v3019 = vadd.f32 %v2907, %v3018
  %v3020 = vpop.f32.mrb[0].mxu0
  %3021 = vmatprep.mubr.f32.mxu0 0.0
  %3022 = vmatmul.mubr.f32.gmra.mrb[0].mxu0 %v2932
  %v3023 = vpop.f32.mrb[0].mxu0
  %v3024 = vadd.f32 %v2907, %v3023
  %v3025 = vpop.f32.mrb[0].mxu0
  %3026 = vmatprep.mubr.f32.mxu0 0.0
  %3027 = vmatmul.mubr.f32.gmra.mrb[0].mxu0 %v2934
  %v3028 = vpop.f32.mrb[0].mxu0
  %v3029 = vadd.f32 %v2907, %v3028
  %v3030 = vpop.f32.mrb[0].mxu0
  %3031 = vmatprep.mubr.f32.mxu0 0.0
  %3032 = vmatmul.mubr.f32.gmra.mrb[0].mxu0 %v2936
  %v3033 = vpop.f32.mrb[0].mxu0
  %v3034 = vadd.f32 %v2907, %v3033
  %v3035 = vpop.f32.mrb[0].mxu0
  %3036 = vmatprep.mubr.f32.mxu0 0.0
  %3037 = vmatmul.mubr.f32.gmra.mrb[0].mxu0 %v2938
  %v3038 = vpop.f32.mrb[0].mxu0
  %v3039 = vadd.f32 %v2907, %v3038
  %v3040 = vpop.f32.mrb[0].mxu0
  %3041 = vmatprep.mubr.f32.mxu0 0.0
  %3042 = vmatmul.mubr.f32.gmra.mrb[0].mxu0 %v2940
  %v3043 = vpop.f32.mrb[0].mxu0
  %v3044 = vadd.f32 %v2907, %v3043
  %v3045 = vpop.f32.mrb[0].mxu0
  %3046 = vdwg.mxu0
  %3047 = vst [vmem:[%s11] sm:$0xff] %v3009
  %3048 = vst [vmem:[%s11 + $0x8] sm:$0xff] %v3014
  %3049 = vst [vmem:[%s11 + $0x10] sm:$0xff] %v3019
  %3050 = vst [vmem:[%s11 + $0x18] sm:$0xff] %v3024
  %3051 = vst [vmem:[%s11 + $0x20] sm:$0xff] %v3029
  %3052 = vst [vmem:[%s11 + $0x28] sm:$0xff] %v3034
  %3053 = vst [vmem:[%s11 + $0x30] sm:$0xff] %v3039
  %3054 = vst [vmem:[%s11 + $0x38] sm:$0xff] %v3044
  %3055 = vrot.lane.b32.xlu0 %v2894, 64
  %v3056 = vpop.permute.xlu0 %3055
  %3059 = vrot.lane.b32.xlu0 %v2784, 32
  %v3060 = vpop.permute.xlu0 %3059
  %3063 = vrot.lane.b32.xlu0 %v2897, 64
  %v3064 = vpop.permute.xlu0 %3063
  %v3066 = vsel %vm1484, %v2787, %v3056
  %v3067 = vsel %vm1725, %v3066, %v3060
  %vm3068 = vcmask 785408
  %v3069 = vsel %vm3068, %v3067, %v3064
  %3070 = vst [vmem:[%s12] sm:$0xff] %v3069
  // Predicated region
  $region46: #{_forward_core.1} parent=0 // pred_check
    _
  $region47: #{_forward_core.1} parent=0 // pred_check_branch
    %3072 = sbr.rel (0) target = $region49
  $region48: #{_forward_core.1} parent=0 // pred_region
    _
  $region49: #{_forward_core.1} parent=0 // pred_fallthru
    _
  // Predicated region
  $region50: #{_forward_core.1} parent=0 // pred_check
    _
  $region51: #{_forward_core.1} parent=0 // pred_check_branch
    %3074 = sbr.rel (0) target = $region53
  $region52: #{_forward_core.1} parent=0 // pred_region
    _
  $region53: #{_forward_core.1} parent=0 // pred_fallthru
    _
  // Predicated region
  $region54: #{_forward_core.1} parent=0 // pred_check
    _
  $region55: #{_forward_core.1} parent=0 // pred_check_branch
    %3076 = sbr.rel (0) target = $region57
  $region56: #{_forward_core.1} parent=0 // pred_region
    _
  $region57: #{_forward_core.1} parent=0 // pred_fallthru
    _
  // Predicated region
  $region58: #{_forward_core.1} parent=0 // pred_check
    _
  $region59: #{_forward_core.1} parent=0 // pred_check_branch
    %3078 = sbr.rel (0) target = $region61
  $region60: #{_forward_core.1} parent=0 // pred_region
    _
  $region61: #{_forward_core.1} parent=0 // pred_fallthru
    _

</llo_original>
